<compile_context>
chip_gen: v7x
topology: tpu7x:2x2x1
jax: 0.10.0
libtpu: 0.0.40
codegen_flags: <defaults>
</compile_context>

<pallas_src>
import functools

import jax
import jax.numpy as jnp
from jax.experimental import pallas as pl
from jax.experimental.pallas import tpu as pltpu

HIDDEN = 128
INPUT = 28
CLASSES = 10
NUM_LAYERS = 2   # hard-wired: two stacked LSTM layers inside the kernel
BATCH = 2
SEQ = 8
OUT_PAD = 128    # classifier output padded to full lane width


def lstm_fc_kernel(x_ref, w0x_ref, w0h_ref, b0_ref, w1_ref, b1_ref,
                   fcw_ref, fcb_ref, out_ref, *, seq, batch):
    """Fused 2-layer LSTM + FC. Everything lives in VMEM (single grid point).

    x_ref:   (T*B, INPUT)  f32   time-major rows [t0b0, t0b1, t1b0, ...]
    w0x_ref: (INPUT, 4H)   bf16  layer-0 input weights (pre-transposed)
    w0h_ref: (H, 4H)       bf16  layer-0 recurrent weights
    b0_ref:  (1, 4H)       f32   b_ih0 + b_hh0
    w1_ref:  (2H, 4H)      bf16  layer-1 fused [W_ih1; W_hh1]  (K = 2H = 256)
    b1_ref:  (1, 4H)       f32   b_ih1 + b_hh1
    fcw_ref: (H, OUT_PAD)  bf16  classifier weights, zero-padded to 128 lanes
    fcb_ref: (1, OUT_PAD)  f32
    out_ref: (B, OUT_PAD)  f32
    """
    H = w0h_ref.shape[0]
    T, B = seq, batch

    # ---- hoisted layer-0 input projection (no recurrent dependency) --------
    # One (T*B, INPUT) x (INPUT, 4H) matmul instead of T tiny dots on the
    # serial chain; layer-0 bias folded in here.
    xp = (jnp.dot(x_ref[...].astype(jnp.bfloat16), w0x_ref[...],
                  preferred_element_type=jnp.float32)
          + b0_ref[...])                                      # (T*B, 4H) f32

    w0h = w0h_ref[...]
    w1 = w1_ref[...]
    b1 = jnp.broadcast_to(b1_ref[...], (B, 4 * H))            # hoisted broadcast

    def gates_to_hc(gates, c):
        # PyTorch gate order [i, f, g, o]; slices are 128-lane aligned.
        i = jax.nn.sigmoid(gates[:, 0 * H:1 * H])
        f = jax.nn.sigmoid(gates[:, 1 * H:2 * H])
        g = jnp.tanh(gates[:, 2 * H:3 * H])
        o = jax.nn.sigmoid(gates[:, 3 * H:4 * H])
        c_new = f * c + i * g
        h_new = o * jnp.tanh(c_new)
        return h_new, c_new

    # h0 = c0 = zeros, exactly as in the PyTorch forward.
    h0 = jnp.zeros((B, H), jnp.float32)
    c0 = jnp.zeros((B, H), jnp.float32)
    h1 = jnp.zeros((B, H), jnp.float32)
    c1 = jnp.zeros((B, H), jnp.float32)

    # T is small & static -> fully unrolled serial recurrence (LLO sees chain).
    for t in range(T):
        # layer 0: only the recurrent dot remains on the serial chain.
        g0 = xp[t * B:(t + 1) * B, :] + jnp.dot(
            h0.astype(jnp.bfloat16), w0h, preferred_element_type=jnp.float32)
        h0, c0 = gates_to_hc(g0, c0)

        # layer 1: single fused matmul over [h0 ; h1]  (K = 2H = 256).
        hcat = jnp.concatenate([h0, h1], axis=-1).astype(jnp.bfloat16)
        g1 = jnp.dot(hcat, w1, preferred_element_type=jnp.float32) + b1
        h1, c1 = gates_to_hc(g1, c1)

    # fc on the last-timestep layer-1 hidden state (lane-dense padded store).
    out_ref[...] = (jnp.dot(h1.astype(jnp.bfloat16), fcw_ref[...],
                            preferred_element_type=jnp.float32)
                    + fcb_ref[...])


def init_params(key):
    """PyTorch-style init: uniform(-1/sqrt(H), 1/sqrt(H)) for LSTM and Linear."""
    bound = 1.0 / float(HIDDEN) ** 0.5
    keys = jax.random.split(key, 10)

    def u(k, shape):
        return jax.random.uniform(k, shape, jnp.float32, -bound, bound)

    # layer 0
    wih0 = u(keys[0], (4 * HIDDEN, INPUT))
    whh0 = u(keys[1], (4 * HIDDEN, HIDDEN))
    bih0 = u(keys[2], (4 * HIDDEN,))
    bhh0 = u(keys[3], (4 * HIDDEN,))
    # layer 1
    wih1 = u(keys[4], (4 * HIDDEN, HIDDEN))
    whh1 = u(keys[5], (4 * HIDDEN, HIDDEN))
    bih1 = u(keys[6], (4 * HIDDEN,))
    bhh1 = u(keys[7], (4 * HIDDEN,))
    # fc
    fcw = u(keys[8], (CLASSES, HIDDEN))
    fcb = u(keys[9], (CLASSES,))

    # Pad classifier to 128 output lanes (unmasked store); extra lanes are 0.
    fcw_pad = jnp.zeros((HIDDEN, OUT_PAD), jnp.float32).at[:, :CLASSES].set(fcw.T)
    fcb_pad = jnp.zeros((1, OUT_PAD), jnp.float32).at[0, :CLASSES].set(fcb)

    return dict(
        # matmul operands in bf16 (f32 accumulation inside the kernel),
        # biases stay f32.
        w0x=wih0.T.astype(jnp.bfloat16),                         # (INPUT, 4H)
        w0h=whh0.T.astype(jnp.bfloat16),                         # (H, 4H)
        b0=(bih0 + bhh0)[None, :],                               # (1, 4H)
        w1=jnp.concatenate([wih1.T, whh1.T], 0).astype(jnp.bfloat16),  # (2H, 4H)
        b1=(bih1 + bhh1)[None, :],                               # (1, 4H)
        fcw=fcw_pad.astype(jnp.bfloat16),                        # (H, 128)
        fcb=fcb_pad,                                             # (1, 128)
    )


@jax.jit
def rnn_forward(x, params):
    B, T, _ = x.shape
    # Time-major, flattened rows: per-step slice of the precomputed projection
    # inside the kernel is then a plain contiguous block.
    x2d = jnp.transpose(x, (1, 0, 2)).reshape(T * B, INPUT)

    vmem = pl.BlockSpec(memory_space=pltpu.MemorySpace.VMEM)
    args = (x2d,
            params["w0x"], params["w0h"], params["b0"],
            params["w1"], params["b1"],
            params["fcw"], params["fcb"])

    out_pad = pl.pallas_call(
        functools.partial(lstm_fc_kernel, seq=T, batch=B),
        out_shape=jax.ShapeDtypeStruct((B, OUT_PAD), jnp.float32),
        in_specs=[vmem] * len(args),
        out_specs=vmem,
    )(*args)
    # TODO(synk): if batch is ever scaled up, add a batch grid axis with
    # dimension_semantics=("parallel",) so v7x's two TensorCores split it.
    return out_pad[:, :CLASSES]


if __name__ == "__main__":
    key = jax.random.PRNGKey(0)
    k_x, k_p = jax.random.split(key)
    x = jax.random.normal(k_x, (BATCH, SEQ, INPUT), dtype=jnp.float32)
    params = init_params(k_p)

    out = rnn_forward(x, params)
    jax.block_until_ready(out)
    assert out.shape == (BATCH, CLASSES), out.shape
    print("KERNEL_OK")
</pallas_src>

<mosaic_0001>
module attributes {stable_mosaic.version = 11 : i64} {
  func.func @lstm_fc_kernel(%arg0: memref<16x28xf32, #tpu.memory_space<vmem>>, %arg1: memref<28x512xbf16, #tpu.memory_space<vmem>>, %arg2: memref<128x512xbf16, #tpu.memory_space<vmem>>, %arg3: memref<1x512xf32, #tpu.memory_space<vmem>>, %arg4: memref<256x512xbf16, #tpu.memory_space<vmem>>, %arg5: memref<1x512xf32, #tpu.memory_space<vmem>>, %arg6: memref<128x128xbf16, #tpu.memory_space<vmem>>, %arg7: memref<1x128xf32, #tpu.memory_space<vmem>>, %arg8: memref<2x128xf32, #tpu.memory_space<vmem>>) attributes {dimension_semantics = [], scalar_prefetch = 0 : i64, scratch_operands = 0 : i64, tpu.core_type = #tpu.core_type<tc>} {
    %c0 = arith.constant 0 : index
    %c0_0 = arith.constant 0 : index
    %0 = vector.load %arg0[%c0, %c0_0] : memref<16x28xf32, #tpu.memory_space<vmem>>, vector<16x28xf32>
    %1 = arith.truncf %0 : vector<16x28xf32> to vector<16x28xbf16>
    %c0_1 = arith.constant 0 : index
    %c0_2 = arith.constant 0 : index
    %2 = vector.load %arg1[%c0_1, %c0_2] : memref<28x512xbf16, #tpu.memory_space<vmem>>, vector<28x512xbf16>
    %cst = arith.constant dense<0.000000e+00> : vector<16x512xf32>
    %3 = tpu.matmul %1, %2, %cst {dimension_numbers = #tpu.dot_dimension_numbers<[1], [0], [0], [1], [0, 0, 1, 1], [], []>} : vector<16x28xbf16>, vector<28x512xbf16>, vector<16x512xf32> -> vector<16x512xf32>
    %c0_3 = arith.constant 0 : index
    %c0_4 = arith.constant 0 : index
    %4 = vector.load %arg3[%c0_3, %c0_4] : memref<1x512xf32, #tpu.memory_space<vmem>>, vector<1x512xf32>
    %5 = vector.broadcast %4 : vector<1x512xf32> to vector<16x512xf32>
    %6 = arith.addf %3, %5 : vector<16x512xf32>
    %c0_5 = arith.constant 0 : index
    %c0_6 = arith.constant 0 : index
    %7 = vector.load %arg2[%c0_5, %c0_6] : memref<128x512xbf16, #tpu.memory_space<vmem>>, vector<128x512xbf16>
    %c0_7 = arith.constant 0 : index
    %c0_8 = arith.constant 0 : index
    %8 = vector.load %arg4[%c0_7, %c0_8] : memref<256x512xbf16, #tpu.memory_space<vmem>>, vector<256x512xbf16>
    %c0_9 = arith.constant 0 : index
    %c0_10 = arith.constant 0 : index
    %9 = vector.load %arg5[%c0_9, %c0_10] : memref<1x512xf32, #tpu.memory_space<vmem>>, vector<1x512xf32>
    %10 = vector.shape_cast %9 : vector<1x512xf32> to vector<1x512xf32>
    %11 = vector.broadcast %10 : vector<1x512xf32> to vector<2x512xf32>
    %cst_11 = arith.constant 0.000000e+00 : f32
    %12 = vector.broadcast %cst_11 : f32 to vector<2x128xf32>
    %cst_12 = arith.constant 0.000000e+00 : f32
    %13 = vector.broadcast %cst_12 : f32 to vector<2x128xf32>
    %cst_13 = arith.constant 0.000000e+00 : f32
    %14 = vector.broadcast %cst_13 : f32 to vector<2x128xf32>
    %cst_14 = arith.constant 0.000000e+00 : f32
    %15 = vector.broadcast %cst_14 : f32 to vector<2x128xf32>
    %16 = vector.extract_strided_slice %6 {offsets = [0, 0], sizes = [2, 512], strides = [1, 1]} : vector<16x512xf32> to vector<2x512xf32>
    %17 = arith.truncf %12 : vector<2x128xf32> to vector<2x128xbf16>
    %cst_15 = arith.constant dense<0.000000e+00> : vector<2x512xf32>
    %18 = tpu.matmul %17, %7, %cst_15 {dimension_numbers = #tpu.dot_dimension_numbers<[1], [0], [0], [1], [0, 0, 1, 1], [], []>} : vector<2x128xbf16>, vector<128x512xbf16>, vector<2x512xf32> -> vector<2x512xf32>
    %19 = arith.addf %16, %18 : vector<2x512xf32>
    %20 = vector.extract_strided_slice %19 {offsets = [0, 0], sizes = [2, 128], strides = [1, 1]} : vector<2x512xf32> to vector<2x128xf32>
    %21 = arith.negf %20 : vector<2x128xf32>
    %22 = math.exp %21 : vector<2x128xf32>
    %cst_16 = arith.constant 1.000000e+00 : f32
    %23 = vector.broadcast %cst_16 : f32 to vector<2x128xf32>
    %24 = arith.addf %23, %22 : vector<2x128xf32>
    %25 = arith.divf %23, %24 : vector<2x128xf32>
    %26 = vector.extract_strided_slice %19 {offsets = [0, 128], sizes = [2, 128], strides = [1, 1]} : vector<2x512xf32> to vector<2x128xf32>
    %27 = arith.negf %26 : vector<2x128xf32>
    %28 = math.exp %27 : vector<2x128xf32>
    %cst_17 = arith.constant 1.000000e+00 : f32
    %29 = vector.broadcast %cst_17 : f32 to vector<2x128xf32>
    %30 = arith.addf %29, %28 : vector<2x128xf32>
    %31 = arith.divf %29, %30 : vector<2x128xf32>
    %32 = vector.extract_strided_slice %19 {offsets = [0, 256], sizes = [2, 128], strides = [1, 1]} : vector<2x512xf32> to vector<2x128xf32>
    %33 = math.tanh %32 : vector<2x128xf32>
    %34 = vector.extract_strided_slice %19 {offsets = [0, 384], sizes = [2, 128], strides = [1, 1]} : vector<2x512xf32> to vector<2x128xf32>
    %35 = arith.negf %34 : vector<2x128xf32>
    %36 = math.exp %35 : vector<2x128xf32>
    %cst_18 = arith.constant 1.000000e+00 : f32
    %37 = vector.broadcast %cst_18 : f32 to vector<2x128xf32>
    %38 = arith.addf %37, %36 : vector<2x128xf32>
    %39 = arith.divf %37, %38 : vector<2x128xf32>
    %40 = arith.mulf %31, %13 : vector<2x128xf32>
    %41 = arith.mulf %25, %33 : vector<2x128xf32>
    %42 = arith.addf %40, %41 : vector<2x128xf32>
    %43 = math.tanh %42 : vector<2x128xf32>
    %44 = arith.mulf %39, %43 : vector<2x128xf32>
    %45 = tpu.concatenate %44, %14 in 1 : vector<2x128xf32>, vector<2x128xf32> -> vector<2x256xf32>
    %46 = arith.truncf %45 : vector<2x256xf32> to vector<2x256xbf16>
    %cst_19 = arith.constant dense<0.000000e+00> : vector<2x512xf32>
    %47 = tpu.matmul %46, %8, %cst_19 {dimension_numbers = #tpu.dot_dimension_numbers<[1], [0], [0], [1], [0, 0, 1, 1], [], []>} : vector<2x256xbf16>, vector<256x512xbf16>, vector<2x512xf32> -> vector<2x512xf32>
    %48 = arith.addf %47, %11 : vector<2x512xf32>
    %49 = vector.extract_strided_slice %48 {offsets = [0, 0], sizes = [2, 128], strides = [1, 1]} : vector<2x512xf32> to vector<2x128xf32>
    %50 = arith.negf %49 : vector<2x128xf32>
    %51 = math.exp %50 : vector<2x128xf32>
    %cst_20 = arith.constant 1.000000e+00 : f32
    %52 = vector.broadcast %cst_20 : f32 to vector<2x128xf32>
    %53 = arith.addf %52, %51 : vector<2x128xf32>
    %54 = arith.divf %52, %53 : vector<2x128xf32>
    %55 = vector.extract_strided_slice %48 {offsets = [0, 128], sizes = [2, 128], strides = [1, 1]} : vector<2x512xf32> to vector<2x128xf32>
    %56 = arith.negf %55 : vector<2x128xf32>
    %57 = math.exp %56 : vector<2x128xf32>
    %cst_21 = arith.constant 1.000000e+00 : f32
    %58 = vector.broadcast %cst_21 : f32 to vector<2x128xf32>
    %59 = arith.addf %58, %57 : vector<2x128xf32>
    %60 = arith.divf %58, %59 : vector<2x128xf32>
    %61 = vector.extract_strided_slice %48 {offsets = [0, 256], sizes = [2, 128], strides = [1, 1]} : vector<2x512xf32> to vector<2x128xf32>
    %62 = math.tanh %61 : vector<2x128xf32>
    %63 = vector.extract_strided_slice %48 {offsets = [0, 384], sizes = [2, 128], strides = [1, 1]} : vector<2x512xf32> to vector<2x128xf32>
    %64 = arith.negf %63 : vector<2x128xf32>
    %65 = math.exp %64 : vector<2x128xf32>
    %cst_22 = arith.constant 1.000000e+00 : f32
    %66 = vector.broadcast %cst_22 : f32 to vector<2x128xf32>
    %67 = arith.addf %66, %65 : vector<2x128xf32>
    %68 = arith.divf %66, %67 : vector<2x128xf32>
    %69 = arith.mulf %60, %15 : vector<2x128xf32>
    %70 = arith.mulf %54, %62 : vector<2x128xf32>
    %71 = arith.addf %69, %70 : vector<2x128xf32>
    %72 = math.tanh %71 : vector<2x128xf32>
    %73 = arith.mulf %68, %72 : vector<2x128xf32>
    %74 = vector.extract_strided_slice %6 {offsets = [2, 0], sizes = [2, 512], strides = [1, 1]} : vector<16x512xf32> to vector<2x512xf32>
    %75 = arith.truncf %44 : vector<2x128xf32> to vector<2x128xbf16>
    %cst_23 = arith.constant dense<0.000000e+00> : vector<2x512xf32>
    %76 = tpu.matmul %75, %7, %cst_23 {dimension_numbers = #tpu.dot_dimension_numbers<[1], [0], [0], [1], [0, 0, 1, 1], [], []>} : vector<2x128xbf16>, vector<128x512xbf16>, vector<2x512xf32> -> vector<2x512xf32>
    %77 = arith.addf %74, %76 : vector<2x512xf32>
    %78 = vector.extract_strided_slice %77 {offsets = [0, 0], sizes = [2, 128], strides = [1, 1]} : vector<2x512xf32> to vector<2x128xf32>
    %79 = arith.negf %78 : vector<2x128xf32>
    %80 = math.exp %79 : vector<2x128xf32>
    %cst_24 = arith.constant 1.000000e+00 : f32
    %81 = vector.broadcast %cst_24 : f32 to vector<2x128xf32>
    %82 = arith.addf %81, %80 : vector<2x128xf32>
    %83 = arith.divf %81, %82 : vector<2x128xf32>
    %84 = vector.extract_strided_slice %77 {offsets = [0, 128], sizes = [2, 128], strides = [1, 1]} : vector<2x512xf32> to vector<2x128xf32>
    %85 = arith.negf %84 : vector<2x128xf32>
    %86 = math.exp %85 : vector<2x128xf32>
    %cst_25 = arith.constant 1.000000e+00 : f32
    %87 = vector.broadcast %cst_25 : f32 to vector<2x128xf32>
    %88 = arith.addf %87, %86 : vector<2x128xf32>
    %89 = arith.divf %87, %88 : vector<2x128xf32>
    %90 = vector.extract_strided_slice %77 {offsets = [0, 256], sizes = [2, 128], strides = [1, 1]} : vector<2x512xf32> to vector<2x128xf32>
    %91 = math.tanh %90 : vector<2x128xf32>
    %92 = vector.extract_strided_slice %77 {offsets = [0, 384], sizes = [2, 128], strides = [1, 1]} : vector<2x512xf32> to vector<2x128xf32>
    %93 = arith.negf %92 : vector<2x128xf32>
    %94 = math.exp %93 : vector<2x128xf32>
    %cst_26 = arith.constant 1.000000e+00 : f32
    %95 = vector.broadcast %cst_26 : f32 to vector<2x128xf32>
    %96 = arith.addf %95, %94 : vector<2x128xf32>
    %97 = arith.divf %95, %96 : vector<2x128xf32>
    %98 = arith.mulf %89, %42 : vector<2x128xf32>
    %99 = arith.mulf %83, %91 : vector<2x128xf32>
    %100 = arith.addf %98, %99 : vector<2x128xf32>
    %101 = math.tanh %100 : vector<2x128xf32>
    %102 = arith.mulf %97, %101 : vector<2x128xf32>
    %103 = tpu.concatenate %102, %73 in 1 : vector<2x128xf32>, vector<2x128xf32> -> vector<2x256xf32>
    %104 = arith.truncf %103 : vector<2x256xf32> to vector<2x256xbf16>
    %cst_27 = arith.constant dense<0.000000e+00> : vector<2x512xf32>
    %105 = tpu.matmul %104, %8, %cst_27 {dimension_numbers = #tpu.dot_dimension_numbers<[1], [0], [0], [1], [0, 0, 1, 1], [], []>} : vector<2x256xbf16>, vector<256x512xbf16>, vector<2x512xf32> -> vector<2x512xf32>
    %106 = arith.addf %105, %11 : vector<2x512xf32>
    %107 = vector.extract_strided_slice %106 {offsets = [0, 0], sizes = [2, 128], strides = [1, 1]} : vector<2x512xf32> to vector<2x128xf32>
    %108 = arith.negf %107 : vector<2x128xf32>
    %109 = math.exp %108 : vector<2x128xf32>
    %cst_28 = arith.constant 1.000000e+00 : f32
    %110 = vector.broadcast %cst_28 : f32 to vector<2x128xf32>
    %111 = arith.addf %110, %109 : vector<2x128xf32>
    %112 = arith.divf %110, %111 : vector<2x128xf32>
    %113 = vector.extract_strided_slice %106 {offsets = [0, 128], sizes = [2, 128], strides = [1, 1]} : vector<2x512xf32> to vector<2x128xf32>
    %114 = arith.negf %113 : vector<2x128xf32>
    %115 = math.exp %114 : vector<2x128xf32>
    %cst_29 = arith.constant 1.000000e+00 : f32
    %116 = vector.broadcast %cst_29 : f32 to vector<2x128xf32>
    %117 = arith.addf %116, %115 : vector<2x128xf32>
    %118 = arith.divf %116, %117 : vector<2x128xf32>
    %119 = vector.extract_strided_slice %106 {offsets = [0, 256], sizes = [2, 128], strides = [1, 1]} : vector<2x512xf32> to vector<2x128xf32>
    %120 = math.tanh %119 : vector<2x128xf32>
    %121 = vector.extract_strided_slice %106 {offsets = [0, 384], sizes = [2, 128], strides = [1, 1]} : vector<2x512xf32> to vector<2x128xf32>
    %122 = arith.negf %121 : vector<2x128xf32>
    %123 = math.exp %122 : vector<2x128xf32>
    %cst_30 = arith.constant 1.000000e+00 : f32
    %124 = vector.broadcast %cst_30 : f32 to vector<2x128xf32>
    %125 = arith.addf %124, %123 : vector<2x128xf32>
    %126 = arith.divf %124, %125 : vector<2x128xf32>
    %127 = arith.mulf %118, %71 : vector<2x128xf32>
    %128 = arith.mulf %112, %120 : vector<2x128xf32>
    %129 = arith.addf %127, %128 : vector<2x128xf32>
    %130 = math.tanh %129 : vector<2x128xf32>
    %131 = arith.mulf %126, %130 : vector<2x128xf32>
    %132 = vector.extract_strided_slice %6 {offsets = [4, 0], sizes = [2, 512], strides = [1, 1]} : vector<16x512xf32> to vector<2x512xf32>
    %133 = arith.truncf %102 : vector<2x128xf32> to vector<2x128xbf16>
    %cst_31 = arith.constant dense<0.000000e+00> : vector<2x512xf32>
    %134 = tpu.matmul %133, %7, %cst_31 {dimension_numbers = #tpu.dot_dimension_numbers<[1], [0], [0], [1], [0, 0, 1, 1], [], []>} : vector<2x128xbf16>, vector<128x512xbf16>, vector<2x512xf32> -> vector<2x512xf32>
    %135 = arith.addf %132, %134 : vector<2x512xf32>
    %136 = vector.extract_strided_slice %135 {offsets = [0, 0], sizes = [2, 128], strides = [1, 1]} : vector<2x512xf32> to vector<2x128xf32>
    %137 = arith.negf %136 : vector<2x128xf32>
    %138 = math.exp %137 : vector<2x128xf32>
    %cst_32 = arith.constant 1.000000e+00 : f32
    %139 = vector.broadcast %cst_32 : f32 to vector<2x128xf32>
    %140 = arith.addf %139, %138 : vector<2x128xf32>
    %141 = arith.divf %139, %140 : vector<2x128xf32>
    %142 = vector.extract_strided_slice %135 {offsets = [0, 128], sizes = [2, 128], strides = [1, 1]} : vector<2x512xf32> to vector<2x128xf32>
    %143 = arith.negf %142 : vector<2x128xf32>
    %144 = math.exp %143 : vector<2x128xf32>
    %cst_33 = arith.constant 1.000000e+00 : f32
    %145 = vector.broadcast %cst_33 : f32 to vector<2x128xf32>
    %146 = arith.addf %145, %144 : vector<2x128xf32>
    %147 = arith.divf %145, %146 : vector<2x128xf32>
    %148 = vector.extract_strided_slice %135 {offsets = [0, 256], sizes = [2, 128], strides = [1, 1]} : vector<2x512xf32> to vector<2x128xf32>
    %149 = math.tanh %148 : vector<2x128xf32>
    %150 = vector.extract_strided_slice %135 {offsets = [0, 384], sizes = [2, 128], strides = [1, 1]} : vector<2x512xf32> to vector<2x128xf32>
    %151 = arith.negf %150 : vector<2x128xf32>
    %152 = math.exp %151 : vector<2x128xf32>
    %cst_34 = arith.constant 1.000000e+00 : f32
    %153 = vector.broadcast %cst_34 : f32 to vector<2x128xf32>
    %154 = arith.addf %153, %152 : vector<2x128xf32>
    %155 = arith.divf %153, %154 : vector<2x128xf32>
    %156 = arith.mulf %147, %100 : vector<2x128xf32>
    %157 = arith.mulf %141, %149 : vector<2x128xf32>
    %158 = arith.addf %156, %157 : vector<2x128xf32>
    %159 = math.tanh %158 : vector<2x128xf32>
    %160 = arith.mulf %155, %159 : vector<2x128xf32>
    %161 = tpu.concatenate %160, %131 in 1 : vector<2x128xf32>, vector<2x128xf32> -> vector<2x256xf32>
    %162 = arith.truncf %161 : vector<2x256xf32> to vector<2x256xbf16>
    %cst_35 = arith.constant dense<0.000000e+00> : vector<2x512xf32>
    %163 = tpu.matmul %162, %8, %cst_35 {dimension_numbers = #tpu.dot_dimension_numbers<[1], [0], [0], [1], [0, 0, 1, 1], [], []>} : vector<2x256xbf16>, vector<256x512xbf16>, vector<2x512xf32> -> vector<2x512xf32>
    %164 = arith.addf %163, %11 : vector<2x512xf32>
    %165 = vector.extract_strided_slice %164 {offsets = [0, 0], sizes = [2, 128], strides = [1, 1]} : vector<2x512xf32> to vector<2x128xf32>
    %166 = arith.negf %165 : vector<2x128xf32>
    %167 = math.exp %166 : vector<2x128xf32>
    %cst_36 = arith.constant 1.000000e+00 : f32
    %168 = vector.broadcast %cst_36 : f32 to vector<2x128xf32>
    %169 = arith.addf %168, %167 : vector<2x128xf32>
    %170 = arith.divf %168, %169 : vector<2x128xf32>
    %171 = vector.extract_strided_slice %164 {offsets = [0, 128], sizes = [2, 128], strides = [1, 1]} : vector<2x512xf32> to vector<2x128xf32>
    %172 = arith.negf %171 : vector<2x128xf32>
    %173 = math.exp %172 : vector<2x128xf32>
    %cst_37 = arith.constant 1.000000e+00 : f32
    %174 = vector.broadcast %cst_37 : f32 to vector<2x128xf32>
    %175 = arith.addf %174, %173 : vector<2x128xf32>
    %176 = arith.divf %174, %175 : vector<2x128xf32>
    %177 = vector.extract_strided_slice %164 {offsets = [0, 256], sizes = [2, 128], strides = [1, 1]} : vector<2x512xf32> to vector<2x128xf32>
    %178 = math.tanh %177 : vector<2x128xf32>
    %179 = vector.extract_strided_slice %164 {offsets = [0, 384], sizes = [2, 128], strides = [1, 1]} : vector<2x512xf32> to vector<2x128xf32>
    %180 = arith.negf %179 : vector<2x128xf32>
    %181 = math.exp %180 : vector<2x128xf32>
    %cst_38 = arith.constant 1.000000e+00 : f32
    %182 = vector.broadcast %cst_38 : f32 to vector<2x128xf32>
    %183 = arith.addf %182, %181 : vector<2x128xf32>
    %184 = arith.divf %182, %183 : vector<2x128xf32>
    %185 = arith.mulf %176, %129 : vector<2x128xf32>
    %186 = arith.mulf %170, %178 : vector<2x128xf32>
    %187 = arith.addf %185, %186 : vector<2x128xf32>
    %188 = math.tanh %187 : vector<2x128xf32>
    %189 = arith.mulf %184, %188 : vector<2x128xf32>
    %190 = vector.extract_strided_slice %6 {offsets = [6, 0], sizes = [2, 512], strides = [1, 1]} : vector<16x512xf32> to vector<2x512xf32>
    %191 = arith.truncf %160 : vector<2x128xf32> to vector<2x128xbf16>
    %cst_39 = arith.constant dense<0.000000e+00> : vector<2x512xf32>
    %192 = tpu.matmul %191, %7, %cst_39 {dimension_numbers = #tpu.dot_dimension_numbers<[1], [0], [0], [1], [0, 0, 1, 1], [], []>} : vector<2x128xbf16>, vector<128x512xbf16>, vector<2x512xf32> -> vector<2x512xf32>
    %193 = arith.addf %190, %192 : vector<2x512xf32>
    %194 = vector.extract_strided_slice %193 {offsets = [0, 0], sizes = [2, 128], strides = [1, 1]} : vector<2x512xf32> to vector<2x128xf32>
    %195 = arith.negf %194 : vector<2x128xf32>
    %196 = math.exp %195 : vector<2x128xf32>
    %cst_40 = arith.constant 1.000000e+00 : f32
    %197 = vector.broadcast %cst_40 : f32 to vector<2x128xf32>
    %198 = arith.addf %197, %196 : vector<2x128xf32>
    %199 = arith.divf %197, %198 : vector<2x128xf32>
    %200 = vector.extract_strided_slice %193 {offsets = [0, 128], sizes = [2, 128], strides = [1, 1]} : vector<2x512xf32> to vector<2x128xf32>
    %201 = arith.negf %200 : vector<2x128xf32>
    %202 = math.exp %201 : vector<2x128xf32>
    %cst_41 = arith.constant 1.000000e+00 : f32
    %203 = vector.broadcast %cst_41 : f32 to vector<2x128xf32>
    %204 = arith.addf %203, %202 : vector<2x128xf32>
    %205 = arith.divf %203, %204 : vector<2x128xf32>
    %206 = vector.extract_strided_slice %193 {offsets = [0, 256], sizes = [2, 128], strides = [1, 1]} : vector<2x512xf32> to vector<2x128xf32>
    %207 = math.tanh %206 : vector<2x128xf32>
    %208 = vector.extract_strided_slice %193 {offsets = [0, 384], sizes = [2, 128], strides = [1, 1]} : vector<2x512xf32> to vector<2x128xf32>
    %209 = arith.negf %208 : vector<2x128xf32>
    %210 = math.exp %209 : vector<2x128xf32>
    %cst_42 = arith.constant 1.000000e+00 : f32
    %211 = vector.broadcast %cst_42 : f32 to vector<2x128xf32>
    %212 = arith.addf %211, %210 : vector<2x128xf32>
    %213 = arith.divf %211, %212 : vector<2x128xf32>
    %214 = arith.mulf %205, %158 : vector<2x128xf32>
    %215 = arith.mulf %199, %207 : vector<2x128xf32>
    %216 = arith.addf %214, %215 : vector<2x128xf32>
    %217 = math.tanh %216 : vector<2x128xf32>
    %218 = arith.mulf %213, %217 : vector<2x128xf32>
    %219 = tpu.concatenate %218, %189 in 1 : vector<2x128xf32>, vector<2x128xf32> -> vector<2x256xf32>
    %220 = arith.truncf %219 : vector<2x256xf32> to vector<2x256xbf16>
    %cst_43 = arith.constant dense<0.000000e+00> : vector<2x512xf32>
    %221 = tpu.matmul %220, %8, %cst_43 {dimension_numbers = #tpu.dot_dimension_numbers<[1], [0], [0], [1], [0, 0, 1, 1], [], []>} : vector<2x256xbf16>, vector<256x512xbf16>, vector<2x512xf32> -> vector<2x512xf32>
    %222 = arith.addf %221, %11 : vector<2x512xf32>
    %223 = vector.extract_strided_slice %222 {offsets = [0, 0], sizes = [2, 128], strides = [1, 1]} : vector<2x512xf32> to vector<2x128xf32>
    %224 = arith.negf %223 : vector<2x128xf32>
    %225 = math.exp %224 : vector<2x128xf32>
    %cst_44 = arith.constant 1.000000e+00 : f32
    %226 = vector.broadcast %cst_44 : f32 to vector<2x128xf32>
    %227 = arith.addf %226, %225 : vector<2x128xf32>
    %228 = arith.divf %226, %227 : vector<2x128xf32>
    %229 = vector.extract_strided_slice %222 {offsets = [0, 128], sizes = [2, 128], strides = [1, 1]} : vector<2x512xf32> to vector<2x128xf32>
    %230 = arith.negf %229 : vector<2x128xf32>
    %231 = math.exp %230 : vector<2x128xf32>
    %cst_45 = arith.constant 1.000000e+00 : f32
    %232 = vector.broadcast %cst_45 : f32 to vector<2x128xf32>
    %233 = arith.addf %232, %231 : vector<2x128xf32>
    %234 = arith.divf %232, %233 : vector<2x128xf32>
    %235 = vector.extract_strided_slice %222 {offsets = [0, 256], sizes = [2, 128], strides = [1, 1]} : vector<2x512xf32> to vector<2x128xf32>
    %236 = math.tanh %235 : vector<2x128xf32>
    %237 = vector.extract_strided_slice %222 {offsets = [0, 384], sizes = [2, 128], strides = [1, 1]} : vector<2x512xf32> to vector<2x128xf32>
    %238 = arith.negf %237 : vector<2x128xf32>
    %239 = math.exp %238 : vector<2x128xf32>
    %cst_46 = arith.constant 1.000000e+00 : f32
    %240 = vector.broadcast %cst_46 : f32 to vector<2x128xf32>
    %241 = arith.addf %240, %239 : vector<2x128xf32>
    %242 = arith.divf %240, %241 : vector<2x128xf32>
    %243 = arith.mulf %234, %187 : vector<2x128xf32>
    %244 = arith.mulf %228, %236 : vector<2x128xf32>
    %245 = arith.addf %243, %244 : vector<2x128xf32>
    %246 = math.tanh %245 : vector<2x128xf32>
    %247 = arith.mulf %242, %246 : vector<2x128xf32>
    %248 = vector.extract_strided_slice %6 {offsets = [8, 0], sizes = [2, 512], strides = [1, 1]} : vector<16x512xf32> to vector<2x512xf32>
    %249 = arith.truncf %218 : vector<2x128xf32> to vector<2x128xbf16>
    %cst_47 = arith.constant dense<0.000000e+00> : vector<2x512xf32>
    %250 = tpu.matmul %249, %7, %cst_47 {dimension_numbers = #tpu.dot_dimension_numbers<[1], [0], [0], [1], [0, 0, 1, 1], [], []>} : vector<2x128xbf16>, vector<128x512xbf16>, vector<2x512xf32> -> vector<2x512xf32>
    %251 = arith.addf %248, %250 : vector<2x512xf32>
    %252 = vector.extract_strided_slice %251 {offsets = [0, 0], sizes = [2, 128], strides = [1, 1]} : vector<2x512xf32> to vector<2x128xf32>
    %253 = arith.negf %252 : vector<2x128xf32>
    %254 = math.exp %253 : vector<2x128xf32>
    %cst_48 = arith.constant 1.000000e+00 : f32
    %255 = vector.broadcast %cst_48 : f32 to vector<2x128xf32>
    %256 = arith.addf %255, %254 : vector<2x128xf32>
    %257 = arith.divf %255, %256 : vector<2x128xf32>
    %258 = vector.extract_strided_slice %251 {offsets = [0, 128], sizes = [2, 128], strides = [1, 1]} : vector<2x512xf32> to vector<2x128xf32>
    %259 = arith.negf %258 : vector<2x128xf32>
    %260 = math.exp %259 : vector<2x128xf32>
    %cst_49 = arith.constant 1.000000e+00 : f32
    %261 = vector.broadcast %cst_49 : f32 to vector<2x128xf32>
    %262 = arith.addf %261, %260 : vector<2x128xf32>
    %263 = arith.divf %261, %262 : vector<2x128xf32>
    %264 = vector.extract_strided_slice %251 {offsets = [0, 256], sizes = [2, 128], strides = [1, 1]} : vector<2x512xf32> to vector<2x128xf32>
    %265 = math.tanh %264 : vector<2x128xf32>
    %266 = vector.extract_strided_slice %251 {offsets = [0, 384], sizes = [2, 128], strides = [1, 1]} : vector<2x512xf32> to vector<2x128xf32>
    %267 = arith.negf %266 : vector<2x128xf32>
    %268 = math.exp %267 : vector<2x128xf32>
    %cst_50 = arith.constant 1.000000e+00 : f32
    %269 = vector.broadcast %cst_50 : f32 to vector<2x128xf32>
    %270 = arith.addf %269, %268 : vector<2x128xf32>
    %271 = arith.divf %269, %270 : vector<2x128xf32>
    %272 = arith.mulf %263, %216 : vector<2x128xf32>
    %273 = arith.mulf %257, %265 : vector<2x128xf32>
    %274 = arith.addf %272, %273 : vector<2x128xf32>
    %275 = math.tanh %274 : vector<2x128xf32>
    %276 = arith.mulf %271, %275 : vector<2x128xf32>
    %277 = tpu.concatenate %276, %247 in 1 : vector<2x128xf32>, vector<2x128xf32> -> vector<2x256xf32>
    %278 = arith.truncf %277 : vector<2x256xf32> to vector<2x256xbf16>
    %cst_51 = arith.constant dense<0.000000e+00> : vector<2x512xf32>
    %279 = tpu.matmul %278, %8, %cst_51 {dimension_numbers = #tpu.dot_dimension_numbers<[1], [0], [0], [1], [0, 0, 1, 1], [], []>} : vector<2x256xbf16>, vector<256x512xbf16>, vector<2x512xf32> -> vector<2x512xf32>
    %280 = arith.addf %279, %11 : vector<2x512xf32>
    %281 = vector.extract_strided_slice %280 {offsets = [0, 0], sizes = [2, 128], strides = [1, 1]} : vector<2x512xf32> to vector<2x128xf32>
    %282 = arith.negf %281 : vector<2x128xf32>
    %283 = math.exp %282 : vector<2x128xf32>
    %cst_52 = arith.constant 1.000000e+00 : f32
    %284 = vector.broadcast %cst_52 : f32 to vector<2x128xf32>
    %285 = arith.addf %284, %283 : vector<2x128xf32>
    %286 = arith.divf %284, %285 : vector<2x128xf32>
    %287 = vector.extract_strided_slice %280 {offsets = [0, 128], sizes = [2, 128], strides = [1, 1]} : vector<2x512xf32> to vector<2x128xf32>
    %288 = arith.negf %287 : vector<2x128xf32>
    %289 = math.exp %288 : vector<2x128xf32>
    %cst_53 = arith.constant 1.000000e+00 : f32
    %290 = vector.broadcast %cst_53 : f32 to vector<2x128xf32>
    %291 = arith.addf %290, %289 : vector<2x128xf32>
    %292 = arith.divf %290, %291 : vector<2x128xf32>
    %293 = vector.extract_strided_slice %280 {offsets = [0, 256], sizes = [2, 128], strides = [1, 1]} : vector<2x512xf32> to vector<2x128xf32>
    %294 = math.tanh %293 : vector<2x128xf32>
    %295 = vector.extract_strided_slice %280 {offsets = [0, 384], sizes = [2, 128], strides = [1, 1]} : vector<2x512xf32> to vector<2x128xf32>
    %296 = arith.negf %295 : vector<2x128xf32>
    %297 = math.exp %296 : vector<2x128xf32>
    %cst_54 = arith.constant 1.000000e+00 : f32
    %298 = vector.broadcast %cst_54 : f32 to vector<2x128xf32>
    %299 = arith.addf %298, %297 : vector<2x128xf32>
    %300 = arith.divf %298, %299 : vector<2x128xf32>
    %301 = arith.mulf %292, %245 : vector<2x128xf32>
    %302 = arith.mulf %286, %294 : vector<2x128xf32>
    %303 = arith.addf %301, %302 : vector<2x128xf32>
    %304 = math.tanh %303 : vector<2x128xf32>
    %305 = arith.mulf %300, %304 : vector<2x128xf32>
    %306 = vector.extract_strided_slice %6 {offsets = [10, 0], sizes = [2, 512], strides = [1, 1]} : vector<16x512xf32> to vector<2x512xf32>
    %307 = arith.truncf %276 : vector<2x128xf32> to vector<2x128xbf16>
    %cst_55 = arith.constant dense<0.000000e+00> : vector<2x512xf32>
    %308 = tpu.matmul %307, %7, %cst_55 {dimension_numbers = #tpu.dot_dimension_numbers<[1], [0], [0], [1], [0, 0, 1, 1], [], []>} : vector<2x128xbf16>, vector<128x512xbf16>, vector<2x512xf32> -> vector<2x512xf32>
    %309 = arith.addf %306, %308 : vector<2x512xf32>
    %310 = vector.extract_strided_slice %309 {offsets = [0, 0], sizes = [2, 128], strides = [1, 1]} : vector<2x512xf32> to vector<2x128xf32>
    %311 = arith.negf %310 : vector<2x128xf32>
    %312 = math.exp %311 : vector<2x128xf32>
    %cst_56 = arith.constant 1.000000e+00 : f32
    %313 = vector.broadcast %cst_56 : f32 to vector<2x128xf32>
    %314 = arith.addf %313, %312 : vector<2x128xf32>
    %315 = arith.divf %313, %314 : vector<2x128xf32>
    %316 = vector.extract_strided_slice %309 {offsets = [0, 128], sizes = [2, 128], strides = [1, 1]} : vector<2x512xf32> to vector<2x128xf32>
    %317 = arith.negf %316 : vector<2x128xf32>
    %318 = math.exp %317 : vector<2x128xf32>
    %cst_57 = arith.constant 1.000000e+00 : f32
    %319 = vector.broadcast %cst_57 : f32 to vector<2x128xf32>
    %320 = arith.addf %319, %318 : vector<2x128xf32>
    %321 = arith.divf %319, %320 : vector<2x128xf32>
    %322 = vector.extract_strided_slice %309 {offsets = [0, 256], sizes = [2, 128], strides = [1, 1]} : vector<2x512xf32> to vector<2x128xf32>
    %323 = math.tanh %322 : vector<2x128xf32>
    %324 = vector.extract_strided_slice %309 {offsets = [0, 384], sizes = [2, 128], strides = [1, 1]} : vector<2x512xf32> to vector<2x128xf32>
    %325 = arith.negf %324 : vector<2x128xf32>
    %326 = math.exp %325 : vector<2x128xf32>
    %cst_58 = arith.constant 1.000000e+00 : f32
    %327 = vector.broadcast %cst_58 : f32 to vector<2x128xf32>
    %328 = arith.addf %327, %326 : vector<2x128xf32>
    %329 = arith.divf %327, %328 : vector<2x128xf32>
    %330 = arith.mulf %321, %274 : vector<2x128xf32>
    %331 = arith.mulf %315, %323 : vector<2x128xf32>
    %332 = arith.addf %330, %331 : vector<2x128xf32>
    %333 = math.tanh %332 : vector<2x128xf32>
    %334 = arith.mulf %329, %333 : vector<2x128xf32>
    %335 = tpu.concatenate %334, %305 in 1 : vector<2x128xf32>, vector<2x128xf32> -> vector<2x256xf32>
    %336 = arith.truncf %335 : vector<2x256xf32> to vector<2x256xbf16>
    %cst_59 = arith.constant dense<0.000000e+00> : vector<2x512xf32>
    %337 = tpu.matmul %336, %8, %cst_59 {dimension_numbers = #tpu.dot_dimension_numbers<[1], [0], [0], [1], [0, 0, 1, 1], [], []>} : vector<2x256xbf16>, vector<256x512xbf16>, vector<2x512xf32> -> vector<2x512xf32>
    %338 = arith.addf %337, %11 : vector<2x512xf32>
    %339 = vector.extract_strided_slice %338 {offsets = [0, 0], sizes = [2, 128], strides = [1, 1]} : vector<2x512xf32> to vector<2x128xf32>
    %340 = arith.negf %339 : vector<2x128xf32>
    %341 = math.exp %340 : vector<2x128xf32>
    %cst_60 = arith.constant 1.000000e+00 : f32
    %342 = vector.broadcast %cst_60 : f32 to vector<2x128xf32>
    %343 = arith.addf %342, %341 : vector<2x128xf32>
    %344 = arith.divf %342, %343 : vector<2x128xf32>
    %345 = vector.extract_strided_slice %338 {offsets = [0, 128], sizes = [2, 128], strides = [1, 1]} : vector<2x512xf32> to vector<2x128xf32>
    %346 = arith.negf %345 : vector<2x128xf32>
    %347 = math.exp %346 : vector<2x128xf32>
    %cst_61 = arith.constant 1.000000e+00 : f32
    %348 = vector.broadcast %cst_61 : f32 to vector<2x128xf32>
    %349 = arith.addf %348, %347 : vector<2x128xf32>
    %350 = arith.divf %348, %349 : vector<2x128xf32>
    %351 = vector.extract_strided_slice %338 {offsets = [0, 256], sizes = [2, 128], strides = [1, 1]} : vector<2x512xf32> to vector<2x128xf32>
    %352 = math.tanh %351 : vector<2x128xf32>
    %353 = vector.extract_strided_slice %338 {offsets = [0, 384], sizes = [2, 128], strides = [1, 1]} : vector<2x512xf32> to vector<2x128xf32>
    %354 = arith.negf %353 : vector<2x128xf32>
    %355 = math.exp %354 : vector<2x128xf32>
    %cst_62 = arith.constant 1.000000e+00 : f32
    %356 = vector.broadcast %cst_62 : f32 to vector<2x128xf32>
    %357 = arith.addf %356, %355 : vector<2x128xf32>
    %358 = arith.divf %356, %357 : vector<2x128xf32>
    %359 = arith.mulf %350, %303 : vector<2x128xf32>
    %360 = arith.mulf %344, %352 : vector<2x128xf32>
    %361 = arith.addf %359, %360 : vector<2x128xf32>
    %362 = math.tanh %361 : vector<2x128xf32>
    %363 = arith.mulf %358, %362 : vector<2x128xf32>
    %364 = vector.extract_strided_slice %6 {offsets = [12, 0], sizes = [2, 512], strides = [1, 1]} : vector<16x512xf32> to vector<2x512xf32>
    %365 = arith.truncf %334 : vector<2x128xf32> to vector<2x128xbf16>
    %cst_63 = arith.constant dense<0.000000e+00> : vector<2x512xf32>
    %366 = tpu.matmul %365, %7, %cst_63 {dimension_numbers = #tpu.dot_dimension_numbers<[1], [0], [0], [1], [0, 0, 1, 1], [], []>} : vector<2x128xbf16>, vector<128x512xbf16>, vector<2x512xf32> -> vector<2x512xf32>
    %367 = arith.addf %364, %366 : vector<2x512xf32>
    %368 = vector.extract_strided_slice %367 {offsets = [0, 0], sizes = [2, 128], strides = [1, 1]} : vector<2x512xf32> to vector<2x128xf32>
    %369 = arith.negf %368 : vector<2x128xf32>
    %370 = math.exp %369 : vector<2x128xf32>
    %cst_64 = arith.constant 1.000000e+00 : f32
    %371 = vector.broadcast %cst_64 : f32 to vector<2x128xf32>
    %372 = arith.addf %371, %370 : vector<2x128xf32>
    %373 = arith.divf %371, %372 : vector<2x128xf32>
    %374 = vector.extract_strided_slice %367 {offsets = [0, 128], sizes = [2, 128], strides = [1, 1]} : vector<2x512xf32> to vector<2x128xf32>
    %375 = arith.negf %374 : vector<2x128xf32>
    %376 = math.exp %375 : vector<2x128xf32>
    %cst_65 = arith.constant 1.000000e+00 : f32
    %377 = vector.broadcast %cst_65 : f32 to vector<2x128xf32>
    %378 = arith.addf %377, %376 : vector<2x128xf32>
    %379 = arith.divf %377, %378 : vector<2x128xf32>
    %380 = vector.extract_strided_slice %367 {offsets = [0, 256], sizes = [2, 128], strides = [1, 1]} : vector<2x512xf32> to vector<2x128xf32>
    %381 = math.tanh %380 : vector<2x128xf32>
    %382 = vector.extract_strided_slice %367 {offsets = [0, 384], sizes = [2, 128], strides = [1, 1]} : vector<2x512xf32> to vector<2x128xf32>
    %383 = arith.negf %382 : vector<2x128xf32>
    %384 = math.exp %383 : vector<2x128xf32>
    %cst_66 = arith.constant 1.000000e+00 : f32
    %385 = vector.broadcast %cst_66 : f32 to vector<2x128xf32>
    %386 = arith.addf %385, %384 : vector<2x128xf32>
    %387 = arith.divf %385, %386 : vector<2x128xf32>
    %388 = arith.mulf %379, %332 : vector<2x128xf32>
    %389 = arith.mulf %373, %381 : vector<2x128xf32>
    %390 = arith.addf %388, %389 : vector<2x128xf32>
    %391 = math.tanh %390 : vector<2x128xf32>
    %392 = arith.mulf %387, %391 : vector<2x128xf32>
    %393 = tpu.concatenate %392, %363 in 1 : vector<2x128xf32>, vector<2x128xf32> -> vector<2x256xf32>
    %394 = arith.truncf %393 : vector<2x256xf32> to vector<2x256xbf16>
    %cst_67 = arith.constant dense<0.000000e+00> : vector<2x512xf32>
    %395 = tpu.matmul %394, %8, %cst_67 {dimension_numbers = #tpu.dot_dimension_numbers<[1], [0], [0], [1], [0, 0, 1, 1], [], []>} : vector<2x256xbf16>, vector<256x512xbf16>, vector<2x512xf32> -> vector<2x512xf32>
    %396 = arith.addf %395, %11 : vector<2x512xf32>
    %397 = vector.extract_strided_slice %396 {offsets = [0, 0], sizes = [2, 128], strides = [1, 1]} : vector<2x512xf32> to vector<2x128xf32>
    %398 = arith.negf %397 : vector<2x128xf32>
    %399 = math.exp %398 : vector<2x128xf32>
    %cst_68 = arith.constant 1.000000e+00 : f32
    %400 = vector.broadcast %cst_68 : f32 to vector<2x128xf32>
    %401 = arith.addf %400, %399 : vector<2x128xf32>
    %402 = arith.divf %400, %401 : vector<2x128xf32>
    %403 = vector.extract_strided_slice %396 {offsets = [0, 128], sizes = [2, 128], strides = [1, 1]} : vector<2x512xf32> to vector<2x128xf32>
    %404 = arith.negf %403 : vector<2x128xf32>
    %405 = math.exp %404 : vector<2x128xf32>
    %cst_69 = arith.constant 1.000000e+00 : f32
    %406 = vector.broadcast %cst_69 : f32 to vector<2x128xf32>
    %407 = arith.addf %406, %405 : vector<2x128xf32>
    %408 = arith.divf %406, %407 : vector<2x128xf32>
    %409 = vector.extract_strided_slice %396 {offsets = [0, 256], sizes = [2, 128], strides = [1, 1]} : vector<2x512xf32> to vector<2x128xf32>
    %410 = math.tanh %409 : vector<2x128xf32>
    %411 = vector.extract_strided_slice %396 {offsets = [0, 384], sizes = [2, 128], strides = [1, 1]} : vector<2x512xf32> to vector<2x128xf32>
    %412 = arith.negf %411 : vector<2x128xf32>
    %413 = math.exp %412 : vector<2x128xf32>
    %cst_70 = arith.constant 1.000000e+00 : f32
    %414 = vector.broadcast %cst_70 : f32 to vector<2x128xf32>
    %415 = arith.addf %414, %413 : vector<2x128xf32>
    %416 = arith.divf %414, %415 : vector<2x128xf32>
    %417 = arith.mulf %408, %361 : vector<2x128xf32>
    %418 = arith.mulf %402, %410 : vector<2x128xf32>
    %419 = arith.addf %417, %418 : vector<2x128xf32>
    %420 = math.tanh %419 : vector<2x128xf32>
    %421 = arith.mulf %416, %420 : vector<2x128xf32>
    %422 = vector.extract_strided_slice %6 {offsets = [14, 0], sizes = [2, 512], strides = [1, 1]} : vector<16x512xf32> to vector<2x512xf32>
    %423 = arith.truncf %392 : vector<2x128xf32> to vector<2x128xbf16>
    %cst_71 = arith.constant dense<0.000000e+00> : vector<2x512xf32>
    %424 = tpu.matmul %423, %7, %cst_71 {dimension_numbers = #tpu.dot_dimension_numbers<[1], [0], [0], [1], [0, 0, 1, 1], [], []>} : vector<2x128xbf16>, vector<128x512xbf16>, vector<2x512xf32> -> vector<2x512xf32>
    %425 = arith.addf %422, %424 : vector<2x512xf32>
    %426 = vector.extract_strided_slice %425 {offsets = [0, 0], sizes = [2, 128], strides = [1, 1]} : vector<2x512xf32> to vector<2x128xf32>
    %427 = arith.negf %426 : vector<2x128xf32>
    %428 = math.exp %427 : vector<2x128xf32>
    %cst_72 = arith.constant 1.000000e+00 : f32
    %429 = vector.broadcast %cst_72 : f32 to vector<2x128xf32>
    %430 = arith.addf %429, %428 : vector<2x128xf32>
    %431 = arith.divf %429, %430 : vector<2x128xf32>
    %432 = vector.extract_strided_slice %425 {offsets = [0, 128], sizes = [2, 128], strides = [1, 1]} : vector<2x512xf32> to vector<2x128xf32>
    %433 = arith.negf %432 : vector<2x128xf32>
    %434 = math.exp %433 : vector<2x128xf32>
    %cst_73 = arith.constant 1.000000e+00 : f32
    %435 = vector.broadcast %cst_73 : f32 to vector<2x128xf32>
    %436 = arith.addf %435, %434 : vector<2x128xf32>
    %437 = arith.divf %435, %436 : vector<2x128xf32>
    %438 = vector.extract_strided_slice %425 {offsets = [0, 256], sizes = [2, 128], strides = [1, 1]} : vector<2x512xf32> to vector<2x128xf32>
    %439 = math.tanh %438 : vector<2x128xf32>
    %440 = vector.extract_strided_slice %425 {offsets = [0, 384], sizes = [2, 128], strides = [1, 1]} : vector<2x512xf32> to vector<2x128xf32>
    %441 = arith.negf %440 : vector<2x128xf32>
    %442 = math.exp %441 : vector<2x128xf32>
    %cst_74 = arith.constant 1.000000e+00 : f32
    %443 = vector.broadcast %cst_74 : f32 to vector<2x128xf32>
    %444 = arith.addf %443, %442 : vector<2x128xf32>
    %445 = arith.divf %443, %444 : vector<2x128xf32>
    %446 = arith.mulf %437, %390 : vector<2x128xf32>
    %447 = arith.mulf %431, %439 : vector<2x128xf32>
    %448 = arith.addf %446, %447 : vector<2x128xf32>
    %449 = math.tanh %448 : vector<2x128xf32>
    %450 = arith.mulf %445, %449 : vector<2x128xf32>
    %451 = tpu.concatenate %450, %421 in 1 : vector<2x128xf32>, vector<2x128xf32> -> vector<2x256xf32>
    %452 = arith.truncf %451 : vector<2x256xf32> to vector<2x256xbf16>
    %cst_75 = arith.constant dense<0.000000e+00> : vector<2x512xf32>
    %453 = tpu.matmul %452, %8, %cst_75 {dimension_numbers = #tpu.dot_dimension_numbers<[1], [0], [0], [1], [0, 0, 1, 1], [], []>} : vector<2x256xbf16>, vector<256x512xbf16>, vector<2x512xf32> -> vector<2x512xf32>
    %454 = arith.addf %453, %11 : vector<2x512xf32>
    %455 = vector.extract_strided_slice %454 {offsets = [0, 0], sizes = [2, 128], strides = [1, 1]} : vector<2x512xf32> to vector<2x128xf32>
    %456 = arith.negf %455 : vector<2x128xf32>
    %457 = math.exp %456 : vector<2x128xf32>
    %cst_76 = arith.constant 1.000000e+00 : f32
    %458 = vector.broadcast %cst_76 : f32 to vector<2x128xf32>
    %459 = arith.addf %458, %457 : vector<2x128xf32>
    %460 = arith.divf %458, %459 : vector<2x128xf32>
    %461 = vector.extract_strided_slice %454 {offsets = [0, 128], sizes = [2, 128], strides = [1, 1]} : vector<2x512xf32> to vector<2x128xf32>
    %462 = arith.negf %461 : vector<2x128xf32>
    %463 = math.exp %462 : vector<2x128xf32>
    %cst_77 = arith.constant 1.000000e+00 : f32
    %464 = vector.broadcast %cst_77 : f32 to vector<2x128xf32>
    %465 = arith.addf %464, %463 : vector<2x128xf32>
    %466 = arith.divf %464, %465 : vector<2x128xf32>
    %467 = vector.extract_strided_slice %454 {offsets = [0, 256], sizes = [2, 128], strides = [1, 1]} : vector<2x512xf32> to vector<2x128xf32>
    %468 = math.tanh %467 : vector<2x128xf32>
    %469 = vector.extract_strided_slice %454 {offsets = [0, 384], sizes = [2, 128], strides = [1, 1]} : vector<2x512xf32> to vector<2x128xf32>
    %470 = arith.negf %469 : vector<2x128xf32>
    %471 = math.exp %470 : vector<2x128xf32>
    %cst_78 = arith.constant 1.000000e+00 : f32
    %472 = vector.broadcast %cst_78 : f32 to vector<2x128xf32>
    %473 = arith.addf %472, %471 : vector<2x128xf32>
    %474 = arith.divf %472, %473 : vector<2x128xf32>
    %475 = arith.mulf %466, %419 : vector<2x128xf32>
    %476 = arith.mulf %460, %468 : vector<2x128xf32>
    %477 = arith.addf %475, %476 : vector<2x128xf32>
    %478 = math.tanh %477 : vector<2x128xf32>
    %479 = arith.mulf %474, %478 : vector<2x128xf32>
    %480 = arith.truncf %479 : vector<2x128xf32> to vector<2x128xbf16>
    %c0_79 = arith.constant 0 : index
    %c0_80 = arith.constant 0 : index
    %481 = vector.load %arg6[%c0_79, %c0_80] : memref<128x128xbf16, #tpu.memory_space<vmem>>, vector<128x128xbf16>
    %cst_81 = arith.constant dense<0.000000e+00> : vector<2x128xf32>
    %482 = tpu.matmul %480, %481, %cst_81 {dimension_numbers = #tpu.dot_dimension_numbers<[1], [0], [0], [1], [0, 0, 1, 1], [], []>} : vector<2x128xbf16>, vector<128x128xbf16>, vector<2x128xf32> -> vector<2x128xf32>
    %c0_82 = arith.constant 0 : index
    %c0_83 = arith.constant 0 : index
    %483 = vector.load %arg7[%c0_82, %c0_83] : memref<1x128xf32, #tpu.memory_space<vmem>>, vector<1x128xf32>
    %484 = vector.broadcast %483 : vector<1x128xf32> to vector<2x128xf32>
    %485 = arith.addf %482, %484 : vector<2x128xf32>
    %c0_84 = arith.constant 0 : index
    %c0_85 = arith.constant 0 : index
    %486 = vector.load %arg8[%c0_84, %c0_85] : memref<2x128xf32, #tpu.memory_space<vmem>>, vector<2x128xf32>
    tpu.vector_store %arg8[%c0_84, %c0_85], %485 {strides = array<i32>} : memref<2x128xf32, #tpu.memory_space<vmem>>, vector<2x128xf32>,
    return
  }
}

</mosaic_0001>

<llo_original>
// kernel: rnn_forward.1
$region0: #{rnn_forward.1}
  #allocation0 [shape = 'u32[]', space=smem, size = 0x4, offset = 0x4, fixed_abs, tag = 'smem constant byte address 0x4 - core index']
  #allocation1 [shape = 'u32[144,128]{1,0:T(1,128)}', space=vmem, size = 0x12000, scoped, tag = 'internal scratch']
  %s0 = inlined_call_operand.vmem [shape: f32[16,28], index: 0, kind: input, shape index: {}]
  %s1 = inlined_call_operand.hbm [shape: bf16[28,512], index: 1, kind: input, shape index: {}]
  %s2 = inlined_call_operand.hbm [shape: bf16[128,512], index: 2, kind: input, shape index: {}]
  %s3 = inlined_call_operand.vmem [shape: f32[1,512], index: 3, kind: input, shape index: {}]
  %s4 = inlined_call_operand.hbm [shape: bf16[256,512], index: 4, kind: input, shape index: {}]
  %s5 = inlined_call_operand.vmem [shape: f32[1,512], index: 5, kind: input, shape index: {}]
  %s6 = inlined_call_operand.hbm [shape: bf16[128,128], index: 6, kind: input, shape index: {}]
  %s7 = inlined_call_operand.vmem [shape: f32[1,128], index: 7, kind: input, shape index: {}]
  %s8 = inlined_call_operand.hbm [shape: f32[2,128], index: 8, kind: output, shape index: {}]
  %s9 = sld [smem:[#allocation0]]
  $region58: #{rnn_forward.1} parent=0
    _
  %s11 = ssub.s32 1, %s9
  %s12 = scalar_select 0, %s11, %s9
  $region1: #{rnn_forward.1} parent=0
    #allocation2 [shape = 'u8[32768]{0}', space=vmem, size = 0x8000, scoped, tag = 'input window, operand 1, single buffered']
    #allocation3 [shape = 's32[1]{0}', space=sflag, size = 0x4, scoped, tag = 'scoped memory for rnn_forward.1']
    #allocation4 [shape = 's32[1]{0}', space=sflag, size = 0x4, scoped, tag = 'scoped memory for rnn_forward.1']
    #allocation5 [shape = 'u8[131072]{0}', space=vmem, size = 0x20000, scoped, tag = 'input window, operand 2, single buffered']
    #allocation6 [shape = 's32[1]{0}', space=sflag, size = 0x4, scoped, tag = 'scoped memory for rnn_forward.1']
    #allocation7 [shape = 'u8[262144]{0}', space=vmem, size = 0x40000, scoped, tag = 'input window, operand 4, single buffered']
    #allocation8 [shape = 'u8[32768]{0}', space=vmem, size = 0x8000, scoped, tag = 'input window, operand 6, single buffered']
    #allocation9 [shape = 's32[1]{0}', space=sflag, size = 0x4, scoped, tag = 'scoped memory for rnn_forward.1']
    #allocation10 [shape = 'u8[1024]{0}', space=vmem, size = 0x400, scoped, tag = 'output window, operand 0, single buffered']
    %13 = vsyncpa [#allocation3], 0
    %14 = vsyncpa [#allocation6], 0
    %15 = vsyncpa [#allocation9], 0
    %16 = vsyncpa [#allocation4], 0
    // Predicated region
    $region2: #{rnn_forward.1} parent=1 // pred_check
      _
    $region3: #{rnn_forward.1} parent=1 // pred_check_branch
      %18 = sbr.rel (0) target = $region5
    $region4: #{rnn_forward.1} parent=1 // pred_region
      _
    $region5: #{rnn_forward.1} parent=1 // pred_fallthru
      _
    // Predicated region
    $region6: #{rnn_forward.1} parent=1 // pred_check
      _
    $region7: #{rnn_forward.1} parent=1 // pred_check_branch
      %20 = sbr.rel (0) target = $region9
    $region8: #{rnn_forward.1} parent=1 // pred_region
      %s22 = ssub.s32 1024, 1024
      %23 = vsyncadd [#allocation3], %s22
      %s24 = sshll.u32 [#allocation2], 4
      %s25 = int_to_ptr.vmem [resolvable:$true] %s24
      %30 = dma.hbm_to_vmem [thread:$0]  %s1, 1024, %s25, [#allocation3], 256, 256, 16
    $region9: #{rnn_forward.1} parent=1 // pred_fallthru
      _
    // Predicated region
    $region10: #{rnn_forward.1} parent=1 // pred_check
      _
    $region11: #{rnn_forward.1} parent=1 // pred_check_branch
      %32 = sbr.rel (0) target = $region13
    $region12: #{rnn_forward.1} parent=1 // pred_region
      %s34 = ssub.s32 4096, 4096
      %35 = vsyncadd [#allocation6], %s34
      %s36 = sshll.u32 [#allocation5], 4
      %s37 = int_to_ptr.vmem [resolvable:$true] %s36
      %42 = dma.hbm_to_vmem [thread:$0]  %s2, 4096, %s37, [#allocation6], 256, 256, 16
    $region13: #{rnn_forward.1} parent=1 // pred_fallthru
      _
    // Predicated region
    $region14: #{rnn_forward.1} parent=1 // pred_check
      _
    $region15: #{rnn_forward.1} parent=1 // pred_check_branch
      %44 = sbr.rel (0) target = $region17
    $region16: #{rnn_forward.1} parent=1 // pred_region
      _
    $region17: #{rnn_forward.1} parent=1 // pred_fallthru
      _
    // Predicated region
    $region18: #{rnn_forward.1} parent=1 // pred_check
      _
    $region19: #{rnn_forward.1} parent=1 // pred_check_branch
      %46 = sbr.rel (0) target = $region21
    $region20: #{rnn_forward.1} parent=1 // pred_region
      %s48 = ssub.s32 8192, 8192
      %49 = vsyncadd [#allocation6], %s48
      %s50 = sshll.u32 [#allocation7], 4
      %s51 = int_to_ptr.vmem [resolvable:$true] %s50
      %56 = dma.hbm_to_vmem [thread:$0]  %s4, 8192, %s51, [#allocation6], 256, 256, 16
    $region21: #{rnn_forward.1} parent=1 // pred_fallthru
      _
    // Predicated region
    $region22: #{rnn_forward.1} parent=1 // pred_check
      _
    $region23: #{rnn_forward.1} parent=1 // pred_check_branch
      %58 = sbr.rel (0) target = $region25
    $region24: #{rnn_forward.1} parent=1 // pred_region
      _
    $region25: #{rnn_forward.1} parent=1 // pred_fallthru
      _
    // Predicated region
    $region26: #{rnn_forward.1} parent=1 // pred_check
      _
    $region27: #{rnn_forward.1} parent=1 // pred_check_branch
      %60 = sbr.rel (0) target = $region29
    $region28: #{rnn_forward.1} parent=1 // pred_region
      %s62 = ssub.s32 1024, 1024
      %63 = vsyncadd [#allocation9], %s62
      %s64 = sshll.u32 [#allocation8], 4
      %s65 = int_to_ptr.vmem [resolvable:$true] %s64
      %70 = dma.hbm_to_vmem [thread:$0]  %s6, 1024, %s65, [#allocation9], 64, 64, 4
    $region29: #{rnn_forward.1} parent=1 // pred_fallthru
      _
    // Predicated region
    $region30: #{rnn_forward.1} parent=1 // pred_check
      _
    $region31: #{rnn_forward.1} parent=1 // pred_check_branch
      %72 = sbr.rel (0) target = $region33
    $region32: #{rnn_forward.1} parent=1 // pred_region
      _
    $region33: #{rnn_forward.1} parent=1 // pred_fallthru
      _
    // Predicated region
    $region34: #{rnn_forward.1} parent=1 // pred_check
      _
    $region35: #{rnn_forward.1} parent=1 // pred_check_branch
      %74 = sbr.rel (0) target = $region37
    $region36: #{rnn_forward.1} parent=1 // pred_region
      %75 = dma.done [#allocation3], 1024
    $region37: #{rnn_forward.1} parent=1 // pred_fallthru
      _
    // Predicated region
    $region38: #{rnn_forward.1} parent=1 // pred_check
      _
    $region39: #{rnn_forward.1} parent=1 // pred_check_branch
      %77 = sbr.rel (0) target = $region41
    $region40: #{rnn_forward.1} parent=1 // pred_region
      %78 = dma.done [#allocation6], 4096
    $region41: #{rnn_forward.1} parent=1 // pred_fallthru
      _
    // Predicated region
    $region42: #{rnn_forward.1} parent=1 // pred_check
      _
    $region43: #{rnn_forward.1} parent=1 // pred_check_branch
      %80 = sbr.rel (0) target = $region45
    $region44: #{rnn_forward.1} parent=1 // pred_region
      %81 = dma.done [#allocation6], 8192
    $region45: #{rnn_forward.1} parent=1 // pred_fallthru
      _
    // Predicated region
    $region46: #{rnn_forward.1} parent=1 // pred_check
      _
    $region47: #{rnn_forward.1} parent=1 // pred_check_branch
      %83 = sbr.rel (0) target = $region49
    $region48: #{rnn_forward.1} parent=1 // pred_region
      %84 = dma.done [#allocation9], 1024
    $region49: #{rnn_forward.1} parent=1 // pred_fallthru
      _
    %v86 = vld [vmem:[%s0] sm:$0xff]
    %v87 = vld [vmem:[%s0 + $0x8] sm:$0xff]
    %v88 = vpack.c.bf16 %v87, %v86
    %v89 = vld [vmem:[#allocation2] sm:$0xff]
    %v90 = vld [vmem:[#allocation2 + $0x8] sm:$0xff]
    %v91 = vld [vmem:[#allocation2 + $0x10] sm:$0xff]
    %v92 = vld [vmem:[#allocation2 + $0x18] sm:$0xff]
    %v93 = vld [vmem:[#allocation2 + $0x20] sm:$0xff]
    %v94 = vld [vmem:[#allocation2 + $0x28] sm:$0xff]
    %v95 = vld [vmem:[#allocation2 + $0x30] sm:$0x33]
    %v96 = vld [vmem:[#allocation2 + $0x38] sm:$0x33]
    %v97 = vld [vmem:[%s3] sm:$0xf]
    %v99 = vlaneseq
    %v100 = vshrl.u32 %v99, 7
    %v101 = vsub.s32 0, %v100
    %v102 = vrot.slane %v97, %v101
    %v103 = vlaneseq
    %v104 = vshrl.u32 %v103, 7
    %v105 = vsub.s32 1, %v104
    %v106 = vrot.slane %v97, %v105
    %v107 = vlaneseq
    %v108 = vshrl.u32 %v107, 7
    %v109 = vsub.s32 2, %v108
    %v110 = vrot.slane %v97, %v109
    %v111 = vlaneseq
    %v112 = vshrl.u32 %v111, 7
    %v113 = vsub.s32 3, %v112
    %v114 = vrot.slane %v97, %v113
    %v127 = vunpack.c.l.b16 %v89
    %v128 = vunpack.c.h.b16 %v89
    %v129 = vunpack.c.l.b16 %v90
    %v130 = vunpack.c.h.b16 %v90
    %v131 = vunpack.c.l.b16 %v91
    %v132 = vunpack.c.h.b16 %v91
    %v133 = vunpack.c.l.b16 %v92
    %v134 = vunpack.c.h.b16 %v92
    %v135 = vunpack.c.l.b16 %v93
    %v136 = vunpack.c.h.b16 %v93
    %v137 = vunpack.c.l.b16 %v94
    %v138 = vunpack.c.h.b16 %v94
    %v139 = vunpack.c.l.b16 %v95
    %v140 = vunpack.c.h.b16 %v95
    %v141 = vunpack.c.l.b16 %v96
    %v142 = vunpack.c.h.b16 %v96
    %v143 = vpack.c.b16 %v131, %v127
    %v144 = vpack.c.b16 %v132, %v128
    %v145 = vpack.c.b16 %v133, %v129
    %v146 = vpack.c.b16 %v134, %v130
    %v147 = vpack.c.b16 %v139, %v135
    %v148 = vpack.c.b16 %v140, %v136
    %v149 = vpack.c.b16 %v141, %v137
    %v150 = vpack.c.b16 %v142, %v138
    %vm155 = vcmask 228352
    %v157 = vsel %vm155, %v88, 0
    %vm159 = vcmask 1045504
    %v161 = vsel %vm159, %v147, 0
    %v164 = vsel %vm159, %v148, 0
    %v167 = vsel %vm159, %v149, 0
    %v170 = vsel %vm159, %v150, 0
    %172 = vmatprep.subr.bf16.mxu0 %v144
    %173 = vmatpush1.bf16.msra.mxu0 %v143
    %174 = vmatprep.subr.bf16.mxu0 %v164
    %175 = vmatpush1.bf16.msra.mxu0 %v161
    %176 = vmatprep.subr.bf16.mxu0 0
    %177 = vmatpush1.bf16.msra.mxu0 0
    %178 = vmatprep.subr.bf16.mxu0 0
    %179 = vmatpush1.bf16.msra.mxu0 0
    %180 = vmatprep.subr.bf16.mxu0 0
    %181 = vmatpush1.bf16.msra.mxu0 0
    %182 = vmatprep.subr.bf16.mxu0 0
    %183 = vmatpush1.bf16.msra.mxu0 0
    %184 = vmatprep.subr.bf16.mxu0 0
    %185 = vmatpush1.bf16.msra.mxu0 0
    %186 = vmatprep.subr.bf16.mxu0 0
    %187 = vmatpush1.bf16.msra.mxu0 0
    %188 = vmatprep.subr.bf16.mxu0 0
    %189 = vmatpush1.bf16.msra.mxu0 0
    %190 = vmatprep.subr.bf16.mxu0 0
    %191 = vmatpush1.bf16.msra.mxu0 0
    %192 = vmatprep.subr.bf16.mxu0 0
    %193 = vmatpush1.bf16.msra.mxu0 0
    %194 = vmatprep.subr.bf16.mxu0 0
    %195 = vmatpush1.bf16.msra.mxu0 0
    %196 = vmatprep.subr.bf16.mxu0 0
    %197 = vmatpush1.bf16.msra.mxu0 0
    %198 = vmatprep.subr.bf16.mxu0 0
    %199 = vmatpush1.bf16.msra.mxu0 0
    %200 = vmatprep.subr.bf16.mxu0 0
    %201 = vmatpush1.bf16.msra.mxu0 0
    %202 = vmatprep.subr.bf16.mxu0 0
    %203 = vmatpush1.bf16.msra.mxu0 0
    %204 = vmatprep.mubr.bf16.mxu0 0
    %205 = vmatmul.mubr.bf16.gmra.mrb[0].mxu0 %v157
    %v206 = vpop.f32.mrb[0].mxu0
    %v207 = vadd.f32 %v102, %v206
    %v208 = vpop.f32.mrb[0].mxu0
    %v209 = vadd.f32 %v106, %v208
    %v210 = vpop.f32.mrb[0].mxu0
    %v211 = vadd.f32 %v102, %v210
    %v212 = vpop.f32.mrb[0].mxu0
    %v213 = vadd.f32 %v106, %v212
    %214 = vdwg.mxu0
    %215 = vmatprep.subr.bf16.mxu0 %v146
    %216 = vmatpush1.bf16.msra.mxu0 %v145
    %217 = vmatprep.subr.bf16.mxu0 %v170
    %218 = vmatpush1.bf16.msra.mxu0 %v167
    %219 = vmatprep.subr.bf16.mxu0 0
    %220 = vmatpush1.bf16.msra.mxu0 0
    %221 = vmatprep.subr.bf16.mxu0 0
    %222 = vmatpush1.bf16.msra.mxu0 0
    %223 = vmatprep.subr.bf16.mxu0 0
    %224 = vmatpush1.bf16.msra.mxu0 0
    %225 = vmatprep.subr.bf16.mxu0 0
    %226 = vmatpush1.bf16.msra.mxu0 0
    %227 = vmatprep.subr.bf16.mxu0 0
    %228 = vmatpush1.bf16.msra.mxu0 0
    %229 = vmatprep.subr.bf16.mxu0 0
    %230 = vmatpush1.bf16.msra.mxu0 0
    %231 = vmatprep.subr.bf16.mxu0 0
    %232 = vmatpush1.bf16.msra.mxu0 0
    %233 = vmatprep.subr.bf16.mxu0 0
    %234 = vmatpush1.bf16.msra.mxu0 0
    %235 = vmatprep.subr.bf16.mxu0 0
    %236 = vmatpush1.bf16.msra.mxu0 0
    %237 = vmatprep.subr.bf16.mxu0 0
    %238 = vmatpush1.bf16.msra.mxu0 0
    %239 = vmatprep.subr.bf16.mxu0 0
    %240 = vmatpush1.bf16.msra.mxu0 0
    %241 = vmatprep.subr.bf16.mxu0 0
    %242 = vmatpush1.bf16.msra.mxu0 0
    %243 = vmatprep.subr.bf16.mxu0 0
    %244 = vmatpush1.bf16.msra.mxu0 0
    %245 = vmatprep.subr.bf16.mxu0 0
    %246 = vmatpush1.bf16.msra.mxu0 0
    %247 = vmatprep.mubr.bf16.mxu0 0
    %248 = vmatmul.mubr.bf16.gmra.mrb[0].mxu0 %v157
    %v249 = vpop.f32.mrb[0].mxu0
    %v250 = vadd.f32 %v110, %v249
    %v251 = vpop.f32.mrb[0].mxu0
    %v252 = vadd.f32 %v114, %v251
    %v253 = vpop.f32.mrb[0].mxu0
    %v254 = vadd.f32 %v110, %v253
    %v255 = vpop.f32.mrb[0].mxu0
    %v256 = vadd.f32 %v114, %v255
    %257 = vdwg.mxu0
    %v258 = vld [vmem:[#allocation5] sm:$0xff]
    %v259 = vld [vmem:[#allocation5 + $0x8] sm:$0xff]
    %v260 = vld [vmem:[#allocation5 + $0x10] sm:$0xff]
    %v261 = vld [vmem:[#allocation5 + $0x18] sm:$0xff]
    %v262 = vld [vmem:[#allocation5 + $0x20] sm:$0xff]
    %v263 = vld [vmem:[#allocation5 + $0x28] sm:$0xff]
    %v264 = vld [vmem:[#allocation5 + $0x30] sm:$0xff]
    %v265 = vld [vmem:[#allocation5 + $0x38] sm:$0xff]
    %v266 = vld [vmem:[#allocation5 + $0x40] sm:$0xff]
    %v267 = vld [vmem:[#allocation5 + $0x48] sm:$0xff]
    %v268 = vld [vmem:[#allocation5 + $0x50] sm:$0xff]
    %v269 = vld [vmem:[#allocation5 + $0x58] sm:$0xff]
    %v270 = vld [vmem:[#allocation5 + $0x60] sm:$0xff]
    %v271 = vld [vmem:[#allocation5 + $0x68] sm:$0xff]
    %v272 = vld [vmem:[#allocation5 + $0x70] sm:$0xff]
    %v273 = vld [vmem:[#allocation5 + $0x78] sm:$0xff]
    %v274 = vld [vmem:[#allocation5 + $0x80] sm:$0xff]
    %v275 = vld [vmem:[#allocation5 + $0x88] sm:$0xff]
    %v276 = vld [vmem:[#allocation5 + $0x90] sm:$0xff]
    %v277 = vld [vmem:[#allocation5 + $0x98] sm:$0xff]
    %v278 = vld [vmem:[#allocation5 + $0xa0] sm:$0xff]
    %v279 = vld [vmem:[#allocation5 + $0xa8] sm:$0xff]
    %v280 = vld [vmem:[#allocation5 + $0xb0] sm:$0xff]
    %v281 = vld [vmem:[#allocation5 + $0xb8] sm:$0xff]
    %v282 = vld [vmem:[#allocation5 + $0xc0] sm:$0xff]
    %v283 = vld [vmem:[#allocation5 + $0xc8] sm:$0xff]
    %v284 = vld [vmem:[#allocation5 + $0xd0] sm:$0xff]
    %v285 = vld [vmem:[#allocation5 + $0xd8] sm:$0xff]
    %v286 = vld [vmem:[#allocation5 + $0xe0] sm:$0xff]
    %v287 = vld [vmem:[#allocation5 + $0xe8] sm:$0xff]
    %v288 = vld [vmem:[#allocation5 + $0xf0] sm:$0xff]
    %v289 = vld [vmem:[#allocation5 + $0xf8] sm:$0xff]
    %v290 = vld [vmem:[#allocation7] sm:$0xff]
    %v291 = vld [vmem:[#allocation7 + $0x8] sm:$0xff]
    %v292 = vld [vmem:[#allocation7 + $0x10] sm:$0xff]
    %v293 = vld [vmem:[#allocation7 + $0x18] sm:$0xff]
    %v294 = vld [vmem:[#allocation7 + $0x20] sm:$0xff]
    %v295 = vld [vmem:[#allocation7 + $0x28] sm:$0xff]
    %v296 = vld [vmem:[#allocation7 + $0x30] sm:$0xff]
    %v297 = vld [vmem:[#allocation7 + $0x38] sm:$0xff]
    %v298 = vld [vmem:[#allocation7 + $0x40] sm:$0xff]
    %v299 = vld [vmem:[#allocation7 + $0x48] sm:$0xff]
    %v300 = vld [vmem:[#allocation7 + $0x50] sm:$0xff]
    %v301 = vld [vmem:[#allocation7 + $0x58] sm:$0xff]
    %v302 = vld [vmem:[#allocation7 + $0x60] sm:$0xff]
    %v303 = vld [vmem:[#allocation7 + $0x68] sm:$0xff]
    %v304 = vld [vmem:[#allocation7 + $0x70] sm:$0xff]
    %v305 = vld [vmem:[#allocation7 + $0x78] sm:$0xff]
    %v306 = vld [vmem:[#allocation7 + $0x80] sm:$0xff]
    %v307 = vld [vmem:[#allocation7 + $0x88] sm:$0xff]
    %v308 = vld [vmem:[#allocation7 + $0x90] sm:$0xff]
    %v309 = vld [vmem:[#allocation7 + $0x98] sm:$0xff]
    %v310 = vld [vmem:[#allocation7 + $0xa0] sm:$0xff]
    %v311 = vld [vmem:[#allocation7 + $0xa8] sm:$0xff]
    %v312 = vld [vmem:[#allocation7 + $0xb0] sm:$0xff]
    %v313 = vld [vmem:[#allocation7 + $0xb8] sm:$0xff]
    %v314 = vld [vmem:[#allocation7 + $0xc0] sm:$0xff]
    %v315 = vld [vmem:[#allocation7 + $0xc8] sm:$0xff]
    %v316 = vld [vmem:[#allocation7 + $0xd0] sm:$0xff]
    %v317 = vld [vmem:[#allocation7 + $0xd8] sm:$0xff]
    %v318 = vld [vmem:[#allocation7 + $0xe0] sm:$0xff]
    %v319 = vld [vmem:[#allocation7 + $0xe8] sm:$0xff]
    %v320 = vld [vmem:[#allocation7 + $0xf0] sm:$0xff]
    %v321 = vld [vmem:[#allocation7 + $0xf8] sm:$0xff]
    %v322 = vld [vmem:[#allocation7 + $0x100] sm:$0xff]
    %v323 = vld [vmem:[#allocation7 + $0x108] sm:$0xff]
    %v324 = vld [vmem:[#allocation7 + $0x110] sm:$0xff]
    %v325 = vld [vmem:[#allocation7 + $0x118] sm:$0xff]
    %v326 = vld [vmem:[#allocation7 + $0x120] sm:$0xff]
    %v327 = vld [vmem:[#allocation7 + $0x128] sm:$0xff]
    %v328 = vld [vmem:[#allocation7 + $0x130] sm:$0xff]
    %v329 = vld [vmem:[#allocation7 + $0x138] sm:$0xff]
    %v330 = vld [vmem:[#allocation7 + $0x140] sm:$0xff]
    %v331 = vld [vmem:[#allocation7 + $0x148] sm:$0xff]
    %v332 = vld [vmem:[#allocation7 + $0x150] sm:$0xff]
    %v333 = vld [vmem:[#allocation7 + $0x158] sm:$0xff]
    %v334 = vld [vmem:[#allocation7 + $0x160] sm:$0xff]
    %v335 = vld [vmem:[#allocation7 + $0x168] sm:$0xff]
    %v336 = vld [vmem:[#allocation7 + $0x170] sm:$0xff]
    %v337 = vld [vmem:[#allocation7 + $0x178] sm:$0xff]
    %v338 = vld [vmem:[#allocation7 + $0x180] sm:$0xff]
    %v339 = vld [vmem:[#allocation7 + $0x188] sm:$0xff]
    %v340 = vld [vmem:[#allocation7 + $0x190] sm:$0xff]
    %v341 = vld [vmem:[#allocation7 + $0x198] sm:$0xff]
    %v342 = vld [vmem:[#allocation7 + $0x1a0] sm:$0xff]
    %v343 = vld [vmem:[#allocation7 + $0x1a8] sm:$0xff]
    %v344 = vld [vmem:[#allocation7 + $0x1b0] sm:$0xff]
    %v345 = vld [vmem:[#allocation7 + $0x1b8] sm:$0xff]
    %v346 = vld [vmem:[#allocation7 + $0x1c0] sm:$0xff]
    %v347 = vld [vmem:[#allocation7 + $0x1c8] sm:$0xff]
    %v348 = vld [vmem:[#allocation7 + $0x1d0] sm:$0xff]
    %v349 = vld [vmem:[#allocation7 + $0x1d8] sm:$0xff]
    %v350 = vld [vmem:[#allocation7 + $0x1e0] sm:$0xff]
    %v351 = vld [vmem:[#allocation7 + $0x1e8] sm:$0xff]
    %v352 = vld [vmem:[#allocation7 + $0x1f0] sm:$0xff]
    %v353 = vld [vmem:[#allocation7 + $0x1f8] sm:$0xff]
    %v354 = vld [vmem:[%s5] sm:$0xf]
    %v356 = vlaneseq
    %v357 = vshrl.u32 %v356, 7
    %v358 = vsub.s32 0, %v357
    %v359 = vrot.slane %v354, %v358
    %v360 = vlaneseq
    %v361 = vshrl.u32 %v360, 7
    %v362 = vsub.s32 1, %v361
    %v363 = vrot.slane %v354, %v362
    %v364 = vlaneseq
    %v365 = vshrl.u32 %v364, 7
    %v366 = vsub.s32 2, %v365
    %v367 = vrot.slane %v354, %v366
    %v368 = vlaneseq
    %v369 = vshrl.u32 %v368, 7
    %v370 = vsub.s32 3, %v369
    %v371 = vrot.slane %v354, %v370
    %v408 = vunpack.c.l.b16 %v258
    %v409 = vunpack.c.h.b16 %v258
    %v410 = vunpack.c.l.b16 %v259
    %v411 = vunpack.c.h.b16 %v259
    %v412 = vunpack.c.l.b16 %v260
    %v413 = vunpack.c.h.b16 %v260
    %v414 = vunpack.c.l.b16 %v261
    %v415 = vunpack.c.h.b16 %v261
    %v416 = vunpack.c.l.b16 %v262
    %v417 = vunpack.c.h.b16 %v262
    %v418 = vunpack.c.l.b16 %v263
    %v419 = vunpack.c.h.b16 %v263
    %v420 = vunpack.c.l.b16 %v264
    %v421 = vunpack.c.h.b16 %v264
    %v422 = vunpack.c.l.b16 %v265
    %v423 = vunpack.c.h.b16 %v265
    %v424 = vunpack.c.l.b16 %v266
    %v425 = vunpack.c.h.b16 %v266
    %v426 = vunpack.c.l.b16 %v267
    %v427 = vunpack.c.h.b16 %v267
    %v428 = vunpack.c.l.b16 %v268
    %v429 = vunpack.c.h.b16 %v268
    %v430 = vunpack.c.l.b16 %v269
    %v431 = vunpack.c.h.b16 %v269
    %v432 = vunpack.c.l.b16 %v270
    %v433 = vunpack.c.h.b16 %v270
    %v434 = vunpack.c.l.b16 %v271
    %v435 = vunpack.c.h.b16 %v271
    %v436 = vunpack.c.l.b16 %v272
    %v437 = vunpack.c.h.b16 %v272
    %v438 = vunpack.c.l.b16 %v273
    %v439 = vunpack.c.h.b16 %v273
    %v440 = vunpack.c.l.b16 %v274
    %v441 = vunpack.c.h.b16 %v274
    %v442 = vunpack.c.l.b16 %v275
    %v443 = vunpack.c.h.b16 %v275
    %v444 = vunpack.c.l.b16 %v276
    %v445 = vunpack.c.h.b16 %v276
    %v446 = vunpack.c.l.b16 %v277
    %v447 = vunpack.c.h.b16 %v277
    %v448 = vunpack.c.l.b16 %v278
    %v449 = vunpack.c.h.b16 %v278
    %v450 = vunpack.c.l.b16 %v279
    %v451 = vunpack.c.h.b16 %v279
    %v452 = vunpack.c.l.b16 %v280
    %v453 = vunpack.c.h.b16 %v280
    %v454 = vunpack.c.l.b16 %v281
    %v455 = vunpack.c.h.b16 %v281
    %v456 = vunpack.c.l.b16 %v282
    %v457 = vunpack.c.h.b16 %v282
    %v458 = vunpack.c.l.b16 %v283
    %v459 = vunpack.c.h.b16 %v283
    %v460 = vunpack.c.l.b16 %v284
    %v461 = vunpack.c.h.b16 %v284
    %v462 = vunpack.c.l.b16 %v285
    %v463 = vunpack.c.h.b16 %v285
    %v464 = vunpack.c.l.b16 %v286
    %v465 = vunpack.c.h.b16 %v286
    %v466 = vunpack.c.l.b16 %v287
    %v467 = vunpack.c.h.b16 %v287
    %v468 = vunpack.c.l.b16 %v288
    %v469 = vunpack.c.h.b16 %v288
    %v470 = vunpack.c.l.b16 %v289
    %v471 = vunpack.c.h.b16 %v289
    %v472 = vpack.c.b16 %v412, %v408
    %v473 = vpack.c.b16 %v413, %v409
    %v474 = vpack.c.b16 %v414, %v410
    %v475 = vpack.c.b16 %v415, %v411
    %v476 = vpack.c.b16 %v420, %v416
    %v477 = vpack.c.b16 %v421, %v417
    %v478 = vpack.c.b16 %v422, %v418
    %v479 = vpack.c.b16 %v423, %v419
    %v480 = vpack.c.b16 %v428, %v424
    %v481 = vpack.c.b16 %v429, %v425
    %v482 = vpack.c.b16 %v430, %v426
    %v483 = vpack.c.b16 %v431, %v427
    %v484 = vpack.c.b16 %v436, %v432
    %v485 = vpack.c.b16 %v437, %v433
    %v486 = vpack.c.b16 %v438, %v434
    %v487 = vpack.c.b16 %v439, %v435
    %v488 = vpack.c.b16 %v444, %v440
    %v489 = vpack.c.b16 %v445, %v441
    %v490 = vpack.c.b16 %v446, %v442
    %v491 = vpack.c.b16 %v447, %v443
    %v492 = vpack.c.b16 %v452, %v448
    %v493 = vpack.c.b16 %v453, %v449
    %v494 = vpack.c.b16 %v454, %v450
    %v495 = vpack.c.b16 %v455, %v451
    %v496 = vpack.c.b16 %v460, %v456
    %v497 = vpack.c.b16 %v461, %v457
    %v498 = vpack.c.b16 %v462, %v458
    %v499 = vpack.c.b16 %v463, %v459
    %v500 = vpack.c.b16 %v468, %v464
    %v501 = vpack.c.b16 %v469, %v465
    %v502 = vpack.c.b16 %v470, %v466
    %v503 = vpack.c.b16 %v471, %v467
    %536 = vmatprep.subr.bf16.mxu0 %v473
    %537 = vmatpush1.bf16.msra.mxu0 %v472
    %538 = vmatprep.subr.bf16.mxu0 %v477
    %539 = vmatpush1.bf16.msra.mxu0 %v476
    %540 = vmatprep.subr.bf16.mxu0 %v481
    %541 = vmatpush1.bf16.msra.mxu0 %v480
    %542 = vmatprep.subr.bf16.mxu0 %v485
    %543 = vmatpush1.bf16.msra.mxu0 %v484
    %544 = vmatprep.subr.bf16.mxu0 %v489
    %545 = vmatpush1.bf16.msra.mxu0 %v488
    %546 = vmatprep.subr.bf16.mxu0 %v493
    %547 = vmatpush1.bf16.msra.mxu0 %v492
    %548 = vmatprep.subr.bf16.mxu0 %v497
    %549 = vmatpush1.bf16.msra.mxu0 %v496
    %550 = vmatprep.subr.bf16.mxu0 %v501
    %551 = vmatpush1.bf16.msra.mxu0 %v500
    %552 = vmatprep.subr.bf16.mxu0 0
    %553 = vmatpush1.bf16.msra.mxu0 0
    %554 = vmatprep.subr.bf16.mxu0 0
    %555 = vmatpush1.bf16.msra.mxu0 0
    %556 = vmatprep.subr.bf16.mxu0 0
    %557 = vmatpush1.bf16.msra.mxu0 0
    %558 = vmatprep.subr.bf16.mxu0 0
    %559 = vmatpush1.bf16.msra.mxu0 0
    %560 = vmatprep.subr.bf16.mxu0 0
    %561 = vmatpush1.bf16.msra.mxu0 0
    %562 = vmatprep.subr.bf16.mxu0 0
    %563 = vmatpush1.bf16.msra.mxu0 0
    %564 = vmatprep.subr.bf16.mxu0 0
    %565 = vmatpush1.bf16.msra.mxu0 0
    %566 = vmatprep.subr.bf16.mxu0 0
    %567 = vmatpush1.bf16.msra.mxu0 0
    %568 = vmatprep.mubr.bf16.mxu0 0
    %569 = vmatmul.mubr.bf16.gmra.mrb[0].mxu0 0
    %v570 = vpop.f32.mrb[0].mxu0
    %v571 = vadd.f32 0.0, %v570
    %v572 = vpop.f32.mrb[0].mxu0
    %v573 = vadd.f32 0.0, %v572
    %v574 = vpop.f32.mrb[0].mxu0
    %v575 = vpop.f32.mrb[0].mxu0
    %576 = vdwg.mxu0
    %577 = vmatprep.subr.bf16.mxu0 %v475
    %578 = vmatpush1.bf16.msra.mxu0 %v474
    %579 = vmatprep.subr.bf16.mxu0 %v479
    %580 = vmatpush1.bf16.msra.mxu0 %v478
    %581 = vmatprep.subr.bf16.mxu0 %v483
    %582 = vmatpush1.bf16.msra.mxu0 %v482
    %583 = vmatprep.subr.bf16.mxu0 %v487
    %584 = vmatpush1.bf16.msra.mxu0 %v486
    %585 = vmatprep.subr.bf16.mxu0 %v491
    %586 = vmatpush1.bf16.msra.mxu0 %v490
    %587 = vmatprep.subr.bf16.mxu0 %v495
    %588 = vmatpush1.bf16.msra.mxu0 %v494
    %589 = vmatprep.subr.bf16.mxu0 %v499
    %590 = vmatpush1.bf16.msra.mxu0 %v498
    %591 = vmatprep.subr.bf16.mxu0 %v503
    %592 = vmatpush1.bf16.msra.mxu0 %v502
    %593 = vmatprep.subr.bf16.mxu0 0
    %594 = vmatpush1.bf16.msra.mxu0 0
    %595 = vmatprep.subr.bf16.mxu0 0
    %596 = vmatpush1.bf16.msra.mxu0 0
    %597 = vmatprep.subr.bf16.mxu0 0
    %598 = vmatpush1.bf16.msra.mxu0 0
    %599 = vmatprep.subr.bf16.mxu0 0
    %600 = vmatpush1.bf16.msra.mxu0 0
    %601 = vmatprep.subr.bf16.mxu0 0
    %602 = vmatpush1.bf16.msra.mxu0 0
    %603 = vmatprep.subr.bf16.mxu0 0
    %604 = vmatpush1.bf16.msra.mxu0 0
    %605 = vmatprep.subr.bf16.mxu0 0
    %606 = vmatpush1.bf16.msra.mxu0 0
    %607 = vmatprep.subr.bf16.mxu0 0
    %608 = vmatpush1.bf16.msra.mxu0 0
    %609 = vmatprep.mubr.bf16.mxu0 0
    %610 = vmatmul.mubr.bf16.gmra.mrb[0].mxu0 0
    %v611 = vpop.f32.mrb[0].mxu0
    %v612 = vadd.f32 0.0, %v611
    %v613 = vpop.f32.mrb[0].mxu0
    %v614 = vadd.f32 0.0, %v613
    %v615 = vpop.f32.mrb[0].mxu0
    %v616 = vpop.f32.mrb[0].mxu0
    %617 = vdwg.mxu0
    %v618 = vadd.f32 %v207, %v571
    %v619 = vadd.f32 %v209, %v573
    %v620 = vadd.f32 %v250, %v612
    %v621 = vadd.f32 %v252, %v614
    %v622 = vxor.u32 %v618, 2147483648
    %v623 = vmul.f32 %v622, 1.442695
    %v624 = vpow.pop %v623
    %v625 = vadd.f32 %v624, 1.0
    %v626 = vrcp.pop %v625
    %v627 = vmul.f32 1.0, %v626
    %v628 = vxor.u32 %v619, 2147483648
    %v629 = vmul.f32 %v628, 1.442695
    %v630 = vpow.pop %v629
    %v631 = vadd.f32 %v630, 1.0
    %v632 = vrcp.pop %v631
    %v633 = vmul.f32 1.0, %v632
    %v634 = vtanh.pop %v620
    %v635 = vxor.u32 %v621, 2147483648
    %v636 = vmul.f32 %v635, 1.442695
    %v637 = vpow.pop %v636
    %v638 = vadd.f32 %v637, 1.0
    %v639 = vrcp.pop %v638
    %v640 = vmul.f32 1.0, %v639
    %v641 = vmul.f32 %v633, 0.0
    %v642 = vmul.f32 %v627, %v634
    %v643 = vadd.f32 %v641, %v642
    %v644 = vtanh.pop %v643
    %v645 = vmul.f32 %v640, %v644
    %v646 = vpack.c.bf16 %v645, %v645
    %v647 = vpack.c.bf16 0.0, 0.0
    %v712 = vunpack.c.l.b16 %v290
    %v713 = vunpack.c.h.b16 %v290
    %v714 = vunpack.c.l.b16 %v291
    %v715 = vunpack.c.h.b16 %v291
    %v716 = vunpack.c.l.b16 %v292
    %v717 = vunpack.c.h.b16 %v292
    %v718 = vunpack.c.l.b16 %v293
    %v719 = vunpack.c.h.b16 %v293
    %v720 = vunpack.c.l.b16 %v294
    %v721 = vunpack.c.h.b16 %v294
    %v722 = vunpack.c.l.b16 %v295
    %v723 = vunpack.c.h.b16 %v295
    %v724 = vunpack.c.l.b16 %v296
    %v725 = vunpack.c.h.b16 %v296
    %v726 = vunpack.c.l.b16 %v297
    %v727 = vunpack.c.h.b16 %v297
    %v728 = vunpack.c.l.b16 %v298
    %v729 = vunpack.c.h.b16 %v298
    %v730 = vunpack.c.l.b16 %v299
    %v731 = vunpack.c.h.b16 %v299
    %v732 = vunpack.c.l.b16 %v300
    %v733 = vunpack.c.h.b16 %v300
    %v734 = vunpack.c.l.b16 %v301
    %v735 = vunpack.c.h.b16 %v301
    %v736 = vunpack.c.l.b16 %v302
    %v737 = vunpack.c.h.b16 %v302
    %v738 = vunpack.c.l.b16 %v303
    %v739 = vunpack.c.h.b16 %v303
    %v740 = vunpack.c.l.b16 %v304
    %v741 = vunpack.c.h.b16 %v304
    %v742 = vunpack.c.l.b16 %v305
    %v743 = vunpack.c.h.b16 %v305
    %v744 = vunpack.c.l.b16 %v306
    %v745 = vunpack.c.h.b16 %v306
    %v746 = vunpack.c.l.b16 %v307
    %v747 = vunpack.c.h.b16 %v307
    %v748 = vunpack.c.l.b16 %v308
    %v749 = vunpack.c.h.b16 %v308
    %v750 = vunpack.c.l.b16 %v309
    %v751 = vunpack.c.h.b16 %v309
    %v752 = vunpack.c.l.b16 %v310
    %v753 = vunpack.c.h.b16 %v310
    %v754 = vunpack.c.l.b16 %v311
    %v755 = vunpack.c.h.b16 %v311
    %v756 = vunpack.c.l.b16 %v312
    %v757 = vunpack.c.h.b16 %v312
    %v758 = vunpack.c.l.b16 %v313
    %v759 = vunpack.c.h.b16 %v313
    %v760 = vunpack.c.l.b16 %v314
    %v761 = vunpack.c.h.b16 %v314
    %v762 = vunpack.c.l.b16 %v315
    %v763 = vunpack.c.h.b16 %v315
    %v764 = vunpack.c.l.b16 %v316
    %v765 = vunpack.c.h.b16 %v316
    %v766 = vunpack.c.l.b16 %v317
    %v767 = vunpack.c.h.b16 %v317
    %v768 = vunpack.c.l.b16 %v318
    %v769 = vunpack.c.h.b16 %v318
    %v770 = vunpack.c.l.b16 %v319
    %v771 = vunpack.c.h.b16 %v319
    %v772 = vunpack.c.l.b16 %v320
    %v773 = vunpack.c.h.b16 %v320
    %v774 = vunpack.c.l.b16 %v321
    %v775 = vunpack.c.h.b16 %v321
    %v776 = vunpack.c.l.b16 %v322
    %v777 = vunpack.c.h.b16 %v322
    %v778 = vunpack.c.l.b16 %v323
    %v779 = vunpack.c.h.b16 %v323
    %v780 = vunpack.c.l.b16 %v324
    %v781 = vunpack.c.h.b16 %v324
    %v782 = vunpack.c.l.b16 %v325
    %v783 = vunpack.c.h.b16 %v325
    %v784 = vunpack.c.l.b16 %v326
    %v785 = vunpack.c.h.b16 %v326
    %v786 = vunpack.c.l.b16 %v327
    %v787 = vunpack.c.h.b16 %v327
    %v788 = vunpack.c.l.b16 %v328
    %v789 = vunpack.c.h.b16 %v328
    %v790 = vunpack.c.l.b16 %v329
    %v791 = vunpack.c.h.b16 %v329
    %v792 = vunpack.c.l.b16 %v330
    %v793 = vunpack.c.h.b16 %v330
    %v794 = vunpack.c.l.b16 %v331
    %v795 = vunpack.c.h.b16 %v331
    %v796 = vunpack.c.l.b16 %v332
    %v797 = vunpack.c.h.b16 %v332
    %v798 = vunpack.c.l.b16 %v333
    %v799 = vunpack.c.h.b16 %v333
    %v800 = vunpack.c.l.b16 %v334
    %v801 = vunpack.c.h.b16 %v334
    %v802 = vunpack.c.l.b16 %v335
    %v803 = vunpack.c.h.b16 %v335
    %v804 = vunpack.c.l.b16 %v336
    %v805 = vunpack.c.h.b16 %v336
    %v806 = vunpack.c.l.b16 %v337
    %v807 = vunpack.c.h.b16 %v337
    %v808 = vunpack.c.l.b16 %v338
    %v809 = vunpack.c.h.b16 %v338
    %v810 = vunpack.c.l.b16 %v339
    %v811 = vunpack.c.h.b16 %v339
    %v812 = vunpack.c.l.b16 %v340
    %v813 = vunpack.c.h.b16 %v340
    %v814 = vunpack.c.l.b16 %v341
    %v815 = vunpack.c.h.b16 %v341
    %v816 = vunpack.c.l.b16 %v342
    %v817 = vunpack.c.h.b16 %v342
    %v818 = vunpack.c.l.b16 %v343
    %v819 = vunpack.c.h.b16 %v343
    %v820 = vunpack.c.l.b16 %v344
    %v821 = vunpack.c.h.b16 %v344
    %v822 = vunpack.c.l.b16 %v345
    %v823 = vunpack.c.h.b16 %v345
    %v824 = vunpack.c.l.b16 %v346
    %v825 = vunpack.c.h.b16 %v346
    %v826 = vunpack.c.l.b16 %v347
    %v827 = vunpack.c.h.b16 %v347
    %v828 = vunpack.c.l.b16 %v348
    %v829 = vunpack.c.h.b16 %v348
    %v830 = vunpack.c.l.b16 %v349
    %v831 = vunpack.c.h.b16 %v349
    %v832 = vunpack.c.l.b16 %v350
    %v833 = vunpack.c.h.b16 %v350
    %v834 = vunpack.c.l.b16 %v351
    %v835 = vunpack.c.h.b16 %v351
    %v836 = vunpack.c.l.b16 %v352
    %v837 = vunpack.c.h.b16 %v352
    %v838 = vunpack.c.l.b16 %v353
    %v839 = vunpack.c.h.b16 %v353
    %v840 = vpack.c.b16 %v716, %v712
    %v841 = vpack.c.b16 %v717, %v713
    %v842 = vpack.c.b16 %v718, %v714
    %v843 = vpack.c.b16 %v719, %v715
    %v844 = vpack.c.b16 %v724, %v720
    %v845 = vpack.c.b16 %v725, %v721
    %v846 = vpack.c.b16 %v726, %v722
    %v847 = vpack.c.b16 %v727, %v723
    %v848 = vpack.c.b16 %v732, %v728
    %v849 = vpack.c.b16 %v733, %v729
    %v850 = vpack.c.b16 %v734, %v730
    %v851 = vpack.c.b16 %v735, %v731
    %v852 = vpack.c.b16 %v740, %v736
    %v853 = vpack.c.b16 %v741, %v737
    %v854 = vpack.c.b16 %v742, %v738
    %v855 = vpack.c.b16 %v743, %v739
    %v856 = vpack.c.b16 %v748, %v744
    %v857 = vpack.c.b16 %v749, %v745
    %v858 = vpack.c.b16 %v750, %v746
    %v859 = vpack.c.b16 %v751, %v747
    %v860 = vpack.c.b16 %v756, %v752
    %v861 = vpack.c.b16 %v757, %v753
    %v862 = vpack.c.b16 %v758, %v754
    %v863 = vpack.c.b16 %v759, %v755
    %v864 = vpack.c.b16 %v764, %v760
    %v865 = vpack.c.b16 %v765, %v761
    %v866 = vpack.c.b16 %v766, %v762
    %v867 = vpack.c.b16 %v767, %v763
    %v868 = vpack.c.b16 %v772, %v768
    %v869 = vpack.c.b16 %v773, %v769
    %v870 = vpack.c.b16 %v774, %v770
    %v871 = vpack.c.b16 %v775, %v771
    %v872 = vpack.c.b16 %v780, %v776
    %v873 = vpack.c.b16 %v781, %v777
    %v874 = vpack.c.b16 %v782, %v778
    %v875 = vpack.c.b16 %v783, %v779
    %v876 = vpack.c.b16 %v788, %v784
    %v877 = vpack.c.b16 %v789, %v785
    %v878 = vpack.c.b16 %v790, %v786
    %v879 = vpack.c.b16 %v791, %v787
    %v880 = vpack.c.b16 %v796, %v792
    %v881 = vpack.c.b16 %v797, %v793
    %v882 = vpack.c.b16 %v798, %v794
    %v883 = vpack.c.b16 %v799, %v795
    %v884 = vpack.c.b16 %v804, %v800
    %v885 = vpack.c.b16 %v805, %v801
    %v886 = vpack.c.b16 %v806, %v802
    %v887 = vpack.c.b16 %v807, %v803
    %v888 = vpack.c.b16 %v812, %v808
    %v889 = vpack.c.b16 %v813, %v809
    %v890 = vpack.c.b16 %v814, %v810
    %v891 = vpack.c.b16 %v815, %v811
    %v892 = vpack.c.b16 %v820, %v816
    %v893 = vpack.c.b16 %v821, %v817
    %v894 = vpack.c.b16 %v822, %v818
    %v895 = vpack.c.b16 %v823, %v819
    %v896 = vpack.c.b16 %v828, %v824
    %v897 = vpack.c.b16 %v829, %v825
    %v898 = vpack.c.b16 %v830, %v826
    %v899 = vpack.c.b16 %v831, %v827
    %v900 = vpack.c.b16 %v836, %v832
    %v901 = vpack.c.b16 %v837, %v833
    %v902 = vpack.c.b16 %v838, %v834
    %v903 = vpack.c.b16 %v839, %v835
    %968 = vmatprep.subr.bf16.mxu0 %v841
    %969 = vmatpush1.bf16.msra.mxu0 %v840
    %970 = vmatprep.subr.bf16.mxu0 %v845
    %971 = vmatpush1.bf16.msra.mxu0 %v844
    %972 = vmatprep.subr.bf16.mxu0 %v849
    %973 = vmatpush1.bf16.msra.mxu0 %v848
    %974 = vmatprep.subr.bf16.mxu0 %v853
    %975 = vmatpush1.bf16.msra.mxu0 %v852
    %976 = vmatprep.subr.bf16.mxu0 %v857
    %977 = vmatpush1.bf16.msra.mxu0 %v856
    %978 = vmatprep.subr.bf16.mxu0 %v861
    %979 = vmatpush1.bf16.msra.mxu0 %v860
    %980 = vmatprep.subr.bf16.mxu0 %v865
    %981 = vmatpush1.bf16.msra.mxu0 %v864
    %982 = vmatprep.subr.bf16.mxu0 %v869
    %983 = vmatpush1.bf16.msra.mxu0 %v868
    %984 = vmatprep.subr.bf16.mxu0 %v873
    %985 = vmatpush1.bf16.msra.mxu0 %v872
    %986 = vmatprep.subr.bf16.mxu0 %v877
    %987 = vmatpush1.bf16.msra.mxu0 %v876
    %988 = vmatprep.subr.bf16.mxu0 %v881
    %989 = vmatpush1.bf16.msra.mxu0 %v880
    %990 = vmatprep.subr.bf16.mxu0 %v885
    %991 = vmatpush1.bf16.msra.mxu0 %v884
    %992 = vmatprep.subr.bf16.mxu0 %v889
    %993 = vmatpush1.bf16.msra.mxu0 %v888
    %994 = vmatprep.subr.bf16.mxu0 %v893
    %995 = vmatpush1.bf16.msra.mxu0 %v892
    %996 = vmatprep.subr.bf16.mxu0 %v897
    %997 = vmatpush1.bf16.msra.mxu0 %v896
    %998 = vmatprep.subr.bf16.mxu0 %v901
    %999 = vmatpush1.bf16.msra.mxu0 %v900
    %1000 = vmatprep.mubr.bf16.mxu0 %v647
    %1001 = vmatmul.mubr.bf16.gmra.mrb[0].mxu0 %v646
    %v1002 = vpop.f32.mrb[0].mxu0
    %v1003 = vadd.f32 %v359, %v1002
    %v1004 = vpop.f32.mrb[0].mxu0
    %v1005 = vadd.f32 %v363, %v1004
    %v1006 = vpop.f32.mrb[0].mxu0
    %v1007 = vpop.f32.mrb[0].mxu0
    %1008 = vdwg.mxu0
    %1009 = vmatprep.subr.bf16.mxu0 %v843
    %1010 = vmatpush1.bf16.msra.mxu0 %v842
    %1011 = vmatprep.subr.bf16.mxu0 %v847
    %1012 = vmatpush1.bf16.msra.mxu0 %v846
    %1013 = vmatprep.subr.bf16.mxu0 %v851
    %1014 = vmatpush1.bf16.msra.mxu0 %v850
    %1015 = vmatprep.subr.bf16.mxu0 %v855
    %1016 = vmatpush1.bf16.msra.mxu0 %v854
    %1017 = vmatprep.subr.bf16.mxu0 %v859
    %1018 = vmatpush1.bf16.msra.mxu0 %v858
    %1019 = vmatprep.subr.bf16.mxu0 %v863
    %1020 = vmatpush1.bf16.msra.mxu0 %v862
    %1021 = vmatprep.subr.bf16.mxu0 %v867
    %1022 = vmatpush1.bf16.msra.mxu0 %v866
    %1023 = vmatprep.subr.bf16.mxu0 %v871
    %1024 = vmatpush1.bf16.msra.mxu0 %v870
    %1025 = vmatprep.subr.bf16.mxu0 %v875
    %1026 = vmatpush1.bf16.msra.mxu0 %v874
    %1027 = vmatprep.subr.bf16.mxu0 %v879
    %1028 = vmatpush1.bf16.msra.mxu0 %v878
    %1029 = vmatprep.subr.bf16.mxu0 %v883
    %1030 = vmatpush1.bf16.msra.mxu0 %v882
    %1031 = vmatprep.subr.bf16.mxu0 %v887
    %1032 = vmatpush1.bf16.msra.mxu0 %v886
    %1033 = vmatprep.subr.bf16.mxu0 %v891
    %1034 = vmatpush1.bf16.msra.mxu0 %v890
    %1035 = vmatprep.subr.bf16.mxu0 %v895
    %1036 = vmatpush1.bf16.msra.mxu0 %v894
    %1037 = vmatprep.subr.bf16.mxu0 %v899
    %1038 = vmatpush1.bf16.msra.mxu0 %v898
    %1039 = vmatprep.subr.bf16.mxu0 %v903
    %1040 = vmatpush1.bf16.msra.mxu0 %v902
    %1041 = vmatprep.mubr.bf16.mxu0 %v647
    %1042 = vmatmul.mubr.bf16.gmra.mrb[0].mxu0 %v646
    %v1043 = vpop.f32.mrb[0].mxu0
    %v1044 = vadd.f32 %v367, %v1043
    %v1045 = vpop.f32.mrb[0].mxu0
    %v1046 = vadd.f32 %v371, %v1045
    %v1047 = vpop.f32.mrb[0].mxu0
    %v1048 = vpop.f32.mrb[0].mxu0
    %1049 = vdwg.mxu0
    %v1050 = vxor.u32 %v1003, 2147483648
    %v1051 = vmul.f32 %v1050, 1.442695
    %v1052 = vpow.pop %v1051
    %v1053 = vadd.f32 %v1052, 1.0
    %v1054 = vrcp.pop %v1053
    %v1055 = vmul.f32 1.0, %v1054
    %v1056 = vxor.u32 %v1005, 2147483648
    %v1057 = vmul.f32 %v1056, 1.442695
    %v1058 = vpow.pop %v1057
    %v1059 = vadd.f32 %v1058, 1.0
    %v1060 = vrcp.pop %v1059
    %v1061 = vmul.f32 1.0, %v1060
    %v1062 = vtanh.pop %v1044
    %v1063 = vxor.u32 %v1046, 2147483648
    %v1064 = vmul.f32 %v1063, 1.442695
    %v1065 = vpow.pop %v1064
    %v1066 = vadd.f32 %v1065, 1.0
    %v1067 = vrcp.pop %v1066
    %v1068 = vmul.f32 1.0, %v1067
    %v1069 = vmul.f32 %v1061, 0.0
    %v1070 = vmul.f32 %v1055, %v1062
    %v1071 = vadd.f32 %v1069, %v1070
    %v1072 = vtanh.pop %v1071
    %v1073 = vmul.f32 %v1068, %v1072
    %1074 = vmatprep.subr.bf16.mxu0 %v473
    %1075 = vmatpush1.bf16.msra.mxu0 %v472
    %1076 = vmatprep.subr.bf16.mxu0 %v477
    %1077 = vmatpush1.bf16.msra.mxu0 %v476
    %1078 = vmatprep.subr.bf16.mxu0 %v481
    %1079 = vmatpush1.bf16.msra.mxu0 %v480
    %1080 = vmatprep.subr.bf16.mxu0 %v485
    %1081 = vmatpush1.bf16.msra.mxu0 %v484
    %1082 = vmatprep.subr.bf16.mxu0 %v489
    %1083 = vmatpush1.bf16.msra.mxu0 %v488
    %1084 = vmatprep.subr.bf16.mxu0 %v493
    %1085 = vmatpush1.bf16.msra.mxu0 %v492
    %1086 = vmatprep.subr.bf16.mxu0 %v497
    %1087 = vmatpush1.bf16.msra.mxu0 %v496
    %1088 = vmatprep.subr.bf16.mxu0 %v501
    %1089 = vmatpush1.bf16.msra.mxu0 %v500
    %1090 = vmatprep.subr.bf16.mxu0 0
    %1091 = vmatpush1.bf16.msra.mxu0 0
    %1092 = vmatprep.subr.bf16.mxu0 0
    %1093 = vmatpush1.bf16.msra.mxu0 0
    %1094 = vmatprep.subr.bf16.mxu0 0
    %1095 = vmatpush1.bf16.msra.mxu0 0
    %1096 = vmatprep.subr.bf16.mxu0 0
    %1097 = vmatpush1.bf16.msra.mxu0 0
    %1098 = vmatprep.subr.bf16.mxu0 0
    %1099 = vmatpush1.bf16.msra.mxu0 0
    %1100 = vmatprep.subr.bf16.mxu0 0
    %1101 = vmatpush1.bf16.msra.mxu0 0
    %1102 = vmatprep.subr.bf16.mxu0 0
    %1103 = vmatpush1.bf16.msra.mxu0 0
    %1104 = vmatprep.subr.bf16.mxu0 0
    %1105 = vmatpush1.bf16.msra.mxu0 0
    %1106 = vmatprep.mubr.bf16.mxu0 0
    %1107 = vmatmul.mubr.bf16.gmra.mrb[0].mxu0 %v646
    %v1108 = vpop.f32.mrb[0].mxu0
    %v1109 = vadd.f32 0.0, %v1108
    %v1110 = vpop.f32.mrb[0].mxu0
    %v1111 = vadd.f32 0.0, %v1110
    %v1112 = vpop.f32.mrb[0].mxu0
    %v1113 = vpop.f32.mrb[0].mxu0
    %1114 = vdwg.mxu0
    %1115 = vmatprep.subr.bf16.mxu0 %v475
    %1116 = vmatpush1.bf16.msra.mxu0 %v474
    %1117 = vmatprep.subr.bf16.mxu0 %v479
    %1118 = vmatpush1.bf16.msra.mxu0 %v478
    %1119 = vmatprep.subr.bf16.mxu0 %v483
    %1120 = vmatpush1.bf16.msra.mxu0 %v482
    %1121 = vmatprep.subr.bf16.mxu0 %v487
    %1122 = vmatpush1.bf16.msra.mxu0 %v486
    %1123 = vmatprep.subr.bf16.mxu0 %v491
    %1124 = vmatpush1.bf16.msra.mxu0 %v490
    %1125 = vmatprep.subr.bf16.mxu0 %v495
    %1126 = vmatpush1.bf16.msra.mxu0 %v494
    %1127 = vmatprep.subr.bf16.mxu0 %v499
    %1128 = vmatpush1.bf16.msra.mxu0 %v498
    %1129 = vmatprep.subr.bf16.mxu0 %v503
    %1130 = vmatpush1.bf16.msra.mxu0 %v502
    %1131 = vmatprep.subr.bf16.mxu0 0
    %1132 = vmatpush1.bf16.msra.mxu0 0
    %1133 = vmatprep.subr.bf16.mxu0 0
    %1134 = vmatpush1.bf16.msra.mxu0 0
    %1135 = vmatprep.subr.bf16.mxu0 0
    %1136 = vmatpush1.bf16.msra.mxu0 0
    %1137 = vmatprep.subr.bf16.mxu0 0
    %1138 = vmatpush1.bf16.msra.mxu0 0
    %1139 = vmatprep.subr.bf16.mxu0 0
    %1140 = vmatpush1.bf16.msra.mxu0 0
    %1141 = vmatprep.subr.bf16.mxu0 0
    %1142 = vmatpush1.bf16.msra.mxu0 0
    %1143 = vmatprep.subr.bf16.mxu0 0
    %1144 = vmatpush1.bf16.msra.mxu0 0
    %1145 = vmatprep.subr.bf16.mxu0 0
    %1146 = vmatpush1.bf16.msra.mxu0 0
    %1147 = vmatprep.mubr.bf16.mxu0 0
    %1148 = vmatmul.mubr.bf16.gmra.mrb[0].mxu0 %v646
    %v1149 = vpop.f32.mrb[0].mxu0
    %v1150 = vadd.f32 0.0, %v1149
    %v1151 = vpop.f32.mrb[0].mxu0
    %v1152 = vadd.f32 0.0, %v1151
    %v1153 = vpop.f32.mrb[0].mxu0
    %v1154 = vpop.f32.mrb[0].mxu0
    %1155 = vdwg.mxu0
    %v1160 = vrot.slane %v1109, 6
    %v1161 = vrot.slane %v1111, 6
    %v1162 = vrot.slane %v1150, 6
    %v1163 = vrot.slane %v1152, 6
    %v1168 = vadd.f32 %v207, %v1160
    %v1169 = vadd.f32 %v209, %v1161
    %v1170 = vadd.f32 %v250, %v1162
    %v1171 = vadd.f32 %v252, %v1163
    %v1172 = vxor.u32 %v1168, 2147483648
    %v1173 = vmul.f32 %v1172, 1.442695
    %v1174 = vpow.pop %v1173
    %v1175 = vadd.f32 %v1174, 1.0
    %v1176 = vrcp.pop %v1175
    %v1177 = vmul.f32 1.0, %v1176
    %v1178 = vxor.u32 %v1169, 2147483648
    %v1179 = vmul.f32 %v1178, 1.442695
    %v1180 = vpow.pop %v1179
    %v1181 = vadd.f32 %v1180, 1.0
    %v1182 = vrcp.pop %v1181
    %v1183 = vmul.f32 1.0, %v1182
    %v1184 = vtanh.pop %v1170
    %v1185 = vxor.u32 %v1171, 2147483648
    %v1186 = vmul.f32 %v1185, 1.442695
    %v1187 = vpow.pop %v1186
    %v1188 = vadd.f32 %v1187, 1.0
    %v1189 = vrcp.pop %v1188
    %v1190 = vmul.f32 1.0, %v1189
    %v1192 = vrot.slane %v643, 6
    %v1194 = vmul.f32 %v1183, %v1192
    %v1195 = vmul.f32 %v1177, %v1184
    %v1196 = vadd.f32 %v1194, %v1195
    %v1197 = vtanh.pop %v1196
    %v1198 = vmul.f32 %v1190, %v1197
    %v1200 = vrot.slane %v1073, 6
    %v1202 = vpack.c.bf16 %v1198, %v1198
    %v1203 = vpack.c.bf16 %v1200, %v1200
    %v1206 = vrot.slane %v1202, 1
    %v1207 = vrot.slane %v1203, 1
    %1210 = vmatprep.subr.bf16.mxu0 %v841
    %1211 = vmatpush1.bf16.msra.mxu0 %v840
    %1212 = vmatprep.subr.bf16.mxu0 %v845
    %1213 = vmatpush1.bf16.msra.mxu0 %v844
    %1214 = vmatprep.subr.bf16.mxu0 %v849
    %1215 = vmatpush1.bf16.msra.mxu0 %v848
    %1216 = vmatprep.subr.bf16.mxu0 %v853
    %1217 = vmatpush1.bf16.msra.mxu0 %v852
    %1218 = vmatprep.subr.bf16.mxu0 %v857
    %1219 = vmatpush1.bf16.msra.mxu0 %v856
    %1220 = vmatprep.subr.bf16.mxu0 %v861
    %1221 = vmatpush1.bf16.msra.mxu0 %v860
    %1222 = vmatprep.subr.bf16.mxu0 %v865
    %1223 = vmatpush1.bf16.msra.mxu0 %v864
    %1224 = vmatprep.subr.bf16.mxu0 %v869
    %1225 = vmatpush1.bf16.msra.mxu0 %v868
    %1226 = vmatprep.subr.bf16.mxu0 %v873
    %1227 = vmatpush1.bf16.msra.mxu0 %v872
    %1228 = vmatprep.subr.bf16.mxu0 %v877
    %1229 = vmatpush1.bf16.msra.mxu0 %v876
    %1230 = vmatprep.subr.bf16.mxu0 %v881
    %1231 = vmatpush1.bf16.msra.mxu0 %v880
    %1232 = vmatprep.subr.bf16.mxu0 %v885
    %1233 = vmatpush1.bf16.msra.mxu0 %v884
    %1234 = vmatprep.subr.bf16.mxu0 %v889
    %1235 = vmatpush1.bf16.msra.mxu0 %v888
    %1236 = vmatprep.subr.bf16.mxu0 %v893
    %1237 = vmatpush1.bf16.msra.mxu0 %v892
    %1238 = vmatprep.subr.bf16.mxu0 %v897
    %1239 = vmatpush1.bf16.msra.mxu0 %v896
    %1240 = vmatprep.subr.bf16.mxu0 %v901
    %1241 = vmatpush1.bf16.msra.mxu0 %v900
    %1242 = vmatprep.mubr.bf16.mxu0 %v1207
    %1243 = vmatmul.mubr.bf16.gmra.mrb[0].mxu0 %v1206
    %v1244 = vpop.f32.mrb[0].mxu0
    %v1245 = vadd.f32 %v359, %v1244
    %v1246 = vpop.f32.mrb[0].mxu0
    %v1247 = vadd.f32 %v363, %v1246
    %v1248 = vpop.f32.mrb[0].mxu0
    %v1249 = vpop.f32.mrb[0].mxu0
    %1250 = vdwg.mxu0
    %1251 = vmatprep.subr.bf16.mxu0 %v843
    %1252 = vmatpush1.bf16.msra.mxu0 %v842
    %1253 = vmatprep.subr.bf16.mxu0 %v847
    %1254 = vmatpush1.bf16.msra.mxu0 %v846
    %1255 = vmatprep.subr.bf16.mxu0 %v851
    %1256 = vmatpush1.bf16.msra.mxu0 %v850
    %1257 = vmatprep.subr.bf16.mxu0 %v855
    %1258 = vmatpush1.bf16.msra.mxu0 %v854
    %1259 = vmatprep.subr.bf16.mxu0 %v859
    %1260 = vmatpush1.bf16.msra.mxu0 %v858
    %1261 = vmatprep.subr.bf16.mxu0 %v863
    %1262 = vmatpush1.bf16.msra.mxu0 %v862
    %1263 = vmatprep.subr.bf16.mxu0 %v867
    %1264 = vmatpush1.bf16.msra.mxu0 %v866
    %1265 = vmatprep.subr.bf16.mxu0 %v871
    %1266 = vmatpush1.bf16.msra.mxu0 %v870
    %1267 = vmatprep.subr.bf16.mxu0 %v875
    %1268 = vmatpush1.bf16.msra.mxu0 %v874
    %1269 = vmatprep.subr.bf16.mxu0 %v879
    %1270 = vmatpush1.bf16.msra.mxu0 %v878
    %1271 = vmatprep.subr.bf16.mxu0 %v883
    %1272 = vmatpush1.bf16.msra.mxu0 %v882
    %1273 = vmatprep.subr.bf16.mxu0 %v887
    %1274 = vmatpush1.bf16.msra.mxu0 %v886
    %1275 = vmatprep.subr.bf16.mxu0 %v891
    %1276 = vmatpush1.bf16.msra.mxu0 %v890
    %1277 = vmatprep.subr.bf16.mxu0 %v895
    %1278 = vmatpush1.bf16.msra.mxu0 %v894
    %1279 = vmatprep.subr.bf16.mxu0 %v899
    %1280 = vmatpush1.bf16.msra.mxu0 %v898
    %1281 = vmatprep.subr.bf16.mxu0 %v903
    %1282 = vmatpush1.bf16.msra.mxu0 %v902
    %1283 = vmatprep.mubr.bf16.mxu0 %v1207
    %1284 = vmatmul.mubr.bf16.gmra.mrb[0].mxu0 %v1206
    %v1285 = vpop.f32.mrb[0].mxu0
    %v1286 = vadd.f32 %v367, %v1285
    %v1287 = vpop.f32.mrb[0].mxu0
    %v1288 = vadd.f32 %v371, %v1287
    %v1289 = vpop.f32.mrb[0].mxu0
    %v1290 = vpop.f32.mrb[0].mxu0
    %1291 = vdwg.mxu0
    %v1292 = vxor.u32 %v1245, 2147483648
    %v1293 = vmul.f32 %v1292, 1.442695
    %v1294 = vpow.pop %v1293
    %v1295 = vadd.f32 %v1294, 1.0
    %v1296 = vrcp.pop %v1295
    %v1297 = vmul.f32 1.0, %v1296
    %v1298 = vxor.u32 %v1247, 2147483648
    %v1299 = vmul.f32 %v1298, 1.442695
    %v1300 = vpow.pop %v1299
    %v1301 = vadd.f32 %v1300, 1.0
    %v1302 = vrcp.pop %v1301
    %v1303 = vmul.f32 1.0, %v1302
    %v1304 = vtanh.pop %v1286
    %v1305 = vxor.u32 %v1288, 2147483648
    %v1306 = vmul.f32 %v1305, 1.442695
    %v1307 = vpow.pop %v1306
    %v1308 = vadd.f32 %v1307, 1.0
    %v1309 = vrcp.pop %v1308
    %v1310 = vmul.f32 1.0, %v1309
    %v1311 = vmul.f32 %v1303, %v1071
    %v1312 = vmul.f32 %v1297, %v1304
    %v1313 = vadd.f32 %v1311, %v1312
    %v1314 = vtanh.pop %v1313
    %v1315 = vmul.f32 %v1310, %v1314
    %1316 = vmatprep.subr.bf16.mxu0 %v473
    %1317 = vmatpush1.bf16.msra.mxu0 %v472
    %1318 = vmatprep.subr.bf16.mxu0 %v477
    %1319 = vmatpush1.bf16.msra.mxu0 %v476
    %1320 = vmatprep.subr.bf16.mxu0 %v481
    %1321 = vmatpush1.bf16.msra.mxu0 %v480
    %1322 = vmatprep.subr.bf16.mxu0 %v485
    %1323 = vmatpush1.bf16.msra.mxu0 %v484
    %1324 = vmatprep.subr.bf16.mxu0 %v489
    %1325 = vmatpush1.bf16.msra.mxu0 %v488
    %1326 = vmatprep.subr.bf16.mxu0 %v493
    %1327 = vmatpush1.bf16.msra.mxu0 %v492
    %1328 = vmatprep.subr.bf16.mxu0 %v497
    %1329 = vmatpush1.bf16.msra.mxu0 %v496
    %1330 = vmatprep.subr.bf16.mxu0 %v501
    %1331 = vmatpush1.bf16.msra.mxu0 %v500
    %1332 = vmatprep.subr.bf16.mxu0 0
    %1333 = vmatpush1.bf16.msra.mxu0 0
    %1334 = vmatprep.subr.bf16.mxu0 0
    %1335 = vmatpush1.bf16.msra.mxu0 0
    %1336 = vmatprep.subr.bf16.mxu0 0
    %1337 = vmatpush1.bf16.msra.mxu0 0
    %1338 = vmatprep.subr.bf16.mxu0 0
    %1339 = vmatpush1.bf16.msra.mxu0 0
    %1340 = vmatprep.subr.bf16.mxu0 0
    %1341 = vmatpush1.bf16.msra.mxu0 0
    %1342 = vmatprep.subr.bf16.mxu0 0
    %1343 = vmatpush1.bf16.msra.mxu0 0
    %1344 = vmatprep.subr.bf16.mxu0 0
    %1345 = vmatpush1.bf16.msra.mxu0 0
    %1346 = vmatprep.subr.bf16.mxu0 0
    %1347 = vmatpush1.bf16.msra.mxu0 0
    %1348 = vmatprep.mubr.bf16.mxu0 0
    %1349 = vmatmul.mubr.bf16.gmra.mrb[0].mxu0 %v1206
    %v1350 = vpop.f32.mrb[0].mxu0
    %v1351 = vadd.f32 0.0, %v1350
    %v1352 = vpop.f32.mrb[0].mxu0
    %v1353 = vadd.f32 0.0, %v1352
    %v1354 = vpop.f32.mrb[0].mxu0
    %v1355 = vpop.f32.mrb[0].mxu0
    %1356 = vdwg.mxu0
    %1357 = vmatprep.subr.bf16.mxu0 %v475
    %1358 = vmatpush1.bf16.msra.mxu0 %v474
    %1359 = vmatprep.subr.bf16.mxu0 %v479
    %1360 = vmatpush1.bf16.msra.mxu0 %v478
    %1361 = vmatprep.subr.bf16.mxu0 %v483
    %1362 = vmatpush1.bf16.msra.mxu0 %v482
    %1363 = vmatprep.subr.bf16.mxu0 %v487
    %1364 = vmatpush1.bf16.msra.mxu0 %v486
    %1365 = vmatprep.subr.bf16.mxu0 %v491
    %1366 = vmatpush1.bf16.msra.mxu0 %v490
    %1367 = vmatprep.subr.bf16.mxu0 %v495
    %1368 = vmatpush1.bf16.msra.mxu0 %v494
    %1369 = vmatprep.subr.bf16.mxu0 %v499
    %1370 = vmatpush1.bf16.msra.mxu0 %v498
    %1371 = vmatprep.subr.bf16.mxu0 %v503
    %1372 = vmatpush1.bf16.msra.mxu0 %v502
    %1373 = vmatprep.subr.bf16.mxu0 0
    %1374 = vmatpush1.bf16.msra.mxu0 0
    %1375 = vmatprep.subr.bf16.mxu0 0
    %1376 = vmatpush1.bf16.msra.mxu0 0
    %1377 = vmatprep.subr.bf16.mxu0 0
    %1378 = vmatpush1.bf16.msra.mxu0 0
    %1379 = vmatprep.subr.bf16.mxu0 0
    %1380 = vmatpush1.bf16.msra.mxu0 0
    %1381 = vmatprep.subr.bf16.mxu0 0
    %1382 = vmatpush1.bf16.msra.mxu0 0
    %1383 = vmatprep.subr.bf16.mxu0 0
    %1384 = vmatpush1.bf16.msra.mxu0 0
    %1385 = vmatprep.subr.bf16.mxu0 0
    %1386 = vmatpush1.bf16.msra.mxu0 0
    %1387 = vmatprep.subr.bf16.mxu0 0
    %1388 = vmatpush1.bf16.msra.mxu0 0
    %1389 = vmatprep.mubr.bf16.mxu0 0
    %1390 = vmatmul.mubr.bf16.gmra.mrb[0].mxu0 %v1206
    %v1391 = vpop.f32.mrb[0].mxu0
    %v1392 = vadd.f32 0.0, %v1391
    %v1393 = vpop.f32.mrb[0].mxu0
    %v1394 = vadd.f32 0.0, %v1393
    %v1395 = vpop.f32.mrb[0].mxu0
    %v1396 = vpop.f32.mrb[0].mxu0
    %1397 = vdwg.mxu0
    %v1402 = vrot.slane %v1351, 4
    %v1403 = vrot.slane %v1353, 4
    %v1404 = vrot.slane %v1392, 4
    %v1405 = vrot.slane %v1394, 4
    %v1410 = vadd.f32 %v207, %v1402
    %v1411 = vadd.f32 %v209, %v1403
    %v1412 = vadd.f32 %v250, %v1404
    %v1413 = vadd.f32 %v252, %v1405
    %v1414 = vxor.u32 %v1410, 2147483648
    %v1415 = vmul.f32 %v1414, 1.442695
    %v1416 = vpow.pop %v1415
    %v1417 = vadd.f32 %v1416, 1.0
    %v1418 = vrcp.pop %v1417
    %v1419 = vmul.f32 1.0, %v1418
    %v1420 = vxor.u32 %v1411, 2147483648
    %v1421 = vmul.f32 %v1420, 1.442695
    %v1422 = vpow.pop %v1421
    %v1423 = vadd.f32 %v1422, 1.0
    %v1424 = vrcp.pop %v1423
    %v1425 = vmul.f32 1.0, %v1424
    %v1426 = vtanh.pop %v1412
    %v1427 = vxor.u32 %v1413, 2147483648
    %v1428 = vmul.f32 %v1427, 1.442695
    %v1429 = vpow.pop %v1428
    %v1430 = vadd.f32 %v1429, 1.0
    %v1431 = vrcp.pop %v1430
    %v1432 = vmul.f32 1.0, %v1431
    %v1434 = vrot.slane %v1196, 6
    %v1436 = vmul.f32 %v1425, %v1434
    %v1437 = vmul.f32 %v1419, %v1426
    %v1438 = vadd.f32 %v1436, %v1437
    %v1439 = vtanh.pop %v1438
    %v1440 = vmul.f32 %v1432, %v1439
    %v1442 = vrot.slane %v1315, 4
    %v1444 = vpack.c.bf16 %v1440, %v1440
    %v1445 = vpack.c.bf16 %v1442, %v1442
    %v1448 = vrot.slane %v1444, 2
    %v1449 = vrot.slane %v1445, 2
    %1452 = vmatprep.subr.bf16.mxu0 %v841
    %1453 = vmatpush1.bf16.msra.mxu0 %v840
    %1454 = vmatprep.subr.bf16.mxu0 %v845
    %1455 = vmatpush1.bf16.msra.mxu0 %v844
    %1456 = vmatprep.subr.bf16.mxu0 %v849
    %1457 = vmatpush1.bf16.msra.mxu0 %v848
    %1458 = vmatprep.subr.bf16.mxu0 %v853
    %1459 = vmatpush1.bf16.msra.mxu0 %v852
    %1460 = vmatprep.subr.bf16.mxu0 %v857
    %1461 = vmatpush1.bf16.msra.mxu0 %v856
    %1462 = vmatprep.subr.bf16.mxu0 %v861
    %1463 = vmatpush1.bf16.msra.mxu0 %v860
    %1464 = vmatprep.subr.bf16.mxu0 %v865
    %1465 = vmatpush1.bf16.msra.mxu0 %v864
    %1466 = vmatprep.subr.bf16.mxu0 %v869
    %1467 = vmatpush1.bf16.msra.mxu0 %v868
    %1468 = vmatprep.subr.bf16.mxu0 %v873
    %1469 = vmatpush1.bf16.msra.mxu0 %v872
    %1470 = vmatprep.subr.bf16.mxu0 %v877
    %1471 = vmatpush1.bf16.msra.mxu0 %v876
    %1472 = vmatprep.subr.bf16.mxu0 %v881
    %1473 = vmatpush1.bf16.msra.mxu0 %v880
    %1474 = vmatprep.subr.bf16.mxu0 %v885
    %1475 = vmatpush1.bf16.msra.mxu0 %v884
    %1476 = vmatprep.subr.bf16.mxu0 %v889
    %1477 = vmatpush1.bf16.msra.mxu0 %v888
    %1478 = vmatprep.subr.bf16.mxu0 %v893
    %1479 = vmatpush1.bf16.msra.mxu0 %v892
    %1480 = vmatprep.subr.bf16.mxu0 %v897
    %1481 = vmatpush1.bf16.msra.mxu0 %v896
    %1482 = vmatprep.subr.bf16.mxu0 %v901
    %1483 = vmatpush1.bf16.msra.mxu0 %v900
    %1484 = vmatprep.mubr.bf16.mxu0 %v1449
    %1485 = vmatmul.mubr.bf16.gmra.mrb[0].mxu0 %v1448
    %v1486 = vpop.f32.mrb[0].mxu0
    %v1487 = vadd.f32 %v359, %v1486
    %v1488 = vpop.f32.mrb[0].mxu0
    %v1489 = vadd.f32 %v363, %v1488
    %v1490 = vpop.f32.mrb[0].mxu0
    %v1491 = vpop.f32.mrb[0].mxu0
    %1492 = vdwg.mxu0
    %1493 = vmatprep.subr.bf16.mxu0 %v843
    %1494 = vmatpush1.bf16.msra.mxu0 %v842
    %1495 = vmatprep.subr.bf16.mxu0 %v847
    %1496 = vmatpush1.bf16.msra.mxu0 %v846
    %1497 = vmatprep.subr.bf16.mxu0 %v851
    %1498 = vmatpush1.bf16.msra.mxu0 %v850
    %1499 = vmatprep.subr.bf16.mxu0 %v855
    %1500 = vmatpush1.bf16.msra.mxu0 %v854
    %1501 = vmatprep.subr.bf16.mxu0 %v859
    %1502 = vmatpush1.bf16.msra.mxu0 %v858
    %1503 = vmatprep.subr.bf16.mxu0 %v863
    %1504 = vmatpush1.bf16.msra.mxu0 %v862
    %1505 = vmatprep.subr.bf16.mxu0 %v867
    %1506 = vmatpush1.bf16.msra.mxu0 %v866
    %1507 = vmatprep.subr.bf16.mxu0 %v871
    %1508 = vmatpush1.bf16.msra.mxu0 %v870
    %1509 = vmatprep.subr.bf16.mxu0 %v875
    %1510 = vmatpush1.bf16.msra.mxu0 %v874
    %1511 = vmatprep.subr.bf16.mxu0 %v879
    %1512 = vmatpush1.bf16.msra.mxu0 %v878
    %1513 = vmatprep.subr.bf16.mxu0 %v883
    %1514 = vmatpush1.bf16.msra.mxu0 %v882
    %1515 = vmatprep.subr.bf16.mxu0 %v887
    %1516 = vmatpush1.bf16.msra.mxu0 %v886
    %1517 = vmatprep.subr.bf16.mxu0 %v891
    %1518 = vmatpush1.bf16.msra.mxu0 %v890
    %1519 = vmatprep.subr.bf16.mxu0 %v895
    %1520 = vmatpush1.bf16.msra.mxu0 %v894
    %1521 = vmatprep.subr.bf16.mxu0 %v899
    %1522 = vmatpush1.bf16.msra.mxu0 %v898
    %1523 = vmatprep.subr.bf16.mxu0 %v903
    %1524 = vmatpush1.bf16.msra.mxu0 %v902
    %1525 = vmatprep.mubr.bf16.mxu0 %v1449
    %1526 = vmatmul.mubr.bf16.gmra.mrb[0].mxu0 %v1448
    %v1527 = vpop.f32.mrb[0].mxu0
    %v1528 = vadd.f32 %v367, %v1527
    %v1529 = vpop.f32.mrb[0].mxu0
    %v1530 = vadd.f32 %v371, %v1529
    %v1531 = vpop.f32.mrb[0].mxu0
    %v1532 = vpop.f32.mrb[0].mxu0
    %1533 = vdwg.mxu0
    %v1534 = vxor.u32 %v1487, 2147483648
    %v1535 = vmul.f32 %v1534, 1.442695
    %v1536 = vpow.pop %v1535
    %v1537 = vadd.f32 %v1536, 1.0
    %v1538 = vrcp.pop %v1537
    %v1539 = vmul.f32 1.0, %v1538
    %v1540 = vxor.u32 %v1489, 2147483648
    %v1541 = vmul.f32 %v1540, 1.442695
    %v1542 = vpow.pop %v1541
    %v1543 = vadd.f32 %v1542, 1.0
    %v1544 = vrcp.pop %v1543
    %v1545 = vmul.f32 1.0, %v1544
    %v1546 = vtanh.pop %v1528
    %v1547 = vxor.u32 %v1530, 2147483648
    %v1548 = vmul.f32 %v1547, 1.442695
    %v1549 = vpow.pop %v1548
    %v1550 = vadd.f32 %v1549, 1.0
    %v1551 = vrcp.pop %v1550
    %v1552 = vmul.f32 1.0, %v1551
    %v1553 = vmul.f32 %v1545, %v1313
    %v1554 = vmul.f32 %v1539, %v1546
    %v1555 = vadd.f32 %v1553, %v1554
    %v1556 = vtanh.pop %v1555
    %v1557 = vmul.f32 %v1552, %v1556
    %1558 = vmatprep.subr.bf16.mxu0 %v473
    %1559 = vmatpush1.bf16.msra.mxu0 %v472
    %1560 = vmatprep.subr.bf16.mxu0 %v477
    %1561 = vmatpush1.bf16.msra.mxu0 %v476
    %1562 = vmatprep.subr.bf16.mxu0 %v481
    %1563 = vmatpush1.bf16.msra.mxu0 %v480
    %1564 = vmatprep.subr.bf16.mxu0 %v485
    %1565 = vmatpush1.bf16.msra.mxu0 %v484
    %1566 = vmatprep.subr.bf16.mxu0 %v489
    %1567 = vmatpush1.bf16.msra.mxu0 %v488
    %1568 = vmatprep.subr.bf16.mxu0 %v493
    %1569 = vmatpush1.bf16.msra.mxu0 %v492
    %1570 = vmatprep.subr.bf16.mxu0 %v497
    %1571 = vmatpush1.bf16.msra.mxu0 %v496
    %1572 = vmatprep.subr.bf16.mxu0 %v501
    %1573 = vmatpush1.bf16.msra.mxu0 %v500
    %1574 = vmatprep.subr.bf16.mxu0 0
    %1575 = vmatpush1.bf16.msra.mxu0 0
    %1576 = vmatprep.subr.bf16.mxu0 0
    %1577 = vmatpush1.bf16.msra.mxu0 0
    %1578 = vmatprep.subr.bf16.mxu0 0
    %1579 = vmatpush1.bf16.msra.mxu0 0
    %1580 = vmatprep.subr.bf16.mxu0 0
    %1581 = vmatpush1.bf16.msra.mxu0 0
    %1582 = vmatprep.subr.bf16.mxu0 0
    %1583 = vmatpush1.bf16.msra.mxu0 0
    %1584 = vmatprep.subr.bf16.mxu0 0
    %1585 = vmatpush1.bf16.msra.mxu0 0
    %1586 = vmatprep.subr.bf16.mxu0 0
    %1587 = vmatpush1.bf16.msra.mxu0 0
    %1588 = vmatprep.subr.bf16.mxu0 0
    %1589 = vmatpush1.bf16.msra.mxu0 0
    %1590 = vmatprep.mubr.bf16.mxu0 0
    %1591 = vmatmul.mubr.bf16.gmra.mrb[0].mxu0 %v1448
    %v1592 = vpop.f32.mrb[0].mxu0
    %v1593 = vadd.f32 0.0, %v1592
    %v1594 = vpop.f32.mrb[0].mxu0
    %v1595 = vadd.f32 0.0, %v1594
    %v1596 = vpop.f32.mrb[0].mxu0
    %v1597 = vpop.f32.mrb[0].mxu0
    %1598 = vdwg.mxu0
    %1599 = vmatprep.subr.bf16.mxu0 %v475
    %1600 = vmatpush1.bf16.msra.mxu0 %v474
    %1601 = vmatprep.subr.bf16.mxu0 %v479
    %1602 = vmatpush1.bf16.msra.mxu0 %v478
    %1603 = vmatprep.subr.bf16.mxu0 %v483
    %1604 = vmatpush1.bf16.msra.mxu0 %v482
    %1605 = vmatprep.subr.bf16.mxu0 %v487
    %1606 = vmatpush1.bf16.msra.mxu0 %v486
    %1607 = vmatprep.subr.bf16.mxu0 %v491
    %1608 = vmatpush1.bf16.msra.mxu0 %v490
    %1609 = vmatprep.subr.bf16.mxu0 %v495
    %1610 = vmatpush1.bf16.msra.mxu0 %v494
    %1611 = vmatprep.subr.bf16.mxu0 %v499
    %1612 = vmatpush1.bf16.msra.mxu0 %v498
    %1613 = vmatprep.subr.bf16.mxu0 %v503
    %1614 = vmatpush1.bf16.msra.mxu0 %v502
    %1615 = vmatprep.subr.bf16.mxu0 0
    %1616 = vmatpush1.bf16.msra.mxu0 0
    %1617 = vmatprep.subr.bf16.mxu0 0
    %1618 = vmatpush1.bf16.msra.mxu0 0
    %1619 = vmatprep.subr.bf16.mxu0 0
    %1620 = vmatpush1.bf16.msra.mxu0 0
    %1621 = vmatprep.subr.bf16.mxu0 0
    %1622 = vmatpush1.bf16.msra.mxu0 0
    %1623 = vmatprep.subr.bf16.mxu0 0
    %1624 = vmatpush1.bf16.msra.mxu0 0
    %1625 = vmatprep.subr.bf16.mxu0 0
    %1626 = vmatpush1.bf16.msra.mxu0 0
    %1627 = vmatprep.subr.bf16.mxu0 0
    %1628 = vmatpush1.bf16.msra.mxu0 0
    %1629 = vmatprep.subr.bf16.mxu0 0
    %1630 = vmatpush1.bf16.msra.mxu0 0
    %1631 = vmatprep.mubr.bf16.mxu0 0
    %1632 = vmatmul.mubr.bf16.gmra.mrb[0].mxu0 %v1448
    %v1633 = vpop.f32.mrb[0].mxu0
    %v1634 = vadd.f32 0.0, %v1633
    %v1635 = vpop.f32.mrb[0].mxu0
    %v1636 = vadd.f32 0.0, %v1635
    %v1637 = vpop.f32.mrb[0].mxu0
    %v1638 = vpop.f32.mrb[0].mxu0
    %1639 = vdwg.mxu0
    %v1644 = vrot.slane %v1593, 2
    %v1645 = vrot.slane %v1595, 2
    %v1646 = vrot.slane %v1634, 2
    %v1647 = vrot.slane %v1636, 2
    %v1652 = vadd.f32 %v207, %v1644
    %v1653 = vadd.f32 %v209, %v1645
    %v1654 = vadd.f32 %v250, %v1646
    %v1655 = vadd.f32 %v252, %v1647
    %v1656 = vxor.u32 %v1652, 2147483648
    %v1657 = vmul.f32 %v1656, 1.442695
    %v1658 = vpow.pop %v1657
    %v1659 = vadd.f32 %v1658, 1.0
    %v1660 = vrcp.pop %v1659
    %v1661 = vmul.f32 1.0, %v1660
    %v1662 = vxor.u32 %v1653, 2147483648
    %v1663 = vmul.f32 %v1662, 1.442695
    %v1664 = vpow.pop %v1663
    %v1665 = vadd.f32 %v1664, 1.0
    %v1666 = vrcp.pop %v1665
    %v1667 = vmul.f32 1.0, %v1666
    %v1668 = vtanh.pop %v1654
    %v1669 = vxor.u32 %v1655, 2147483648
    %v1670 = vmul.f32 %v1669, 1.442695
    %v1671 = vpow.pop %v1670
    %v1672 = vadd.f32 %v1671, 1.0
    %v1673 = vrcp.pop %v1672
    %v1674 = vmul.f32 1.0, %v1673
    %v1676 = vrot.slane %v1438, 6
    %v1678 = vmul.f32 %v1667, %v1676
    %v1679 = vmul.f32 %v1661, %v1668
    %v1680 = vadd.f32 %v1678, %v1679
    %v1681 = vtanh.pop %v1680
    %v1682 = vmul.f32 %v1674, %v1681
    %v1684 = vrot.slane %v1557, 2
    %v1686 = vpack.c.bf16 %v1682, %v1682
    %v1687 = vpack.c.bf16 %v1684, %v1684
    %v1690 = vrot.slane %v1686, 3
    %v1691 = vrot.slane %v1687, 3
    %1694 = vmatprep.subr.bf16.mxu0 %v841
    %1695 = vmatpush1.bf16.msra.mxu0 %v840
    %1696 = vmatprep.subr.bf16.mxu0 %v845
    %1697 = vmatpush1.bf16.msra.mxu0 %v844
    %1698 = vmatprep.subr.bf16.mxu0 %v849
    %1699 = vmatpush1.bf16.msra.mxu0 %v848
    %1700 = vmatprep.subr.bf16.mxu0 %v853
    %1701 = vmatpush1.bf16.msra.mxu0 %v852
    %1702 = vmatprep.subr.bf16.mxu0 %v857
    %1703 = vmatpush1.bf16.msra.mxu0 %v856
    %1704 = vmatprep.subr.bf16.mxu0 %v861
    %1705 = vmatpush1.bf16.msra.mxu0 %v860
    %1706 = vmatprep.subr.bf16.mxu0 %v865
    %1707 = vmatpush1.bf16.msra.mxu0 %v864
    %1708 = vmatprep.subr.bf16.mxu0 %v869
    %1709 = vmatpush1.bf16.msra.mxu0 %v868
    %1710 = vmatprep.subr.bf16.mxu0 %v873
    %1711 = vmatpush1.bf16.msra.mxu0 %v872
    %1712 = vmatprep.subr.bf16.mxu0 %v877
    %1713 = vmatpush1.bf16.msra.mxu0 %v876
    %1714 = vmatprep.subr.bf16.mxu0 %v881
    %1715 = vmatpush1.bf16.msra.mxu0 %v880
    %1716 = vmatprep.subr.bf16.mxu0 %v885
    %1717 = vmatpush1.bf16.msra.mxu0 %v884
    %1718 = vmatprep.subr.bf16.mxu0 %v889
    %1719 = vmatpush1.bf16.msra.mxu0 %v888
    %1720 = vmatprep.subr.bf16.mxu0 %v893
    %1721 = vmatpush1.bf16.msra.mxu0 %v892
    %1722 = vmatprep.subr.bf16.mxu0 %v897
    %1723 = vmatpush1.bf16.msra.mxu0 %v896
    %1724 = vmatprep.subr.bf16.mxu0 %v901
    %1725 = vmatpush1.bf16.msra.mxu0 %v900
    %1726 = vmatprep.mubr.bf16.mxu0 %v1691
    %1727 = vmatmul.mubr.bf16.gmra.mrb[0].mxu0 %v1690
    %v1728 = vpop.f32.mrb[0].mxu0
    %v1729 = vadd.f32 %v359, %v1728
    %v1730 = vpop.f32.mrb[0].mxu0
    %v1731 = vadd.f32 %v363, %v1730
    %v1732 = vpop.f32.mrb[0].mxu0
    %v1733 = vpop.f32.mrb[0].mxu0
    %1734 = vdwg.mxu0
    %1735 = vmatprep.subr.bf16.mxu0 %v843
    %1736 = vmatpush1.bf16.msra.mxu0 %v842
    %1737 = vmatprep.subr.bf16.mxu0 %v847
    %1738 = vmatpush1.bf16.msra.mxu0 %v846
    %1739 = vmatprep.subr.bf16.mxu0 %v851
    %1740 = vmatpush1.bf16.msra.mxu0 %v850
    %1741 = vmatprep.subr.bf16.mxu0 %v855
    %1742 = vmatpush1.bf16.msra.mxu0 %v854
    %1743 = vmatprep.subr.bf16.mxu0 %v859
    %1744 = vmatpush1.bf16.msra.mxu0 %v858
    %1745 = vmatprep.subr.bf16.mxu0 %v863
    %1746 = vmatpush1.bf16.msra.mxu0 %v862
    %1747 = vmatprep.subr.bf16.mxu0 %v867
    %1748 = vmatpush1.bf16.msra.mxu0 %v866
    %1749 = vmatprep.subr.bf16.mxu0 %v871
    %1750 = vmatpush1.bf16.msra.mxu0 %v870
    %1751 = vmatprep.subr.bf16.mxu0 %v875
    %1752 = vmatpush1.bf16.msra.mxu0 %v874
    %1753 = vmatprep.subr.bf16.mxu0 %v879
    %1754 = vmatpush1.bf16.msra.mxu0 %v878
    %1755 = vmatprep.subr.bf16.mxu0 %v883
    %1756 = vmatpush1.bf16.msra.mxu0 %v882
    %1757 = vmatprep.subr.bf16.mxu0 %v887
    %1758 = vmatpush1.bf16.msra.mxu0 %v886
    %1759 = vmatprep.subr.bf16.mxu0 %v891
    %1760 = vmatpush1.bf16.msra.mxu0 %v890
    %1761 = vmatprep.subr.bf16.mxu0 %v895
    %1762 = vmatpush1.bf16.msra.mxu0 %v894
    %1763 = vmatprep.subr.bf16.mxu0 %v899
    %1764 = vmatpush1.bf16.msra.mxu0 %v898
    %1765 = vmatprep.subr.bf16.mxu0 %v903
    %1766 = vmatpush1.bf16.msra.mxu0 %v902
    %1767 = vmatprep.mubr.bf16.mxu0 %v1691
    %1768 = vmatmul.mubr.bf16.gmra.mrb[0].mxu0 %v1690
    %v1769 = vpop.f32.mrb[0].mxu0
    %v1770 = vadd.f32 %v367, %v1769
    %v1771 = vpop.f32.mrb[0].mxu0
    %v1772 = vadd.f32 %v371, %v1771
    %v1773 = vpop.f32.mrb[0].mxu0
    %v1774 = vpop.f32.mrb[0].mxu0
    %1775 = vdwg.mxu0
    %v1776 = vxor.u32 %v1729, 2147483648
    %v1777 = vmul.f32 %v1776, 1.442695
    %v1778 = vpow.pop %v1777
    %v1779 = vadd.f32 %v1778, 1.0
    %v1780 = vrcp.pop %v1779
    %v1781 = vmul.f32 1.0, %v1780
    %v1782 = vxor.u32 %v1731, 2147483648
    %v1783 = vmul.f32 %v1782, 1.442695
    %v1784 = vpow.pop %v1783
    %v1785 = vadd.f32 %v1784, 1.0
    %v1786 = vrcp.pop %v1785
    %v1787 = vmul.f32 1.0, %v1786
    %v1788 = vtanh.pop %v1770
    %v1789 = vxor.u32 %v1772, 2147483648
    %v1790 = vmul.f32 %v1789, 1.442695
    %v1791 = vpow.pop %v1790
    %v1792 = vadd.f32 %v1791, 1.0
    %v1793 = vrcp.pop %v1792
    %v1794 = vmul.f32 1.0, %v1793
    %v1795 = vmul.f32 %v1787, %v1555
    %v1796 = vmul.f32 %v1781, %v1788
    %v1797 = vadd.f32 %v1795, %v1796
    %v1798 = vtanh.pop %v1797
    %v1799 = vmul.f32 %v1794, %v1798
    %1800 = vmatprep.subr.bf16.mxu0 %v473
    %1801 = vmatpush1.bf16.msra.mxu0 %v472
    %1802 = vmatprep.subr.bf16.mxu0 %v477
    %1803 = vmatpush1.bf16.msra.mxu0 %v476
    %1804 = vmatprep.subr.bf16.mxu0 %v481
    %1805 = vmatpush1.bf16.msra.mxu0 %v480
    %1806 = vmatprep.subr.bf16.mxu0 %v485
    %1807 = vmatpush1.bf16.msra.mxu0 %v484
    %1808 = vmatprep.subr.bf16.mxu0 %v489
    %1809 = vmatpush1.bf16.msra.mxu0 %v488
    %1810 = vmatprep.subr.bf16.mxu0 %v493
    %1811 = vmatpush1.bf16.msra.mxu0 %v492
    %1812 = vmatprep.subr.bf16.mxu0 %v497
    %1813 = vmatpush1.bf16.msra.mxu0 %v496
    %1814 = vmatprep.subr.bf16.mxu0 %v501
    %1815 = vmatpush1.bf16.msra.mxu0 %v500
    %1816 = vmatprep.subr.bf16.mxu0 0
    %1817 = vmatpush1.bf16.msra.mxu0 0
    %1818 = vmatprep.subr.bf16.mxu0 0
    %1819 = vmatpush1.bf16.msra.mxu0 0
    %1820 = vmatprep.subr.bf16.mxu0 0
    %1821 = vmatpush1.bf16.msra.mxu0 0
    %1822 = vmatprep.subr.bf16.mxu0 0
    %1823 = vmatpush1.bf16.msra.mxu0 0
    %1824 = vmatprep.subr.bf16.mxu0 0
    %1825 = vmatpush1.bf16.msra.mxu0 0
    %1826 = vmatprep.subr.bf16.mxu0 0
    %1827 = vmatpush1.bf16.msra.mxu0 0
    %1828 = vmatprep.subr.bf16.mxu0 0
    %1829 = vmatpush1.bf16.msra.mxu0 0
    %1830 = vmatprep.subr.bf16.mxu0 0
    %1831 = vmatpush1.bf16.msra.mxu0 0
    %1832 = vmatprep.mubr.bf16.mxu0 0
    %1833 = vmatmul.mubr.bf16.gmra.mrb[0].mxu0 %v1690
    %v1834 = vpop.f32.mrb[0].mxu0
    %v1835 = vadd.f32 0.0, %v1834
    %v1836 = vpop.f32.mrb[0].mxu0
    %v1837 = vadd.f32 0.0, %v1836
    %v1838 = vpop.f32.mrb[0].mxu0
    %v1839 = vpop.f32.mrb[0].mxu0
    %1840 = vdwg.mxu0
    %1841 = vmatprep.subr.bf16.mxu0 %v475
    %1842 = vmatpush1.bf16.msra.mxu0 %v474
    %1843 = vmatprep.subr.bf16.mxu0 %v479
    %1844 = vmatpush1.bf16.msra.mxu0 %v478
    %1845 = vmatprep.subr.bf16.mxu0 %v483
    %1846 = vmatpush1.bf16.msra.mxu0 %v482
    %1847 = vmatprep.subr.bf16.mxu0 %v487
    %1848 = vmatpush1.bf16.msra.mxu0 %v486
    %1849 = vmatprep.subr.bf16.mxu0 %v491
    %1850 = vmatpush1.bf16.msra.mxu0 %v490
    %1851 = vmatprep.subr.bf16.mxu0 %v495
    %1852 = vmatpush1.bf16.msra.mxu0 %v494
    %1853 = vmatprep.subr.bf16.mxu0 %v499
    %1854 = vmatpush1.bf16.msra.mxu0 %v498
    %1855 = vmatprep.subr.bf16.mxu0 %v503
    %1856 = vmatpush1.bf16.msra.mxu0 %v502
    %1857 = vmatprep.subr.bf16.mxu0 0
    %1858 = vmatpush1.bf16.msra.mxu0 0
    %1859 = vmatprep.subr.bf16.mxu0 0
    %1860 = vmatpush1.bf16.msra.mxu0 0
    %1861 = vmatprep.subr.bf16.mxu0 0
    %1862 = vmatpush1.bf16.msra.mxu0 0
    %1863 = vmatprep.subr.bf16.mxu0 0
    %1864 = vmatpush1.bf16.msra.mxu0 0
    %1865 = vmatprep.subr.bf16.mxu0 0
    %1866 = vmatpush1.bf16.msra.mxu0 0
    %1867 = vmatprep.subr.bf16.mxu0 0
    %1868 = vmatpush1.bf16.msra.mxu0 0
    %1869 = vmatprep.subr.bf16.mxu0 0
    %1870 = vmatpush1.bf16.msra.mxu0 0
    %1871 = vmatprep.subr.bf16.mxu0 0
    %1872 = vmatpush1.bf16.msra.mxu0 0
    %1873 = vmatprep.mubr.bf16.mxu0 0
    %1874 = vmatmul.mubr.bf16.gmra.mrb[0].mxu0 %v1690
    %v1875 = vpop.f32.mrb[0].mxu0
    %v1876 = vadd.f32 0.0, %v1875
    %v1877 = vpop.f32.mrb[0].mxu0
    %v1878 = vadd.f32 0.0, %v1877
    %v1879 = vpop.f32.mrb[0].mxu0
    %v1880 = vpop.f32.mrb[0].mxu0
    %1881 = vdwg.mxu0
    %v1882 = vadd.f32 %v211, %v1835
    %v1883 = vadd.f32 %v213, %v1837
    %v1884 = vadd.f32 %v254, %v1876
    %v1885 = vadd.f32 %v256, %v1878
    %v1886 = vxor.u32 %v1882, 2147483648
    %v1887 = vmul.f32 %v1886, 1.442695
    %v1888 = vpow.pop %v1887
    %v1889 = vadd.f32 %v1888, 1.0
    %v1890 = vrcp.pop %v1889
    %v1891 = vmul.f32 1.0, %v1890
    %v1892 = vxor.u32 %v1883, 2147483648
    %v1893 = vmul.f32 %v1892, 1.442695
    %v1894 = vpow.pop %v1893
    %v1895 = vadd.f32 %v1894, 1.0
    %v1896 = vrcp.pop %v1895
    %v1897 = vmul.f32 1.0, %v1896
    %v1898 = vtanh.pop %v1884
    %v1899 = vxor.u32 %v1885, 2147483648
    %v1900 = vmul.f32 %v1899, 1.442695
    %v1901 = vpow.pop %v1900
    %v1902 = vadd.f32 %v1901, 1.0
    %v1903 = vrcp.pop %v1902
    %v1904 = vmul.f32 1.0, %v1903
    %v1906 = vrot.slane %v1680, 6
    %v1908 = vmul.f32 %v1897, %v1906
    %v1909 = vmul.f32 %v1891, %v1898
    %v1910 = vadd.f32 %v1908, %v1909
    %v1911 = vtanh.pop %v1910
    %v1912 = vmul.f32 %v1904, %v1911
    %v1913 = vpack.c.bf16 %v1912, %v1912
    %v1914 = vpack.c.bf16 %v1799, %v1799
    %1915 = vmatprep.subr.bf16.mxu0 %v841
    %1916 = vmatpush1.bf16.msra.mxu0 %v840
    %1917 = vmatprep.subr.bf16.mxu0 %v845
    %1918 = vmatpush1.bf16.msra.mxu0 %v844
    %1919 = vmatprep.subr.bf16.mxu0 %v849
    %1920 = vmatpush1.bf16.msra.mxu0 %v848
    %1921 = vmatprep.subr.bf16.mxu0 %v853
    %1922 = vmatpush1.bf16.msra.mxu0 %v852
    %1923 = vmatprep.subr.bf16.mxu0 %v857
    %1924 = vmatpush1.bf16.msra.mxu0 %v856
    %1925 = vmatprep.subr.bf16.mxu0 %v861
    %1926 = vmatpush1.bf16.msra.mxu0 %v860
    %1927 = vmatprep.subr.bf16.mxu0 %v865
    %1928 = vmatpush1.bf16.msra.mxu0 %v864
    %1929 = vmatprep.subr.bf16.mxu0 %v869
    %1930 = vmatpush1.bf16.msra.mxu0 %v868
    %1931 = vmatprep.subr.bf16.mxu0 %v873
    %1932 = vmatpush1.bf16.msra.mxu0 %v872
    %1933 = vmatprep.subr.bf16.mxu0 %v877
    %1934 = vmatpush1.bf16.msra.mxu0 %v876
    %1935 = vmatprep.subr.bf16.mxu0 %v881
    %1936 = vmatpush1.bf16.msra.mxu0 %v880
    %1937 = vmatprep.subr.bf16.mxu0 %v885
    %1938 = vmatpush1.bf16.msra.mxu0 %v884
    %1939 = vmatprep.subr.bf16.mxu0 %v889
    %1940 = vmatpush1.bf16.msra.mxu0 %v888
    %1941 = vmatprep.subr.bf16.mxu0 %v893
    %1942 = vmatpush1.bf16.msra.mxu0 %v892
    %1943 = vmatprep.subr.bf16.mxu0 %v897
    %1944 = vmatpush1.bf16.msra.mxu0 %v896
    %1945 = vmatprep.subr.bf16.mxu0 %v901
    %1946 = vmatpush1.bf16.msra.mxu0 %v900
    %1947 = vmatprep.mubr.bf16.mxu0 %v1914
    %1948 = vmatmul.mubr.bf16.gmra.mrb[0].mxu0 %v1913
    %v1949 = vpop.f32.mrb[0].mxu0
    %v1950 = vadd.f32 %v359, %v1949
    %v1951 = vpop.f32.mrb[0].mxu0
    %v1952 = vadd.f32 %v363, %v1951
    %v1953 = vpop.f32.mrb[0].mxu0
    %v1954 = vpop.f32.mrb[0].mxu0
    %1955 = vdwg.mxu0
    %1956 = vmatprep.subr.bf16.mxu0 %v843
    %1957 = vmatpush1.bf16.msra.mxu0 %v842
    %1958 = vmatprep.subr.bf16.mxu0 %v847
    %1959 = vmatpush1.bf16.msra.mxu0 %v846
    %1960 = vmatprep.subr.bf16.mxu0 %v851
    %1961 = vmatpush1.bf16.msra.mxu0 %v850
    %1962 = vmatprep.subr.bf16.mxu0 %v855
    %1963 = vmatpush1.bf16.msra.mxu0 %v854
    %1964 = vmatprep.subr.bf16.mxu0 %v859
    %1965 = vmatpush1.bf16.msra.mxu0 %v858
    %1966 = vmatprep.subr.bf16.mxu0 %v863
    %1967 = vmatpush1.bf16.msra.mxu0 %v862
    %1968 = vmatprep.subr.bf16.mxu0 %v867
    %1969 = vmatpush1.bf16.msra.mxu0 %v866
    %1970 = vmatprep.subr.bf16.mxu0 %v871
    %1971 = vmatpush1.bf16.msra.mxu0 %v870
    %1972 = vmatprep.subr.bf16.mxu0 %v875
    %1973 = vmatpush1.bf16.msra.mxu0 %v874
    %1974 = vmatprep.subr.bf16.mxu0 %v879
    %1975 = vmatpush1.bf16.msra.mxu0 %v878
    %1976 = vmatprep.subr.bf16.mxu0 %v883
    %1977 = vmatpush1.bf16.msra.mxu0 %v882
    %1978 = vmatprep.subr.bf16.mxu0 %v887
    %1979 = vmatpush1.bf16.msra.mxu0 %v886
    %1980 = vmatprep.subr.bf16.mxu0 %v891
    %1981 = vmatpush1.bf16.msra.mxu0 %v890
    %1982 = vmatprep.subr.bf16.mxu0 %v895
    %1983 = vmatpush1.bf16.msra.mxu0 %v894
    %1984 = vmatprep.subr.bf16.mxu0 %v899
    %1985 = vmatpush1.bf16.msra.mxu0 %v898
    %1986 = vmatprep.subr.bf16.mxu0 %v903
    %1987 = vmatpush1.bf16.msra.mxu0 %v902
    %1988 = vmatprep.mubr.bf16.mxu0 %v1914
    %1989 = vmatmul.mubr.bf16.gmra.mrb[0].mxu0 %v1913
    %v1990 = vpop.f32.mrb[0].mxu0
    %v1991 = vadd.f32 %v367, %v1990
    %v1992 = vpop.f32.mrb[0].mxu0
    %v1993 = vadd.f32 %v371, %v1992
    %v1994 = vpop.f32.mrb[0].mxu0
    %v1995 = vpop.f32.mrb[0].mxu0
    %1996 = vdwg.mxu0
    %v1997 = vxor.u32 %v1950, 2147483648
    %v1998 = vmul.f32 %v1997, 1.442695
    %v1999 = vpow.pop %v1998
    %v2000 = vadd.f32 %v1999, 1.0
    %v2001 = vrcp.pop %v2000
    %v2002 = vmul.f32 1.0, %v2001
    %v2003 = vxor.u32 %v1952, 2147483648
    %v2004 = vmul.f32 %v2003, 1.442695
    %v2005 = vpow.pop %v2004
    %v2006 = vadd.f32 %v2005, 1.0
    %v2007 = vrcp.pop %v2006
    %v2008 = vmul.f32 1.0, %v2007
    %v2009 = vtanh.pop %v1991
    %v2010 = vxor.u32 %v1993, 2147483648
    %v2011 = vmul.f32 %v2010, 1.442695
    %v2012 = vpow.pop %v2011
    %v2013 = vadd.f32 %v2012, 1.0
    %v2014 = vrcp.pop %v2013
    %v2015 = vmul.f32 1.0, %v2014
    %v2016 = vmul.f32 %v2008, %v1797
    %v2017 = vmul.f32 %v2002, %v2009
    %v2018 = vadd.f32 %v2016, %v2017
    %v2019 = vtanh.pop %v2018
    %v2020 = vmul.f32 %v2015, %v2019
    %2021 = vmatprep.subr.bf16.mxu0 %v473
    %2022 = vmatpush1.bf16.msra.mxu0 %v472
    %2023 = vmatprep.subr.bf16.mxu0 %v477
    %2024 = vmatpush1.bf16.msra.mxu0 %v476
    %2025 = vmatprep.subr.bf16.mxu0 %v481
    %2026 = vmatpush1.bf16.msra.mxu0 %v480
    %2027 = vmatprep.subr.bf16.mxu0 %v485
    %2028 = vmatpush1.bf16.msra.mxu0 %v484
    %2029 = vmatprep.subr.bf16.mxu0 %v489
    %2030 = vmatpush1.bf16.msra.mxu0 %v488
    %2031 = vmatprep.subr.bf16.mxu0 %v493
    %2032 = vmatpush1.bf16.msra.mxu0 %v492
    %2033 = vmatprep.subr.bf16.mxu0 %v497
    %2034 = vmatpush1.bf16.msra.mxu0 %v496
    %2035 = vmatprep.subr.bf16.mxu0 %v501
    %2036 = vmatpush1.bf16.msra.mxu0 %v500
    %2037 = vmatprep.subr.bf16.mxu0 0
    %2038 = vmatpush1.bf16.msra.mxu0 0
    %2039 = vmatprep.subr.bf16.mxu0 0
    %2040 = vmatpush1.bf16.msra.mxu0 0
    %2041 = vmatprep.subr.bf16.mxu0 0
    %2042 = vmatpush1.bf16.msra.mxu0 0
    %2043 = vmatprep.subr.bf16.mxu0 0
    %2044 = vmatpush1.bf16.msra.mxu0 0
    %2045 = vmatprep.subr.bf16.mxu0 0
    %2046 = vmatpush1.bf16.msra.mxu0 0
    %2047 = vmatprep.subr.bf16.mxu0 0
    %2048 = vmatpush1.bf16.msra.mxu0 0
    %2049 = vmatprep.subr.bf16.mxu0 0
    %2050 = vmatpush1.bf16.msra.mxu0 0
    %2051 = vmatprep.subr.bf16.mxu0 0
    %2052 = vmatpush1.bf16.msra.mxu0 0
    %2053 = vmatprep.mubr.bf16.mxu0 0
    %2054 = vmatmul.mubr.bf16.gmra.mrb[0].mxu0 %v1913
    %v2055 = vpop.f32.mrb[0].mxu0
    %v2056 = vadd.f32 0.0, %v2055
    %v2057 = vpop.f32.mrb[0].mxu0
    %v2058 = vadd.f32 0.0, %v2057
    %v2059 = vpop.f32.mrb[0].mxu0
    %v2060 = vpop.f32.mrb[0].mxu0
    %2061 = vdwg.mxu0
    %2062 = vmatprep.subr.bf16.mxu0 %v475
    %2063 = vmatpush1.bf16.msra.mxu0 %v474
    %2064 = vmatprep.subr.bf16.mxu0 %v479
    %2065 = vmatpush1.bf16.msra.mxu0 %v478
    %2066 = vmatprep.subr.bf16.mxu0 %v483
    %2067 = vmatpush1.bf16.msra.mxu0 %v482
    %2068 = vmatprep.subr.bf16.mxu0 %v487
    %2069 = vmatpush1.bf16.msra.mxu0 %v486
    %2070 = vmatprep.subr.bf16.mxu0 %v491
    %2071 = vmatpush1.bf16.msra.mxu0 %v490
    %2072 = vmatprep.subr.bf16.mxu0 %v495
    %2073 = vmatpush1.bf16.msra.mxu0 %v494
    %2074 = vmatprep.subr.bf16.mxu0 %v499
    %2075 = vmatpush1.bf16.msra.mxu0 %v498
    %2076 = vmatprep.subr.bf16.mxu0 %v503
    %2077 = vmatpush1.bf16.msra.mxu0 %v502
    %2078 = vmatprep.subr.bf16.mxu0 0
    %2079 = vmatpush1.bf16.msra.mxu0 0
    %2080 = vmatprep.subr.bf16.mxu0 0
    %2081 = vmatpush1.bf16.msra.mxu0 0
    %2082 = vmatprep.subr.bf16.mxu0 0
    %2083 = vmatpush1.bf16.msra.mxu0 0
    %2084 = vmatprep.subr.bf16.mxu0 0
    %2085 = vmatpush1.bf16.msra.mxu0 0
    %2086 = vmatprep.subr.bf16.mxu0 0
    %2087 = vmatpush1.bf16.msra.mxu0 0
    %2088 = vmatprep.subr.bf16.mxu0 0
    %2089 = vmatpush1.bf16.msra.mxu0 0
    %2090 = vmatprep.subr.bf16.mxu0 0
    %2091 = vmatpush1.bf16.msra.mxu0 0
    %2092 = vmatprep.subr.bf16.mxu0 0
    %2093 = vmatpush1.bf16.msra.mxu0 0
    %2094 = vmatprep.mubr.bf16.mxu0 0
    %2095 = vmatmul.mubr.bf16.gmra.mrb[0].mxu0 %v1913
    %v2096 = vpop.f32.mrb[0].mxu0
    %v2097 = vadd.f32 0.0, %v2096
    %v2098 = vpop.f32.mrb[0].mxu0
    %v2099 = vadd.f32 0.0, %v2098
    %v2100 = vpop.f32.mrb[0].mxu0
    %v2101 = vpop.f32.mrb[0].mxu0
    %2102 = vdwg.mxu0
    %v2107 = vrot.slane %v2056, 6
    %v2108 = vrot.slane %v2058, 6
    %v2109 = vrot.slane %v2097, 6
    %v2110 = vrot.slane %v2099, 6
    %v2115 = vadd.f32 %v211, %v2107
    %v2116 = vadd.f32 %v213, %v2108
    %v2117 = vadd.f32 %v254, %v2109
    %v2118 = vadd.f32 %v256, %v2110
    %v2119 = vxor.u32 %v2115, 2147483648
    %v2120 = vmul.f32 %v2119, 1.442695
    %v2121 = vpow.pop %v2120
    %v2122 = vadd.f32 %v2121, 1.0
    %v2123 = vrcp.pop %v2122
    %v2124 = vmul.f32 1.0, %v2123
    %v2125 = vxor.u32 %v2116, 2147483648
    %v2126 = vmul.f32 %v2125, 1.442695
    %v2127 = vpow.pop %v2126
    %v2128 = vadd.f32 %v2127, 1.0
    %v2129 = vrcp.pop %v2128
    %v2130 = vmul.f32 1.0, %v2129
    %v2131 = vtanh.pop %v2117
    %v2132 = vxor.u32 %v2118, 2147483648
    %v2133 = vmul.f32 %v2132, 1.442695
    %v2134 = vpow.pop %v2133
    %v2135 = vadd.f32 %v2134, 1.0
    %v2136 = vrcp.pop %v2135
    %v2137 = vmul.f32 1.0, %v2136
    %v2139 = vrot.slane %v1910, 6
    %v2141 = vmul.f32 %v2130, %v2139
    %v2142 = vmul.f32 %v2124, %v2131
    %v2143 = vadd.f32 %v2141, %v2142
    %v2144 = vtanh.pop %v2143
    %v2145 = vmul.f32 %v2137, %v2144
    %v2147 = vrot.slane %v2020, 6
    %v2149 = vpack.c.bf16 %v2145, %v2145
    %v2150 = vpack.c.bf16 %v2147, %v2147
    %v2153 = vrot.slane %v2149, 1
    %v2154 = vrot.slane %v2150, 1
    %2157 = vmatprep.subr.bf16.mxu0 %v841
    %2158 = vmatpush1.bf16.msra.mxu0 %v840
    %2159 = vmatprep.subr.bf16.mxu0 %v845
    %2160 = vmatpush1.bf16.msra.mxu0 %v844
    %2161 = vmatprep.subr.bf16.mxu0 %v849
    %2162 = vmatpush1.bf16.msra.mxu0 %v848
    %2163 = vmatprep.subr.bf16.mxu0 %v853
    %2164 = vmatpush1.bf16.msra.mxu0 %v852
    %2165 = vmatprep.subr.bf16.mxu0 %v857
    %2166 = vmatpush1.bf16.msra.mxu0 %v856
    %2167 = vmatprep.subr.bf16.mxu0 %v861
    %2168 = vmatpush1.bf16.msra.mxu0 %v860
    %2169 = vmatprep.subr.bf16.mxu0 %v865
    %2170 = vmatpush1.bf16.msra.mxu0 %v864
    %2171 = vmatprep.subr.bf16.mxu0 %v869
    %2172 = vmatpush1.bf16.msra.mxu0 %v868
    %2173 = vmatprep.subr.bf16.mxu0 %v873
    %2174 = vmatpush1.bf16.msra.mxu0 %v872
    %2175 = vmatprep.subr.bf16.mxu0 %v877
    %2176 = vmatpush1.bf16.msra.mxu0 %v876
    %2177 = vmatprep.subr.bf16.mxu0 %v881
    %2178 = vmatpush1.bf16.msra.mxu0 %v880
    %2179 = vmatprep.subr.bf16.mxu0 %v885
    %2180 = vmatpush1.bf16.msra.mxu0 %v884
    %2181 = vmatprep.subr.bf16.mxu0 %v889
    %2182 = vmatpush1.bf16.msra.mxu0 %v888
    %2183 = vmatprep.subr.bf16.mxu0 %v893
    %2184 = vmatpush1.bf16.msra.mxu0 %v892
    %2185 = vmatprep.subr.bf16.mxu0 %v897
    %2186 = vmatpush1.bf16.msra.mxu0 %v896
    %2187 = vmatprep.subr.bf16.mxu0 %v901
    %2188 = vmatpush1.bf16.msra.mxu0 %v900
    %2189 = vmatprep.mubr.bf16.mxu0 %v2154
    %2190 = vmatmul.mubr.bf16.gmra.mrb[0].mxu0 %v2153
    %v2191 = vpop.f32.mrb[0].mxu0
    %v2192 = vadd.f32 %v359, %v2191
    %v2193 = vpop.f32.mrb[0].mxu0
    %v2194 = vadd.f32 %v363, %v2193
    %v2195 = vpop.f32.mrb[0].mxu0
    %v2196 = vpop.f32.mrb[0].mxu0
    %2197 = vdwg.mxu0
    %2198 = vmatprep.subr.bf16.mxu0 %v843
    %2199 = vmatpush1.bf16.msra.mxu0 %v842
    %2200 = vmatprep.subr.bf16.mxu0 %v847
    %2201 = vmatpush1.bf16.msra.mxu0 %v846
    %2202 = vmatprep.subr.bf16.mxu0 %v851
    %2203 = vmatpush1.bf16.msra.mxu0 %v850
    %2204 = vmatprep.subr.bf16.mxu0 %v855
    %2205 = vmatpush1.bf16.msra.mxu0 %v854
    %2206 = vmatprep.subr.bf16.mxu0 %v859
    %2207 = vmatpush1.bf16.msra.mxu0 %v858
    %2208 = vmatprep.subr.bf16.mxu0 %v863
    %2209 = vmatpush1.bf16.msra.mxu0 %v862
    %2210 = vmatprep.subr.bf16.mxu0 %v867
    %2211 = vmatpush1.bf16.msra.mxu0 %v866
    %2212 = vmatprep.subr.bf16.mxu0 %v871
    %2213 = vmatpush1.bf16.msra.mxu0 %v870
    %2214 = vmatprep.subr.bf16.mxu0 %v875
    %2215 = vmatpush1.bf16.msra.mxu0 %v874
    %2216 = vmatprep.subr.bf16.mxu0 %v879
    %2217 = vmatpush1.bf16.msra.mxu0 %v878
    %2218 = vmatprep.subr.bf16.mxu0 %v883
    %2219 = vmatpush1.bf16.msra.mxu0 %v882
    %2220 = vmatprep.subr.bf16.mxu0 %v887
    %2221 = vmatpush1.bf16.msra.mxu0 %v886
    %2222 = vmatprep.subr.bf16.mxu0 %v891
    %2223 = vmatpush1.bf16.msra.mxu0 %v890
    %2224 = vmatprep.subr.bf16.mxu0 %v895
    %2225 = vmatpush1.bf16.msra.mxu0 %v894
    %2226 = vmatprep.subr.bf16.mxu0 %v899
    %2227 = vmatpush1.bf16.msra.mxu0 %v898
    %2228 = vmatprep.subr.bf16.mxu0 %v903
    %2229 = vmatpush1.bf16.msra.mxu0 %v902
    %2230 = vmatprep.mubr.bf16.mxu0 %v2154
    %2231 = vmatmul.mubr.bf16.gmra.mrb[0].mxu0 %v2153
    %v2232 = vpop.f32.mrb[0].mxu0
    %v2233 = vadd.f32 %v367, %v2232
    %v2234 = vpop.f32.mrb[0].mxu0
    %v2235 = vadd.f32 %v371, %v2234
    %v2236 = vpop.f32.mrb[0].mxu0
    %v2237 = vpop.f32.mrb[0].mxu0
    %2238 = vdwg.mxu0
    %v2239 = vxor.u32 %v2192, 2147483648
    %v2240 = vmul.f32 %v2239, 1.442695
    %v2241 = vpow.pop %v2240
    %v2242 = vadd.f32 %v2241, 1.0
    %v2243 = vrcp.pop %v2242
    %v2244 = vmul.f32 1.0, %v2243
    %v2245 = vxor.u32 %v2194, 2147483648
    %v2246 = vmul.f32 %v2245, 1.442695
    %v2247 = vpow.pop %v2246
    %v2248 = vadd.f32 %v2247, 1.0
    %v2249 = vrcp.pop %v2248
    %v2250 = vmul.f32 1.0, %v2249
    %v2251 = vtanh.pop %v2233
    %v2252 = vxor.u32 %v2235, 2147483648
    %v2253 = vmul.f32 %v2252, 1.442695
    %v2254 = vpow.pop %v2253
    %v2255 = vadd.f32 %v2254, 1.0
    %v2256 = vrcp.pop %v2255
    %v2257 = vmul.f32 1.0, %v2256
    %v2258 = vmul.f32 %v2250, %v2018
    %v2259 = vmul.f32 %v2244, %v2251
    %v2260 = vadd.f32 %v2258, %v2259
    %v2261 = vtanh.pop %v2260
    %v2262 = vmul.f32 %v2257, %v2261
    %2263 = vmatprep.subr.bf16.mxu0 %v473
    %2264 = vmatpush1.bf16.msra.mxu0 %v472
    %2265 = vmatprep.subr.bf16.mxu0 %v477
    %2266 = vmatpush1.bf16.msra.mxu0 %v476
    %2267 = vmatprep.subr.bf16.mxu0 %v481
    %2268 = vmatpush1.bf16.msra.mxu0 %v480
    %2269 = vmatprep.subr.bf16.mxu0 %v485
    %2270 = vmatpush1.bf16.msra.mxu0 %v484
    %2271 = vmatprep.subr.bf16.mxu0 %v489
    %2272 = vmatpush1.bf16.msra.mxu0 %v488
    %2273 = vmatprep.subr.bf16.mxu0 %v493
    %2274 = vmatpush1.bf16.msra.mxu0 %v492
    %2275 = vmatprep.subr.bf16.mxu0 %v497
    %2276 = vmatpush1.bf16.msra.mxu0 %v496
    %2277 = vmatprep.subr.bf16.mxu0 %v501
    %2278 = vmatpush1.bf16.msra.mxu0 %v500
    %2279 = vmatprep.subr.bf16.mxu0 0
    %2280 = vmatpush1.bf16.msra.mxu0 0
    %2281 = vmatprep.subr.bf16.mxu0 0
    %2282 = vmatpush1.bf16.msra.mxu0 0
    %2283 = vmatprep.subr.bf16.mxu0 0
    %2284 = vmatpush1.bf16.msra.mxu0 0
    %2285 = vmatprep.subr.bf16.mxu0 0
    %2286 = vmatpush1.bf16.msra.mxu0 0
    %2287 = vmatprep.subr.bf16.mxu0 0
    %2288 = vmatpush1.bf16.msra.mxu0 0
    %2289 = vmatprep.subr.bf16.mxu0 0
    %2290 = vmatpush1.bf16.msra.mxu0 0
    %2291 = vmatprep.subr.bf16.mxu0 0
    %2292 = vmatpush1.bf16.msra.mxu0 0
    %2293 = vmatprep.subr.bf16.mxu0 0
    %2294 = vmatpush1.bf16.msra.mxu0 0
    %2295 = vmatprep.mubr.bf16.mxu0 0
    %2296 = vmatmul.mubr.bf16.gmra.mrb[0].mxu0 %v2153
    %v2297 = vpop.f32.mrb[0].mxu0
    %v2298 = vadd.f32 0.0, %v2297
    %v2299 = vpop.f32.mrb[0].mxu0
    %v2300 = vadd.f32 0.0, %v2299
    %v2301 = vpop.f32.mrb[0].mxu0
    %v2302 = vpop.f32.mrb[0].mxu0
    %2303 = vdwg.mxu0
    %2304 = vmatprep.subr.bf16.mxu0 %v475
    %2305 = vmatpush1.bf16.msra.mxu0 %v474
    %2306 = vmatprep.subr.bf16.mxu0 %v479
    %2307 = vmatpush1.bf16.msra.mxu0 %v478
    %2308 = vmatprep.subr.bf16.mxu0 %v483
    %2309 = vmatpush1.bf16.msra.mxu0 %v482
    %2310 = vmatprep.subr.bf16.mxu0 %v487
    %2311 = vmatpush1.bf16.msra.mxu0 %v486
    %2312 = vmatprep.subr.bf16.mxu0 %v491
    %2313 = vmatpush1.bf16.msra.mxu0 %v490
    %2314 = vmatprep.subr.bf16.mxu0 %v495
    %2315 = vmatpush1.bf16.msra.mxu0 %v494
    %2316 = vmatprep.subr.bf16.mxu0 %v499
    %2317 = vmatpush1.bf16.msra.mxu0 %v498
    %2318 = vmatprep.subr.bf16.mxu0 %v503
    %2319 = vmatpush1.bf16.msra.mxu0 %v502
    %2320 = vmatprep.subr.bf16.mxu0 0
    %2321 = vmatpush1.bf16.msra.mxu0 0
    %2322 = vmatprep.subr.bf16.mxu0 0
    %2323 = vmatpush1.bf16.msra.mxu0 0
    %2324 = vmatprep.subr.bf16.mxu0 0
    %2325 = vmatpush1.bf16.msra.mxu0 0
    %2326 = vmatprep.subr.bf16.mxu0 0
    %2327 = vmatpush1.bf16.msra.mxu0 0
    %2328 = vmatprep.subr.bf16.mxu0 0
    %2329 = vmatpush1.bf16.msra.mxu0 0
    %2330 = vmatprep.subr.bf16.mxu0 0
    %2331 = vmatpush1.bf16.msra.mxu0 0
    %2332 = vmatprep.subr.bf16.mxu0 0
    %2333 = vmatpush1.bf16.msra.mxu0 0
    %2334 = vmatprep.subr.bf16.mxu0 0
    %2335 = vmatpush1.bf16.msra.mxu0 0
    %2336 = vmatprep.mubr.bf16.mxu0 0
    %2337 = vmatmul.mubr.bf16.gmra.mrb[0].mxu0 %v2153
    %v2338 = vpop.f32.mrb[0].mxu0
    %v2339 = vadd.f32 0.0, %v2338
    %v2340 = vpop.f32.mrb[0].mxu0
    %v2341 = vadd.f32 0.0, %v2340
    %v2342 = vpop.f32.mrb[0].mxu0
    %v2343 = vpop.f32.mrb[0].mxu0
    %2344 = vdwg.mxu0
    %v2349 = vrot.slane %v2298, 4
    %v2350 = vrot.slane %v2300, 4
    %v2351 = vrot.slane %v2339, 4
    %v2352 = vrot.slane %v2341, 4
    %v2357 = vadd.f32 %v211, %v2349
    %v2358 = vadd.f32 %v213, %v2350
    %v2359 = vadd.f32 %v254, %v2351
    %v2360 = vadd.f32 %v256, %v2352
    %v2361 = vxor.u32 %v2357, 2147483648
    %v2362 = vmul.f32 %v2361, 1.442695
    %v2363 = vpow.pop %v2362
    %v2364 = vadd.f32 %v2363, 1.0
    %v2365 = vrcp.pop %v2364
    %v2366 = vmul.f32 1.0, %v2365
    %v2367 = vxor.u32 %v2358, 2147483648
    %v2368 = vmul.f32 %v2367, 1.442695
    %v2369 = vpow.pop %v2368
    %v2370 = vadd.f32 %v2369, 1.0
    %v2371 = vrcp.pop %v2370
    %v2372 = vmul.f32 1.0, %v2371
    %v2373 = vtanh.pop %v2359
    %v2374 = vxor.u32 %v2360, 2147483648
    %v2375 = vmul.f32 %v2374, 1.442695
    %v2376 = vpow.pop %v2375
    %v2377 = vadd.f32 %v2376, 1.0
    %v2378 = vrcp.pop %v2377
    %v2379 = vmul.f32 1.0, %v2378
    %v2381 = vrot.slane %v2143, 6
    %v2383 = vmul.f32 %v2372, %v2381
    %v2384 = vmul.f32 %v2366, %v2373
    %v2385 = vadd.f32 %v2383, %v2384
    %v2386 = vtanh.pop %v2385
    %v2387 = vmul.f32 %v2379, %v2386
    %v2389 = vrot.slane %v2262, 4
    %v2391 = vpack.c.bf16 %v2387, %v2387
    %v2392 = vpack.c.bf16 %v2389, %v2389
    %v2395 = vrot.slane %v2391, 2
    %v2396 = vrot.slane %v2392, 2
    %2399 = vmatprep.subr.bf16.mxu0 %v841
    %2400 = vmatpush1.bf16.msra.mxu0 %v840
    %2401 = vmatprep.subr.bf16.mxu0 %v845
    %2402 = vmatpush1.bf16.msra.mxu0 %v844
    %2403 = vmatprep.subr.bf16.mxu0 %v849
    %2404 = vmatpush1.bf16.msra.mxu0 %v848
    %2405 = vmatprep.subr.bf16.mxu0 %v853
    %2406 = vmatpush1.bf16.msra.mxu0 %v852
    %2407 = vmatprep.subr.bf16.mxu0 %v857
    %2408 = vmatpush1.bf16.msra.mxu0 %v856
    %2409 = vmatprep.subr.bf16.mxu0 %v861
    %2410 = vmatpush1.bf16.msra.mxu0 %v860
    %2411 = vmatprep.subr.bf16.mxu0 %v865
    %2412 = vmatpush1.bf16.msra.mxu0 %v864
    %2413 = vmatprep.subr.bf16.mxu0 %v869
    %2414 = vmatpush1.bf16.msra.mxu0 %v868
    %2415 = vmatprep.subr.bf16.mxu0 %v873
    %2416 = vmatpush1.bf16.msra.mxu0 %v872
    %2417 = vmatprep.subr.bf16.mxu0 %v877
    %2418 = vmatpush1.bf16.msra.mxu0 %v876
    %2419 = vmatprep.subr.bf16.mxu0 %v881
    %2420 = vmatpush1.bf16.msra.mxu0 %v880
    %2421 = vmatprep.subr.bf16.mxu0 %v885
    %2422 = vmatpush1.bf16.msra.mxu0 %v884
    %2423 = vmatprep.subr.bf16.mxu0 %v889
    %2424 = vmatpush1.bf16.msra.mxu0 %v888
    %2425 = vmatprep.subr.bf16.mxu0 %v893
    %2426 = vmatpush1.bf16.msra.mxu0 %v892
    %2427 = vmatprep.subr.bf16.mxu0 %v897
    %2428 = vmatpush1.bf16.msra.mxu0 %v896
    %2429 = vmatprep.subr.bf16.mxu0 %v901
    %2430 = vmatpush1.bf16.msra.mxu0 %v900
    %2431 = vmatprep.mubr.bf16.mxu0 %v2396
    %2432 = vmatmul.mubr.bf16.gmra.mrb[0].mxu0 %v2395
    %v2433 = vpop.f32.mrb[0].mxu0
    %v2434 = vadd.f32 %v359, %v2433
    %v2435 = vpop.f32.mrb[0].mxu0
    %v2436 = vadd.f32 %v363, %v2435
    %v2437 = vpop.f32.mrb[0].mxu0
    %v2438 = vpop.f32.mrb[0].mxu0
    %2439 = vdwg.mxu0
    %2440 = vmatprep.subr.bf16.mxu0 %v843
    %2441 = vmatpush1.bf16.msra.mxu0 %v842
    %2442 = vmatprep.subr.bf16.mxu0 %v847
    %2443 = vmatpush1.bf16.msra.mxu0 %v846
    %2444 = vmatprep.subr.bf16.mxu0 %v851
    %2445 = vmatpush1.bf16.msra.mxu0 %v850
    %2446 = vmatprep.subr.bf16.mxu0 %v855
    %2447 = vmatpush1.bf16.msra.mxu0 %v854
    %2448 = vmatprep.subr.bf16.mxu0 %v859
    %2449 = vmatpush1.bf16.msra.mxu0 %v858
    %2450 = vmatprep.subr.bf16.mxu0 %v863
    %2451 = vmatpush1.bf16.msra.mxu0 %v862
    %2452 = vmatprep.subr.bf16.mxu0 %v867
    %2453 = vmatpush1.bf16.msra.mxu0 %v866
    %2454 = vmatprep.subr.bf16.mxu0 %v871
    %2455 = vmatpush1.bf16.msra.mxu0 %v870
    %2456 = vmatprep.subr.bf16.mxu0 %v875
    %2457 = vmatpush1.bf16.msra.mxu0 %v874
    %2458 = vmatprep.subr.bf16.mxu0 %v879
    %2459 = vmatpush1.bf16.msra.mxu0 %v878
    %2460 = vmatprep.subr.bf16.mxu0 %v883
    %2461 = vmatpush1.bf16.msra.mxu0 %v882
    %2462 = vmatprep.subr.bf16.mxu0 %v887
    %2463 = vmatpush1.bf16.msra.mxu0 %v886
    %2464 = vmatprep.subr.bf16.mxu0 %v891
    %2465 = vmatpush1.bf16.msra.mxu0 %v890
    %2466 = vmatprep.subr.bf16.mxu0 %v895
    %2467 = vmatpush1.bf16.msra.mxu0 %v894
    %2468 = vmatprep.subr.bf16.mxu0 %v899
    %2469 = vmatpush1.bf16.msra.mxu0 %v898
    %2470 = vmatprep.subr.bf16.mxu0 %v903
    %2471 = vmatpush1.bf16.msra.mxu0 %v902
    %2472 = vmatprep.mubr.bf16.mxu0 %v2396
    %2473 = vmatmul.mubr.bf16.gmra.mrb[0].mxu0 %v2395
    %v2474 = vpop.f32.mrb[0].mxu0
    %v2475 = vadd.f32 %v367, %v2474
    %v2476 = vpop.f32.mrb[0].mxu0
    %v2477 = vadd.f32 %v371, %v2476
    %v2478 = vpop.f32.mrb[0].mxu0
    %v2479 = vpop.f32.mrb[0].mxu0
    %2480 = vdwg.mxu0
    %v2481 = vxor.u32 %v2434, 2147483648
    %v2482 = vmul.f32 %v2481, 1.442695
    %v2483 = vpow.pop %v2482
    %v2484 = vadd.f32 %v2483, 1.0
    %v2485 = vrcp.pop %v2484
    %v2486 = vmul.f32 1.0, %v2485
    %v2487 = vxor.u32 %v2436, 2147483648
    %v2488 = vmul.f32 %v2487, 1.442695
    %v2489 = vpow.pop %v2488
    %v2490 = vadd.f32 %v2489, 1.0
    %v2491 = vrcp.pop %v2490
    %v2492 = vmul.f32 1.0, %v2491
    %v2493 = vtanh.pop %v2475
    %v2494 = vxor.u32 %v2477, 2147483648
    %v2495 = vmul.f32 %v2494, 1.442695
    %v2496 = vpow.pop %v2495
    %v2497 = vadd.f32 %v2496, 1.0
    %v2498 = vrcp.pop %v2497
    %v2499 = vmul.f32 1.0, %v2498
    %v2500 = vmul.f32 %v2492, %v2260
    %v2501 = vmul.f32 %v2486, %v2493
    %v2502 = vadd.f32 %v2500, %v2501
    %v2503 = vtanh.pop %v2502
    %v2504 = vmul.f32 %v2499, %v2503
    %2505 = vmatprep.subr.bf16.mxu0 %v473
    %2506 = vmatpush1.bf16.msra.mxu0 %v472
    %2507 = vmatprep.subr.bf16.mxu0 %v477
    %2508 = vmatpush1.bf16.msra.mxu0 %v476
    %2509 = vmatprep.subr.bf16.mxu0 %v481
    %2510 = vmatpush1.bf16.msra.mxu0 %v480
    %2511 = vmatprep.subr.bf16.mxu0 %v485
    %2512 = vmatpush1.bf16.msra.mxu0 %v484
    %2513 = vmatprep.subr.bf16.mxu0 %v489
    %2514 = vmatpush1.bf16.msra.mxu0 %v488
    %2515 = vmatprep.subr.bf16.mxu0 %v493
    %2516 = vmatpush1.bf16.msra.mxu0 %v492
    %2517 = vmatprep.subr.bf16.mxu0 %v497
    %2518 = vmatpush1.bf16.msra.mxu0 %v496
    %2519 = vmatprep.subr.bf16.mxu0 %v501
    %2520 = vmatpush1.bf16.msra.mxu0 %v500
    %2521 = vmatprep.subr.bf16.mxu0 0
    %2522 = vmatpush1.bf16.msra.mxu0 0
    %2523 = vmatprep.subr.bf16.mxu0 0
    %2524 = vmatpush1.bf16.msra.mxu0 0
    %2525 = vmatprep.subr.bf16.mxu0 0
    %2526 = vmatpush1.bf16.msra.mxu0 0
    %2527 = vmatprep.subr.bf16.mxu0 0
    %2528 = vmatpush1.bf16.msra.mxu0 0
    %2529 = vmatprep.subr.bf16.mxu0 0
    %2530 = vmatpush1.bf16.msra.mxu0 0
    %2531 = vmatprep.subr.bf16.mxu0 0
    %2532 = vmatpush1.bf16.msra.mxu0 0
    %2533 = vmatprep.subr.bf16.mxu0 0
    %2534 = vmatpush1.bf16.msra.mxu0 0
    %2535 = vmatprep.subr.bf16.mxu0 0
    %2536 = vmatpush1.bf16.msra.mxu0 0
    %2537 = vmatprep.mubr.bf16.mxu0 0
    %2538 = vmatmul.mubr.bf16.gmra.mrb[0].mxu0 %v2395
    %v2539 = vpop.f32.mrb[0].mxu0
    %v2540 = vadd.f32 0.0, %v2539
    %v2541 = vpop.f32.mrb[0].mxu0
    %v2542 = vadd.f32 0.0, %v2541
    %v2543 = vpop.f32.mrb[0].mxu0
    %v2544 = vpop.f32.mrb[0].mxu0
    %2545 = vdwg.mxu0
    %2546 = vmatprep.subr.bf16.mxu0 %v475
    %2547 = vmatpush1.bf16.msra.mxu0 %v474
    %2548 = vmatprep.subr.bf16.mxu0 %v479
    %2549 = vmatpush1.bf16.msra.mxu0 %v478
    %2550 = vmatprep.subr.bf16.mxu0 %v483
    %2551 = vmatpush1.bf16.msra.mxu0 %v482
    %2552 = vmatprep.subr.bf16.mxu0 %v487
    %2553 = vmatpush1.bf16.msra.mxu0 %v486
    %2554 = vmatprep.subr.bf16.mxu0 %v491
    %2555 = vmatpush1.bf16.msra.mxu0 %v490
    %2556 = vmatprep.subr.bf16.mxu0 %v495
    %2557 = vmatpush1.bf16.msra.mxu0 %v494
    %2558 = vmatprep.subr.bf16.mxu0 %v499
    %2559 = vmatpush1.bf16.msra.mxu0 %v498
    %2560 = vmatprep.subr.bf16.mxu0 %v503
    %2561 = vmatpush1.bf16.msra.mxu0 %v502
    %2562 = vmatprep.subr.bf16.mxu0 0
    %2563 = vmatpush1.bf16.msra.mxu0 0
    %2564 = vmatprep.subr.bf16.mxu0 0
    %2565 = vmatpush1.bf16.msra.mxu0 0
    %2566 = vmatprep.subr.bf16.mxu0 0
    %2567 = vmatpush1.bf16.msra.mxu0 0
    %2568 = vmatprep.subr.bf16.mxu0 0
    %2569 = vmatpush1.bf16.msra.mxu0 0
    %2570 = vmatprep.subr.bf16.mxu0 0
    %2571 = vmatpush1.bf16.msra.mxu0 0
    %2572 = vmatprep.subr.bf16.mxu0 0
    %2573 = vmatpush1.bf16.msra.mxu0 0
    %2574 = vmatprep.subr.bf16.mxu0 0
    %2575 = vmatpush1.bf16.msra.mxu0 0
    %2576 = vmatprep.subr.bf16.mxu0 0
    %2577 = vmatpush1.bf16.msra.mxu0 0
    %2578 = vmatprep.mubr.bf16.mxu0 0
    %2579 = vmatmul.mubr.bf16.gmra.mrb[0].mxu0 %v2395
    %v2580 = vpop.f32.mrb[0].mxu0
    %v2581 = vadd.f32 0.0, %v2580
    %v2582 = vpop.f32.mrb[0].mxu0
    %v2583 = vadd.f32 0.0, %v2582
    %v2584 = vpop.f32.mrb[0].mxu0
    %v2585 = vpop.f32.mrb[0].mxu0
    %2586 = vdwg.mxu0
    %v2591 = vrot.slane %v2540, 2
    %v2592 = vrot.slane %v2542, 2
    %v2593 = vrot.slane %v2581, 2
    %v2594 = vrot.slane %v2583, 2
    %v2599 = vadd.f32 %v211, %v2591
    %v2600 = vadd.f32 %v213, %v2592
    %v2601 = vadd.f32 %v254, %v2593
    %v2602 = vadd.f32 %v256, %v2594
    %v2603 = vxor.u32 %v2599, 2147483648
    %v2604 = vmul.f32 %v2603, 1.442695
    %v2605 = vpow.pop %v2604
    %v2606 = vadd.f32 %v2605, 1.0
    %v2607 = vrcp.pop %v2606
    %v2608 = vmul.f32 1.0, %v2607
    %v2609 = vxor.u32 %v2600, 2147483648
    %v2610 = vmul.f32 %v2609, 1.442695
    %v2611 = vpow.pop %v2610
    %v2612 = vadd.f32 %v2611, 1.0
    %v2613 = vrcp.pop %v2612
    %v2614 = vmul.f32 1.0, %v2613
    %v2615 = vtanh.pop %v2601
    %v2616 = vxor.u32 %v2602, 2147483648
    %v2617 = vmul.f32 %v2616, 1.442695
    %v2618 = vpow.pop %v2617
    %v2619 = vadd.f32 %v2618, 1.0
    %v2620 = vrcp.pop %v2619
    %v2621 = vmul.f32 1.0, %v2620
    %v2623 = vrot.slane %v2385, 6
    %v2625 = vmul.f32 %v2614, %v2623
    %v2626 = vmul.f32 %v2608, %v2615
    %v2627 = vadd.f32 %v2625, %v2626
    %v2628 = vtanh.pop %v2627
    %v2629 = vmul.f32 %v2621, %v2628
    %v2631 = vrot.slane %v2504, 2
    %v2633 = vpack.c.bf16 %v2629, %v2629
    %v2634 = vpack.c.bf16 %v2631, %v2631
    %v2637 = vrot.slane %v2633, 3
    %v2638 = vrot.slane %v2634, 3
    %2641 = vmatprep.subr.bf16.mxu0 %v841
    %2642 = vmatpush1.bf16.msra.mxu0 %v840
    %2643 = vmatprep.subr.bf16.mxu0 %v845
    %2644 = vmatpush1.bf16.msra.mxu0 %v844
    %2645 = vmatprep.subr.bf16.mxu0 %v849
    %2646 = vmatpush1.bf16.msra.mxu0 %v848
    %2647 = vmatprep.subr.bf16.mxu0 %v853
    %2648 = vmatpush1.bf16.msra.mxu0 %v852
    %2649 = vmatprep.subr.bf16.mxu0 %v857
    %2650 = vmatpush1.bf16.msra.mxu0 %v856
    %2651 = vmatprep.subr.bf16.mxu0 %v861
    %2652 = vmatpush1.bf16.msra.mxu0 %v860
    %2653 = vmatprep.subr.bf16.mxu0 %v865
    %2654 = vmatpush1.bf16.msra.mxu0 %v864
    %2655 = vmatprep.subr.bf16.mxu0 %v869
    %2656 = vmatpush1.bf16.msra.mxu0 %v868
    %2657 = vmatprep.subr.bf16.mxu0 %v873
    %2658 = vmatpush1.bf16.msra.mxu0 %v872
    %2659 = vmatprep.subr.bf16.mxu0 %v877
    %2660 = vmatpush1.bf16.msra.mxu0 %v876
    %2661 = vmatprep.subr.bf16.mxu0 %v881
    %2662 = vmatpush1.bf16.msra.mxu0 %v880
    %2663 = vmatprep.subr.bf16.mxu0 %v885
    %2664 = vmatpush1.bf16.msra.mxu0 %v884
    %2665 = vmatprep.subr.bf16.mxu0 %v889
    %2666 = vmatpush1.bf16.msra.mxu0 %v888
    %2667 = vmatprep.subr.bf16.mxu0 %v893
    %2668 = vmatpush1.bf16.msra.mxu0 %v892
    %2669 = vmatprep.subr.bf16.mxu0 %v897
    %2670 = vmatpush1.bf16.msra.mxu0 %v896
    %2671 = vmatprep.subr.bf16.mxu0 %v901
    %2672 = vmatpush1.bf16.msra.mxu0 %v900
    %2673 = vmatprep.mubr.bf16.mxu0 %v2638
    %2674 = vmatmul.mubr.bf16.gmra.mrb[0].mxu0 %v2637
    %v2675 = vpop.f32.mrb[0].mxu0
    %v2676 = vadd.f32 %v359, %v2675
    %v2677 = vpop.f32.mrb[0].mxu0
    %v2678 = vadd.f32 %v363, %v2677
    %v2679 = vpop.f32.mrb[0].mxu0
    %v2680 = vpop.f32.mrb[0].mxu0
    %2681 = vdwg.mxu0
    %2682 = vmatprep.subr.bf16.mxu0 %v843
    %2683 = vmatpush1.bf16.msra.mxu0 %v842
    %2684 = vmatprep.subr.bf16.mxu0 %v847
    %2685 = vmatpush1.bf16.msra.mxu0 %v846
    %2686 = vmatprep.subr.bf16.mxu0 %v851
    %2687 = vmatpush1.bf16.msra.mxu0 %v850
    %2688 = vmatprep.subr.bf16.mxu0 %v855
    %2689 = vmatpush1.bf16.msra.mxu0 %v854
    %2690 = vmatprep.subr.bf16.mxu0 %v859
    %2691 = vmatpush1.bf16.msra.mxu0 %v858
    %2692 = vmatprep.subr.bf16.mxu0 %v863
    %2693 = vmatpush1.bf16.msra.mxu0 %v862
    %2694 = vmatprep.subr.bf16.mxu0 %v867
    %2695 = vmatpush1.bf16.msra.mxu0 %v866
    %2696 = vmatprep.subr.bf16.mxu0 %v871
    %2697 = vmatpush1.bf16.msra.mxu0 %v870
    %2698 = vmatprep.subr.bf16.mxu0 %v875
    %2699 = vmatpush1.bf16.msra.mxu0 %v874
    %2700 = vmatprep.subr.bf16.mxu0 %v879
    %2701 = vmatpush1.bf16.msra.mxu0 %v878
    %2702 = vmatprep.subr.bf16.mxu0 %v883
    %2703 = vmatpush1.bf16.msra.mxu0 %v882
    %2704 = vmatprep.subr.bf16.mxu0 %v887
    %2705 = vmatpush1.bf16.msra.mxu0 %v886
    %2706 = vmatprep.subr.bf16.mxu0 %v891
    %2707 = vmatpush1.bf16.msra.mxu0 %v890
    %2708 = vmatprep.subr.bf16.mxu0 %v895
    %2709 = vmatpush1.bf16.msra.mxu0 %v894
    %2710 = vmatprep.subr.bf16.mxu0 %v899
    %2711 = vmatpush1.bf16.msra.mxu0 %v898
    %2712 = vmatprep.subr.bf16.mxu0 %v903
    %2713 = vmatpush1.bf16.msra.mxu0 %v902
    %2714 = vmatprep.mubr.bf16.mxu0 %v2638
    %2715 = vmatmul.mubr.bf16.gmra.mrb[0].mxu0 %v2637
    %v2716 = vpop.f32.mrb[0].mxu0
    %v2717 = vadd.f32 %v367, %v2716
    %v2718 = vpop.f32.mrb[0].mxu0
    %v2719 = vadd.f32 %v371, %v2718
    %v2720 = vpop.f32.mrb[0].mxu0
    %v2721 = vpop.f32.mrb[0].mxu0
    %2722 = vdwg.mxu0
    %v2723 = vxor.u32 %v2676, 2147483648
    %v2724 = vmul.f32 %v2723, 1.442695
    %v2725 = vpow.pop %v2724
    %v2726 = vadd.f32 %v2725, 1.0
    %v2727 = vrcp.pop %v2726
    %v2728 = vmul.f32 1.0, %v2727
    %v2729 = vxor.u32 %v2678, 2147483648
    %v2730 = vmul.f32 %v2729, 1.442695
    %v2731 = vpow.pop %v2730
    %v2732 = vadd.f32 %v2731, 1.0
    %v2733 = vrcp.pop %v2732
    %v2734 = vmul.f32 1.0, %v2733
    %v2735 = vtanh.pop %v2717
    %v2736 = vxor.u32 %v2719, 2147483648
    %v2737 = vmul.f32 %v2736, 1.442695
    %v2738 = vpow.pop %v2737
    %v2739 = vadd.f32 %v2738, 1.0
    %v2740 = vrcp.pop %v2739
    %v2741 = vmul.f32 1.0, %v2740
    %v2742 = vmul.f32 %v2734, %v2502
    %v2743 = vmul.f32 %v2728, %v2735
    %v2744 = vadd.f32 %v2742, %v2743
    %v2745 = vtanh.pop %v2744
    %v2746 = vmul.f32 %v2741, %v2745
    %v2747 = vpack.c.bf16 %v2746, %v2746
    %v2748 = vld [vmem:[#allocation8] sm:$0xf]
    %v2749 = vld [vmem:[#allocation8 + $0x4] sm:$0xf]
    %v2750 = vld [vmem:[#allocation8 + $0x8] sm:$0xf]
    %v2751 = vld [vmem:[#allocation8 + $0xc] sm:$0xf]
    %v2752 = vld [vmem:[#allocation8 + $0x10] sm:$0xf]
    %v2753 = vld [vmem:[#allocation8 + $0x14] sm:$0xf]
    %v2754 = vld [vmem:[#allocation8 + $0x18] sm:$0xf]
    %v2755 = vld [vmem:[#allocation8 + $0x1c] sm:$0xf]
    %v2756 = vld [vmem:[#allocation8 + $0x20] sm:$0xf]
    %v2757 = vld [vmem:[#allocation8 + $0x24] sm:$0xf]
    %v2758 = vld [vmem:[#allocation8 + $0x28] sm:$0xf]
    %v2759 = vld [vmem:[#allocation8 + $0x2c] sm:$0xf]
    %v2760 = vld [vmem:[#allocation8 + $0x30] sm:$0xf]
    %v2761 = vld [vmem:[#allocation8 + $0x34] sm:$0xf]
    %v2762 = vld [vmem:[#allocation8 + $0x38] sm:$0xf]
    %v2763 = vld [vmem:[#allocation8 + $0x3c] sm:$0xf]
    %v2764 = vld [vmem:[%s7] sm:$0x1]
    %v2766 = vlaneseq
    %v2767 = vshrl.u32 %v2766, 7
    %v2768 = vsub.s32 0, %v2767
    %v2769 = vrot.slane %v2764, %v2768
    %v2787 = vunpack.c.l.b16 %v2748
    %v2788 = vunpack.c.l.b16 %v2749
    %v2789 = vunpack.c.l.b16 %v2750
    %v2790 = vunpack.c.l.b16 %v2751
    %v2791 = vunpack.c.l.b16 %v2752
    %v2792 = vunpack.c.l.b16 %v2753
    %v2793 = vunpack.c.l.b16 %v2754
    %v2794 = vunpack.c.l.b16 %v2755
    %v2795 = vunpack.c.l.b16 %v2756
    %v2796 = vunpack.c.l.b16 %v2757
    %v2797 = vunpack.c.l.b16 %v2758
    %v2798 = vunpack.c.l.b16 %v2759
    %v2799 = vunpack.c.l.b16 %v2760
    %v2800 = vunpack.c.l.b16 %v2761
    %v2801 = vunpack.c.l.b16 %v2762
    %v2802 = vunpack.c.l.b16 %v2763
    %v2803 = vpack.c.b16 %v2788, %v2787
    %v2804 = vpack.c.b16 %v2790, %v2789
    %v2805 = vpack.c.b16 %v2792, %v2791
    %v2806 = vpack.c.b16 %v2794, %v2793
    %v2807 = vpack.c.b16 %v2796, %v2795
    %v2808 = vpack.c.b16 %v2798, %v2797
    %v2809 = vpack.c.b16 %v2800, %v2799
    %v2810 = vpack.c.b16 %v2802, %v2801
    %2819 = vmatprep.subr.bf16.mxu0 0
    %2820 = vmatpush1.bf16.msra.mxu0 %v2803
    %2821 = vmatprep.subr.bf16.mxu0 0
    %2822 = vmatpush1.bf16.msra.mxu0 %v2804
    %2823 = vmatprep.subr.bf16.mxu0 0
    %2824 = vmatpush1.bf16.msra.mxu0 %v2805
    %2825 = vmatprep.subr.bf16.mxu0 0
    %2826 = vmatpush1.bf16.msra.mxu0 %v2806
    %2827 = vmatprep.subr.bf16.mxu0 0
    %2828 = vmatpush1.bf16.msra.mxu0 %v2807
    %2829 = vmatprep.subr.bf16.mxu0 0
    %2830 = vmatpush1.bf16.msra.mxu0 %v2808
    %2831 = vmatprep.subr.bf16.mxu0 0
    %2832 = vmatpush1.bf16.msra.mxu0 %v2809
    %2833 = vmatprep.subr.bf16.mxu0 0
    %2834 = vmatpush1.bf16.msra.mxu0 %v2810
    %2835 = vmatprep.subr.bf16.mxu0 0
    %2836 = vmatpush1.bf16.msra.mxu0 0
    %2837 = vmatprep.subr.bf16.mxu0 0
    %2838 = vmatpush1.bf16.msra.mxu0 0
    %2839 = vmatprep.subr.bf16.mxu0 0
    %2840 = vmatpush1.bf16.msra.mxu0 0
    %2841 = vmatprep.subr.bf16.mxu0 0
    %2842 = vmatpush1.bf16.msra.mxu0 0
    %2843 = vmatprep.subr.bf16.mxu0 0
    %2844 = vmatpush1.bf16.msra.mxu0 0
    %2845 = vmatprep.subr.bf16.mxu0 0
    %2846 = vmatpush1.bf16.msra.mxu0 0
    %2847 = vmatprep.subr.bf16.mxu0 0
    %2848 = vmatpush1.bf16.msra.mxu0 0
    %2849 = vmatprep.subr.bf16.mxu0 0
    %2850 = vmatpush1.bf16.msra.mxu0 0
    %2851 = vmatprep.mubr.bf16.mxu0 0
    %2852 = vmatmul.mubr.bf16.gmra.mrb[0].mxu0 %v2747
    %v2853 = vpop.f32.mrb[0].mxu0
    %v2854 = vadd.f32 %v2769, %v2853
    %v2855 = vpop.f32.mrb[0].mxu0
    %v2856 = vpop.f32.mrb[0].mxu0
    %v2857 = vpop.f32.mrb[0].mxu0
    %2858 = vdwg.mxu0
    %2859 = vst [vmem:[#allocation10] sm:$0x3] %v2854
    // Predicated region
    $region50: #{rnn_forward.1} parent=1 // pred_check
      _
    $region51: #{rnn_forward.1} parent=1 // pred_check_branch
      %2861 = sbr.rel (0) target = $region53
    $region52: #{rnn_forward.1} parent=1 // pred_region
      %s2863 = ssub.s32 32, 32
      %2864 = vsyncadd [#allocation4], %s2863
      %s2866 = sshll.u32 [#allocation10], 4
      %s2867 = int_to_ptr.vmem [resolvable:$true] %s2866
      %2869 = dma.vmem_to_hbm [thread:$0]  %s2867, 32, %s8, [#allocation4]
    $region53: #{rnn_forward.1} parent=1 // pred_fallthru
      _
    // Predicated region
    $region54: #{rnn_forward.1} parent=1 // pred_check
      _
    $region55: #{rnn_forward.1} parent=1 // pred_check_branch
      %2871 = sbr.rel (0) target = $region57
    $region56: #{rnn_forward.1} parent=1 // pred_region
      %2872 = dma.done [#allocation4], 32
    $region57: #{rnn_forward.1} parent=1 // pred_fallthru
      _
    %2873 = vsyncpa [#allocation3], 1
    %2874 = vsyncpa [#allocation6], 1
    %2875 = vsyncpa [#allocation9], 1
    %2876 = vsyncpa [#allocation4], 1

</llo_original>
